<compile_context>
chip_gen: v7x
topology: tpu7x:2x2x1
jax: 0.10.0
libtpu: 0.0.40
codegen_flags: <defaults>
</compile_context>

<pallas_src>
import math

import jax
import jax.numpy as jnp
from jax.experimental import pallas as pl
from jax.experimental.pallas import tpu as pltpu

# ----------------------------- configuration -------------------------------
STATE_DIM = 3                       # initial_state features (indices 1,2 rescaled)
ACTION_DIM = 5
INPUT_DIM = STATE_DIM + ACTION_DIM  # concat([state_repeated, actions], -1)
HIDDEN_DIM = 32
OUTPUT_DIM = 3
OUT_PAD = 128                       # lane-dense padded output width
NHEAD = 4
HEAD_DIM = HIDDEN_DIM // NHEAD
NUM_LAYERS = 2
FF_DIM = 2048                       # nn.TransformerEncoderLayer default
MAX_LEN = 150
LN_EPS = 1e-5

B = 2                               # batch
T = 8                               # action sequence length


# ------------------------------ Pallas kernel ------------------------------
def _make_kernel(num_layers, batch, hidden_dim, head_dim, ln_eps):
    H = hidden_dim
    scale = 1.0 / math.sqrt(head_dim)

    def layer_norm(v, g, b):
        mu = jnp.mean(v, axis=-1, keepdims=True)
        var = jnp.mean((v - mu) ** 2, axis=-1, keepdims=True)
        return (v - mu) * jax.lax.rsqrt(var + ln_eps) * g + b

    def kernel(x_ref, pos_ref, w_in_ref, b_in_ref, hb_ref, perm_ref,
               wqkv_ref, bqkv_ref, wo_ref, bo_ref, ln1g_ref, ln1b_ref,
               w1_ref, b1_ref, w2_ref, b2_ref, ln2g_ref, ln2b_ref,
               w_out_ref, b_out_ref, out_ref, h_ref):
        l = pl.program_id(0)

        # ---- layer 0 only: linear_in + positional encoding ----------------
        @pl.when(l == 0)
        def _():
            x = x_ref[...]                                   # (N, INPUT_DIM)
            h0 = jnp.dot(x, w_in_ref[...],
                         preferred_element_type=jnp.float32)
            h_ref[...] = h0 + b_in_ref[...] + pos_ref[...]

        h = h_ref[...]                                       # (N, H), f32

        # ---- self-attention (mixes the B rows within each t-group) --------
        qkv = jnp.dot(h, wqkv_ref[0],
                      preferred_element_type=jnp.float32) + bqkv_ref[0]
        q = qkv[:, 0:H] * scale
        k = qkv[:, H:2 * H]
        v = qkv[:, 2 * H:3 * H]

        hb = hb_ref[...]                                     # (H, H) blockdiag ones
        s_list, v_list = [], []
        for r in range(batch):
            if r == 0:
                k_r, v_r = k, v
            else:
                p_mat = perm_ref[r - 1]                      # (N, N) in-group rotation
                k_r = jnp.dot(p_mat, k, preferred_element_type=jnp.float32)
                v_r = jnp.dot(p_mat, v, preferred_element_type=jnp.float32)
            # per-head dot product, broadcast across each head's 8 lanes
            s_list.append(jnp.dot(q * k_r, hb,
                                  preferred_element_type=jnp.float32))
            v_list.append(v_r)

        m = s_list[0]
        for s_r in s_list[1:]:
            m = jnp.maximum(m, s_r)
        e_list = [jnp.exp(s_r - m) for s_r in s_list]
        denom = e_list[0]
        for e_r in e_list[1:]:
            denom = denom + e_r
        inv = 1.0 / denom
        attn = e_list[0] * inv * v_list[0]
        for e_r, v_r in zip(e_list[1:], v_list[1:]):
            attn = attn + e_r * inv * v_r

        attn = jnp.dot(attn, wo_ref[0],
                       preferred_element_type=jnp.float32) + bo_ref[0]
        h = layer_norm(h + attn, ln1g_ref[0], ln1b_ref[0])

        # ---- feed-forward (bf16 weights, f32 accumulation, ReLU) ----------
        ff = jnp.dot(h.astype(jnp.bfloat16), w1_ref[0],
                     preferred_element_type=jnp.float32) + b1_ref[0]
        ff = jnp.maximum(ff, 0.0)
        ff = jax.lax.dot_general(                            # (N,F) x (H,F)^T
            ff.astype(jnp.bfloat16), w2_ref[0],
            dimension_numbers=(((1,), (1,)), ((), ())),
            preferred_element_type=jnp.float32) + b2_ref[0]
        h = layer_norm(h + ff, ln2g_ref[0], ln2b_ref[0])

        h_ref[...] = h

        # ---- last layer only: linear_out (lane-dense padded output) -------
        @pl.when(l == num_layers - 1)
        def _():
            out_ref[...] = jnp.dot(h, w_out_ref[...],
                                   preferred_element_type=jnp.float32) + b_out_ref[...]

    return kernel


# ------------------------------ JAX wrapper --------------------------------
def model_forward(initial_state, actions, params):
    # PyTorch preprocessing: clone kept, then in-place rescale of cols 1 and 2.
    orig = initial_state
    scaled = initial_state.at[:, 1].set(initial_state[:, 1] / 3.0)
    scaled = scaled.at[:, 2].set(initial_state[:, 2] / 30.0)
    acts = actions / 5.0
    bsz, seq, _ = acts.shape
    n = seq * bsz
    hd = HIDDEN_DIM

    init_rep = jnp.broadcast_to(scaled[:, None, :], (bsz, seq, scaled.shape[1]))
    x = jnp.concatenate([init_rep, acts], axis=-1)            # (B, T, INPUT_DIM)
    # batch_first=False quirk: dim0 (B) is the attention sequence axis, dim1 (T)
    # the attention batch.  Flatten T-major so rows [t*B:(t+1)*B] form one group.
    x_flat = jnp.transpose(x, (1, 0, 2)).reshape(n, INPUT_DIM)
    pos = params['pos_enc'][:seq, :]                          # indexed by size(1)=T
    pos_flat = jnp.broadcast_to(pos[:, None, :], (seq, bsz, hd)).reshape(n, hd)

    # Block-diagonal ones: per-head segment sum + broadcast in one matmul.
    head_id = jnp.arange(hd) // HEAD_DIM
    hb = (head_id[:, None] == head_id[None, :]).astype(jnp.float32)

    # Within-group row-rotation permutation matrices (attention axis is B).
    row = jnp.arange(n)
    t_idx, i_idx = row // bsz, row % bsz
    perm_list = []
    for r in range(1, max(bsz, 2)):
        src = t_idx * bsz + (i_idx + r) % bsz
        perm_list.append((jnp.arange(n)[None, :] == src[:, None]).astype(jnp.float32))
    perm = jnp.stack(perm_list, axis=0)                       # (max(B-1,1), N, N)

    L, F = NUM_LAYERS, FF_DIM

    def const2(shape):
        return pl.BlockSpec(shape, lambda l: (0, 0))

    def perlayer3(shape):
        return pl.BlockSpec(shape, lambda l: (l, 0, 0))

    in_specs = [
        const2((n, INPUT_DIM)),                               # x_flat
        const2((n, hd)),                                      # pos_flat
        const2((INPUT_DIM, hd)),                              # w_in_t
        const2((1, hd)),                                      # b_in
        const2((hd, hd)),                                     # hb
        pl.BlockSpec((perm.shape[0], n, n), lambda l: (0, 0, 0)),  # perm
        perlayer3((1, hd, 3 * hd)),                           # wqkv_t
        perlayer3((1, 1, 3 * hd)),                            # bqkv
        perlayer3((1, hd, hd)),                               # wo_t
        perlayer3((1, 1, hd)),                                # bo
        perlayer3((1, 1, hd)),                                # ln1g
        perlayer3((1, 1, hd)),                                # ln1b
        perlayer3((1, hd, F)),                                # w1_t (bf16)
        perlayer3((1, 1, F)),                                 # b1
        perlayer3((1, hd, F)),                                # w2   (bf16)
        perlayer3((1, 1, hd)),                                # b2
        perlayer3((1, 1, hd)),                                # ln2g
        perlayer3((1, 1, hd)),                                # ln2b
        const2((hd, OUT_PAD)),                                # w_out_pad
        const2((1, OUT_PAD)),                                 # b_out_pad
    ]
    out_spec = pl.BlockSpec((n, OUT_PAD), lambda l: (0, 0))

    kernel = _make_kernel(NUM_LAYERS, bsz, hd, HEAD_DIM, LN_EPS)

    out_pad = pl.pallas_call(
        kernel,
        out_shape=jax.ShapeDtypeStruct((n, OUT_PAD), jnp.float32),
        grid_spec=pltpu.PrefetchScalarGridSpec(
            num_scalar_prefetch=0,
            grid=(NUM_LAYERS,),
            in_specs=in_specs,
            out_specs=out_spec,
            scratch_shapes=[pltpu.VMEM((n, hd), jnp.float32)]),
        compiler_params=pltpu.CompilerParams(
            dimension_semantics=("arbitrary",)),
    )(x_flat, pos_flat, params['w_in_t'], params['b_in'], hb, perm,
      params['wqkv_t'], params['bqkv'], params['wo_t'], params['bo'],
      params['ln1g'], params['ln1b'], params['w1_t'], params['b1'],
      params['w2'], params['b2'], params['ln2g'], params['ln2b'],
      params['w_out_pad'], params['b_out_pad'])

    # PyTorch post-processing: /100, then add original voltage / temperature.
    out = out_pad[:, :OUTPUT_DIM].reshape(seq, bsz, OUTPUT_DIM)
    out = jnp.transpose(out, (1, 0, 2)) / 100.0               # (B, T, 3)
    out = out.at[:, :, 0].add(orig[:, 1][:, None])
    out = out.at[:, :, 1].add(orig[:, 2][:, None])
    return out


# --------------------------- parameter creation -----------------------------
def init_params(key):
    keys = jax.random.split(key, 16)

    def nrm(k, shape, s=0.05):
        return (s * jax.random.normal(k, shape)).astype(jnp.float32)

    L, H, F = NUM_LAYERS, HIDDEN_DIM, FF_DIM
    w_out = nrm(keys[11], (H, OUTPUT_DIM))                    # linear_out.weight.T
    b_out = nrm(keys[12], (1, OUTPUT_DIM))
    return dict(
        w_in_t=nrm(keys[0], (INPUT_DIM, H)),                  # linear_in.weight.T
        b_in=nrm(keys[1], (1, H)),
        # nn.Parameter(torch.zeros(max_len, hidden)) — learned; small randoms so
        # the add is exercised.
        pos_enc=nrm(keys[2], (MAX_LEN, H), 0.02),
        wqkv_t=nrm(keys[3], (L, H, 3 * H)),                   # in_proj_weight.T
        bqkv=nrm(keys[4], (L, 1, 3 * H)),
        wo_t=nrm(keys[5], (L, H, H)),                         # out_proj.weight.T
        bo=nrm(keys[6], (L, 1, H)),
        ln1g=jnp.ones((L, 1, H), jnp.float32),
        ln1b=jnp.zeros((L, 1, H), jnp.float32),
        w1_t=nrm(keys[7], (L, H, F)).astype(jnp.bfloat16),    # linear1.weight.T (bf16)
        b1=nrm(keys[8], (L, 1, F)),
        w2=nrm(keys[9], (L, H, F)).astype(jnp.bfloat16),      # linear2.weight (bf16)
        b2=nrm(keys[10], (L, 1, H)),
        ln2g=jnp.ones((L, 1, H), jnp.float32),
        ln2b=jnp.zeros((L, 1, H), jnp.float32),
        w_out_pad=jnp.pad(w_out, ((0, 0), (0, OUT_PAD - OUTPUT_DIM))),
        b_out_pad=jnp.pad(b_out, ((0, 0), (0, OUT_PAD - OUTPUT_DIM))),
    )


# ----------------------------------- main -----------------------------------
if __name__ == "__main__":
    key = jax.random.PRNGKey(0)
    k_params, k_state, k_actions = jax.random.split(key, 3)

    params = init_params(k_params)
    initial_state = jax.random.normal(k_state, (B, STATE_DIM), dtype=jnp.float32)
    actions = jax.random.normal(k_actions, (B, T, ACTION_DIM), dtype=jnp.float32)

    out = model_forward(initial_state, actions, params)
    out = jax.block_until_ready(out)
    assert out.shape == (B, T, OUTPUT_DIM), out.shape
    assert bool(jnp.all(jnp.isfinite(out)))
    print("KERNEL_OK")
</pallas_src>

<mosaic_0001>
module attributes {stable_mosaic.version = 11 : i64} {
  func.func @kernel(%arg0: i32, %arg1: memref<16x8xf32, #tpu.memory_space<vmem>>, %arg2: memref<16x32xf32, #tpu.memory_space<vmem>>, %arg3: memref<8x32xf32, #tpu.memory_space<vmem>>, %arg4: memref<1x32xf32, #tpu.memory_space<vmem>>, %arg5: memref<32x32xf32, #tpu.memory_space<vmem>>, %arg6: memref<1x16x16xf32, #tpu.memory_space<vmem>>, %arg7: memref<1x32x96xf32, #tpu.memory_space<vmem>>, %arg8: memref<1x1x96xf32, #tpu.memory_space<vmem>>, %arg9: memref<1x32x32xf32, #tpu.memory_space<vmem>>, %arg10: memref<1x1x32xf32, #tpu.memory_space<vmem>>, %arg11: memref<1x1x32xf32, #tpu.memory_space<vmem>>, %arg12: memref<1x1x32xf32, #tpu.memory_space<vmem>>, %arg13: memref<1x32x2048xbf16, #tpu.memory_space<vmem>>, %arg14: memref<1x1x2048xf32, #tpu.memory_space<vmem>>, %arg15: memref<1x32x2048xbf16, #tpu.memory_space<vmem>>, %arg16: memref<1x1x32xf32, #tpu.memory_space<vmem>>, %arg17: memref<1x1x32xf32, #tpu.memory_space<vmem>>, %arg18: memref<1x1x32xf32, #tpu.memory_space<vmem>>, %arg19: memref<32x128xf32, #tpu.memory_space<vmem>>, %arg20: memref<1x128xf32, #tpu.memory_space<vmem>>, %arg21: memref<16x128xf32, #tpu.memory_space<vmem>>, %arg22: memref<16x32xf32, #tpu.memory_space<vmem>>) attributes {dimension_semantics = [#tpu.dimension_semantics<arbitrary>], iteration_bounds = array<i64: 2>, scalar_prefetch = 0 : i64, scratch_operands = 1 : i64, tpu.core_type = #tpu.core_type<tc>, window_params = [{pipeline_mode = #tpu.pipeline_mode<synchronous>, transform_indices = @transform_0, window_bounds = array<i64: 16, 8>}, {pipeline_mode = #tpu.pipeline_mode<synchronous>, transform_indices = @transform_1, window_bounds = array<i64: 16, 32>}, {pipeline_mode = #tpu.pipeline_mode<synchronous>, transform_indices = @transform_2, window_bounds = array<i64: 8, 32>}, {pipeline_mode = #tpu.pipeline_mode<synchronous>, transform_indices = @transform_3, window_bounds = array<i64: 1, 32>}, {pipeline_mode = #tpu.pipeline_mode<synchronous>, transform_indices = @transform_4, window_bounds = array<i64: 32, 32>}, {pipeline_mode = #tpu.pipeline_mode<synchronous>, transform_indices = @transform_5, window_bounds = array<i64: 1, 16, 16>}, {transform_indices = @transform_6, window_bounds = array<i64: 1, 32, 96>}, {transform_indices = @transform_7, window_bounds = array<i64: 1, 1, 96>}, {transform_indices = @transform_8, window_bounds = array<i64: 1, 32, 32>}, {transform_indices = @transform_9, window_bounds = array<i64: 1, 1, 32>}, {transform_indices = @transform_10, window_bounds = array<i64: 1, 1, 32>}, {transform_indices = @transform_11, window_bounds = array<i64: 1, 1, 32>}, {transform_indices = @transform_12, window_bounds = array<i64: 1, 32, 2048>}, {transform_indices = @transform_13, window_bounds = array<i64: 1, 1, 2048>}, {transform_indices = @transform_14, window_bounds = array<i64: 1, 32, 2048>}, {transform_indices = @transform_15, window_bounds = array<i64: 1, 1, 32>}, {transform_indices = @transform_16, window_bounds = array<i64: 1, 1, 32>}, {transform_indices = @transform_17, window_bounds = array<i64: 1, 1, 32>}, {pipeline_mode = #tpu.pipeline_mode<synchronous>, transform_indices = @transform_18, window_bounds = array<i64: 32, 128>}, {pipeline_mode = #tpu.pipeline_mode<synchronous>, transform_indices = @transform_19, window_bounds = array<i64: 1, 128>}, {pipeline_mode = #tpu.pipeline_mode<synchronous>, transform_indices = @transform_20, window_bounds = array<i64: 16, 128>}]} {
    %c0_i32 = arith.constant 0 : i32
    %0 = arith.cmpi eq, %arg0, %c0_i32 : i32
    %1 = arith.extui %0 : i1 to i32
    %c0_i32_0 = arith.constant 0 : i32
    %2 = arith.cmpi ne, %1, %c0_i32_0 : i32
    scf.if %2 {
      %c0_66 = arith.constant 0 : index
      %c0_67 = arith.constant 0 : index
      %121 = vector.load %arg1[%c0_66, %c0_67] : memref<16x8xf32, #tpu.memory_space<vmem>>, vector<16x8xf32>
      %c0_68 = arith.constant 0 : index
      %c0_69 = arith.constant 0 : index
      %122 = vector.load %arg3[%c0_68, %c0_69] : memref<8x32xf32, #tpu.memory_space<vmem>>, vector<8x32xf32>
      %cst_70 = arith.constant dense<0.000000e+00> : vector<16x32xf32>
      %123 = tpu.matmul %121, %122, %cst_70 {dimension_numbers = #tpu.dot_dimension_numbers<[1], [0], [0], [1], [0, 0, 1, 1], [], []>} : vector<16x8xf32>, vector<8x32xf32>, vector<16x32xf32> -> vector<16x32xf32>
      %c0_71 = arith.constant 0 : index
      %c0_72 = arith.constant 0 : index
      %124 = vector.load %arg4[%c0_71, %c0_72] : memref<1x32xf32, #tpu.memory_space<vmem>>, vector<1x32xf32>
      %125 = vector.broadcast %124 : vector<1x32xf32> to vector<16x32xf32>
      %126 = arith.addf %123, %125 : vector<16x32xf32>
      %c0_73 = arith.constant 0 : index
      %c0_74 = arith.constant 0 : index
      %127 = vector.load %arg2[%c0_73, %c0_74] : memref<16x32xf32, #tpu.memory_space<vmem>>, vector<16x32xf32>
      %128 = arith.addf %126, %127 : vector<16x32xf32>
      %c0_75 = arith.constant 0 : index
      %c0_76 = arith.constant 0 : index
      %129 = vector.load %arg22[%c0_75, %c0_76] : memref<16x32xf32, #tpu.memory_space<vmem>>, vector<16x32xf32>
      tpu.vector_store %arg22[%c0_75, %c0_76], %128 {strides = array<i32>} : memref<16x32xf32, #tpu.memory_space<vmem>>, vector<16x32xf32>,
    } else {
    }
    %c0 = arith.constant 0 : index
    %c0_1 = arith.constant 0 : index
    %3 = vector.load %arg22[%c0, %c0_1] : memref<16x32xf32, #tpu.memory_space<vmem>>, vector<16x32xf32>
    %c0_2 = arith.constant 0 : index
    %c0_3 = arith.constant 0 : index
    %c0_4 = arith.constant 0 : index
    %4 = vector.load %arg7[%c0_2, %c0_3, %c0_4] : memref<1x32x96xf32, #tpu.memory_space<vmem>>, vector<1x32x96xf32>
    %5 = vector.shape_cast %4 : vector<1x32x96xf32> to vector<32x96xf32>
    %cst = arith.constant dense<0.000000e+00> : vector<16x96xf32>
    %6 = tpu.matmul %3, %5, %cst {dimension_numbers = #tpu.dot_dimension_numbers<[1], [0], [0], [1], [0, 0, 1, 1], [], []>} : vector<16x32xf32>, vector<32x96xf32>, vector<16x96xf32> -> vector<16x96xf32>
    %c0_5 = arith.constant 0 : index
    %c0_6 = arith.constant 0 : index
    %c0_7 = arith.constant 0 : index
    %7 = vector.load %arg8[%c0_5, %c0_6, %c0_7] : memref<1x1x96xf32, #tpu.memory_space<vmem>>, vector<1x1x96xf32>
    %8 = vector.shape_cast %7 : vector<1x1x96xf32> to vector<1x96xf32>
    %9 = vector.broadcast %8 : vector<1x96xf32> to vector<16x96xf32>
    %10 = arith.addf %6, %9 : vector<16x96xf32>
    %11 = vector.extract_strided_slice %10 {offsets = [0, 0], sizes = [16, 32], strides = [1, 1]} : vector<16x96xf32> to vector<16x32xf32>
    %cst_8 = arith.constant 0.353553385 : f32
    %12 = vector.broadcast %cst_8 : f32 to vector<16x32xf32>
    %13 = arith.mulf %11, %12 : vector<16x32xf32>
    %14 = vector.extract_strided_slice %10 {offsets = [0, 32], sizes = [16, 32], strides = [1, 1]} : vector<16x96xf32> to vector<16x32xf32>
    %15 = vector.extract_strided_slice %10 {offsets = [0, 64], sizes = [16, 32], strides = [1, 1]} : vector<16x96xf32> to vector<16x32xf32>
    %c0_9 = arith.constant 0 : index
    %c0_10 = arith.constant 0 : index
    %16 = vector.load %arg5[%c0_9, %c0_10] : memref<32x32xf32, #tpu.memory_space<vmem>>, vector<32x32xf32>
    %17 = arith.mulf %13, %14 : vector<16x32xf32>
    %cst_11 = arith.constant dense<0.000000e+00> : vector<16x32xf32>
    %18 = tpu.matmul %17, %16, %cst_11 {dimension_numbers = #tpu.dot_dimension_numbers<[1], [0], [0], [1], [0, 0, 1, 1], [], []>} : vector<16x32xf32>, vector<32x32xf32>, vector<16x32xf32> -> vector<16x32xf32>
    %c0_12 = arith.constant 0 : index
    %c0_13 = arith.constant 0 : index
    %c0_14 = arith.constant 0 : index
    %19 = vector.load %arg6[%c0_12, %c0_13, %c0_14] : memref<1x16x16xf32, #tpu.memory_space<vmem>>, vector<1x16x16xf32>
    %20 = vector.shape_cast %19 : vector<1x16x16xf32> to vector<16x16xf32>
    %cst_15 = arith.constant dense<0.000000e+00> : vector<16x32xf32>
    %21 = tpu.matmul %20, %14, %cst_15 {dimension_numbers = #tpu.dot_dimension_numbers<[1], [0], [0], [1], [0, 0, 1, 1], [], []>} : vector<16x16xf32>, vector<16x32xf32>, vector<16x32xf32> -> vector<16x32xf32>
    %cst_16 = arith.constant dense<0.000000e+00> : vector<16x32xf32>
    %22 = tpu.matmul %20, %15, %cst_16 {dimension_numbers = #tpu.dot_dimension_numbers<[1], [0], [0], [1], [0, 0, 1, 1], [], []>} : vector<16x16xf32>, vector<16x32xf32>, vector<16x32xf32> -> vector<16x32xf32>
    %23 = arith.mulf %13, %21 : vector<16x32xf32>
    %cst_17 = arith.constant dense<0.000000e+00> : vector<16x32xf32>
    %24 = tpu.matmul %23, %16, %cst_17 {dimension_numbers = #tpu.dot_dimension_numbers<[1], [0], [0], [1], [0, 0, 1, 1], [], []>} : vector<16x32xf32>, vector<32x32xf32>, vector<16x32xf32> -> vector<16x32xf32>
    %25 = arith.maximumf %18, %24 : vector<16x32xf32>
    %26 = arith.subf %18, %25 : vector<16x32xf32>
    %27 = math.exp %26 : vector<16x32xf32>
    %28 = arith.subf %24, %25 : vector<16x32xf32>
    %29 = math.exp %28 : vector<16x32xf32>
    %30 = arith.addf %27, %29 : vector<16x32xf32>
    %cst_18 = arith.constant 1.000000e+00 : f32
    %31 = vector.broadcast %cst_18 : f32 to vector<16x32xf32>
    %32 = arith.divf %31, %30 : vector<16x32xf32>
    %33 = arith.mulf %27, %32 : vector<16x32xf32>
    %34 = arith.mulf %33, %15 : vector<16x32xf32>
    %35 = arith.mulf %29, %32 : vector<16x32xf32>
    %36 = arith.mulf %35, %22 : vector<16x32xf32>
    %37 = arith.addf %34, %36 : vector<16x32xf32>
    %c0_19 = arith.constant 0 : index
    %c0_20 = arith.constant 0 : index
    %c0_21 = arith.constant 0 : index
    %38 = vector.load %arg9[%c0_19, %c0_20, %c0_21] : memref<1x32x32xf32, #tpu.memory_space<vmem>>, vector<1x32x32xf32>
    %39 = vector.shape_cast %38 : vector<1x32x32xf32> to vector<32x32xf32>
    %cst_22 = arith.constant dense<0.000000e+00> : vector<16x32xf32>
    %40 = tpu.matmul %37, %39, %cst_22 {dimension_numbers = #tpu.dot_dimension_numbers<[1], [0], [0], [1], [0, 0, 1, 1], [], []>} : vector<16x32xf32>, vector<32x32xf32>, vector<16x32xf32> -> vector<16x32xf32>
    %c0_23 = arith.constant 0 : index
    %c0_24 = arith.constant 0 : index
    %c0_25 = arith.constant 0 : index
    %41 = vector.load %arg10[%c0_23, %c0_24, %c0_25] : memref<1x1x32xf32, #tpu.memory_space<vmem>>, vector<1x1x32xf32>
    %42 = vector.shape_cast %41 : vector<1x1x32xf32> to vector<1x32xf32>
    %43 = vector.broadcast %42 : vector<1x32xf32> to vector<16x32xf32>
    %44 = arith.addf %40, %43 : vector<16x32xf32>
    %45 = arith.addf %3, %44 : vector<16x32xf32>
    %c0_26 = arith.constant 0 : index
    %c0_27 = arith.constant 0 : index
    %c0_28 = arith.constant 0 : index
    %46 = vector.load %arg11[%c0_26, %c0_27, %c0_28] : memref<1x1x32xf32, #tpu.memory_space<vmem>>, vector<1x1x32xf32>
    %47 = vector.shape_cast %46 : vector<1x1x32xf32> to vector<1x32xf32>
    %c0_29 = arith.constant 0 : index
    %c0_30 = arith.constant 0 : index
    %c0_31 = arith.constant 0 : index
    %48 = vector.load %arg12[%c0_29, %c0_30, %c0_31] : memref<1x1x32xf32, #tpu.memory_space<vmem>>, vector<1x1x32xf32>
    %49 = vector.shape_cast %48 : vector<1x1x32xf32> to vector<1x32xf32>
    %cst_32 = arith.constant dense<0.000000e+00> : vector<16xf32>
    %50 = vector.multi_reduction <add>, %45, %cst_32 [1] : vector<16x32xf32> to vector<16xf32>
    %51 = vector.shape_cast %50 : vector<16xf32> to vector<16x1xf32>
    %cst_33 = arith.constant 3.200000e+01 : f32
    %52 = vector.broadcast %cst_33 : f32 to vector<16x1xf32>
    %53 = arith.divf %51, %52 : vector<16x1xf32>
    %54 = vector.broadcast %53 : vector<16x1xf32> to vector<16x32xf32>
    %55 = arith.subf %45, %54 : vector<16x32xf32>
    %56 = arith.mulf %55, %55 : vector<16x32xf32>
    %cst_34 = arith.constant dense<0.000000e+00> : vector<16xf32>
    %57 = vector.multi_reduction <add>, %56, %cst_34 [1] : vector<16x32xf32> to vector<16xf32>
    %58 = vector.shape_cast %57 : vector<16xf32> to vector<16x1xf32>
    %cst_35 = arith.constant 3.200000e+01 : f32
    %59 = vector.broadcast %cst_35 : f32 to vector<16x1xf32>
    %60 = arith.divf %58, %59 : vector<16x1xf32>
    %61 = vector.broadcast %53 : vector<16x1xf32> to vector<16x32xf32>
    %62 = arith.subf %45, %61 : vector<16x32xf32>
    %cst_36 = arith.constant 9.99999974E-6 : f32
    %63 = vector.broadcast %cst_36 : f32 to vector<16x1xf32>
    %64 = arith.addf %60, %63 : vector<16x1xf32>
    %65 = math.rsqrt %64 : vector<16x1xf32>
    %66 = vector.broadcast %65 : vector<16x1xf32> to vector<16x32xf32>
    %67 = arith.mulf %62, %66 : vector<16x32xf32>
    %68 = vector.broadcast %47 : vector<1x32xf32> to vector<16x32xf32>
    %69 = arith.mulf %67, %68 : vector<16x32xf32>
    %70 = vector.broadcast %49 : vector<1x32xf32> to vector<16x32xf32>
    %71 = arith.addf %69, %70 : vector<16x32xf32>
    %72 = arith.truncf %71 : vector<16x32xf32> to vector<16x32xbf16>
    %c0_37 = arith.constant 0 : index
    %c0_38 = arith.constant 0 : index
    %c0_39 = arith.constant 0 : index
    %73 = vector.load %arg13[%c0_37, %c0_38, %c0_39] : memref<1x32x2048xbf16, #tpu.memory_space<vmem>>, vector<1x32x2048xbf16>
    %74 = vector.shape_cast %73 : vector<1x32x2048xbf16> to vector<32x2048xbf16>
    %cst_40 = arith.constant dense<0.000000e+00> : vector<16x2048xf32>
    %75 = tpu.matmul %72, %74, %cst_40 {dimension_numbers = #tpu.dot_dimension_numbers<[1], [0], [0], [1], [0, 0, 1, 1], [], []>} : vector<16x32xbf16>, vector<32x2048xbf16>, vector<16x2048xf32> -> vector<16x2048xf32>
    %c0_41 = arith.constant 0 : index
    %c0_42 = arith.constant 0 : index
    %c0_43 = arith.constant 0 : index
    %76 = vector.load %arg14[%c0_41, %c0_42, %c0_43] : memref<1x1x2048xf32, #tpu.memory_space<vmem>>, vector<1x1x2048xf32>
    %77 = vector.shape_cast %76 : vector<1x1x2048xf32> to vector<1x2048xf32>
    %78 = vector.broadcast %77 : vector<1x2048xf32> to vector<16x2048xf32>
    %79 = arith.addf %75, %78 : vector<16x2048xf32>
    %cst_44 = arith.constant 0.000000e+00 : f32
    %80 = vector.broadcast %cst_44 : f32 to vector<16x2048xf32>
    %81 = arith.maximumf %79, %80 : vector<16x2048xf32>
    %82 = arith.truncf %81 : vector<16x2048xf32> to vector<16x2048xbf16>
    %c0_45 = arith.constant 0 : index
    %c0_46 = arith.constant 0 : index
    %c0_47 = arith.constant 0 : index
    %83 = vector.load %arg15[%c0_45, %c0_46, %c0_47] : memref<1x32x2048xbf16, #tpu.memory_space<vmem>>, vector<1x32x2048xbf16>
    %84 = vector.shape_cast %83 : vector<1x32x2048xbf16> to vector<32x2048xbf16>
    %cst_48 = arith.constant dense<0.000000e+00> : vector<16x32xf32>
    %85 = tpu.matmul %82, %84, %cst_48 {dimension_numbers = #tpu.dot_dimension_numbers<[1], [1], [0], [0], [0, 0, 1, 0], [], []>} : vector<16x2048xbf16>, vector<32x2048xbf16>, vector<16x32xf32> -> vector<16x32xf32>
    %c0_49 = arith.constant 0 : index
    %c0_50 = arith.constant 0 : index
    %c0_51 = arith.constant 0 : index
    %86 = vector.load %arg16[%c0_49, %c0_50, %c0_51] : memref<1x1x32xf32, #tpu.memory_space<vmem>>, vector<1x1x32xf32>
    %87 = vector.shape_cast %86 : vector<1x1x32xf32> to vector<1x32xf32>
    %88 = vector.broadcast %87 : vector<1x32xf32> to vector<16x32xf32>
    %89 = arith.addf %85, %88 : vector<16x32xf32>
    %90 = arith.addf %71, %89 : vector<16x32xf32>
    %c0_52 = arith.constant 0 : index
    %c0_53 = arith.constant 0 : index
    %c0_54 = arith.constant 0 : index
    %91 = vector.load %arg17[%c0_52, %c0_53, %c0_54] : memref<1x1x32xf32, #tpu.memory_space<vmem>>, vector<1x1x32xf32>
    %92 = vector.shape_cast %91 : vector<1x1x32xf32> to vector<1x32xf32>
    %c0_55 = arith.constant 0 : index
    %c0_56 = arith.constant 0 : index
    %c0_57 = arith.constant 0 : index
    %93 = vector.load %arg18[%c0_55, %c0_56, %c0_57] : memref<1x1x32xf32, #tpu.memory_space<vmem>>, vector<1x1x32xf32>
    %94 = vector.shape_cast %93 : vector<1x1x32xf32> to vector<1x32xf32>
    %cst_58 = arith.constant dense<0.000000e+00> : vector<16xf32>
    %95 = vector.multi_reduction <add>, %90, %cst_58 [1] : vector<16x32xf32> to vector<16xf32>
    %96 = vector.shape_cast %95 : vector<16xf32> to vector<16x1xf32>
    %cst_59 = arith.constant 3.200000e+01 : f32
    %97 = vector.broadcast %cst_59 : f32 to vector<16x1xf32>
    %98 = arith.divf %96, %97 : vector<16x1xf32>
    %99 = vector.broadcast %98 : vector<16x1xf32> to vector<16x32xf32>
    %100 = arith.subf %90, %99 : vector<16x32xf32>
    %101 = arith.mulf %100, %100 : vector<16x32xf32>
    %cst_60 = arith.constant dense<0.000000e+00> : vector<16xf32>
    %102 = vector.multi_reduction <add>, %101, %cst_60 [1] : vector<16x32xf32> to vector<16xf32>
    %103 = vector.shape_cast %102 : vector<16xf32> to vector<16x1xf32>
    %cst_61 = arith.constant 3.200000e+01 : f32
    %104 = vector.broadcast %cst_61 : f32 to vector<16x1xf32>
    %105 = arith.divf %103, %104 : vector<16x1xf32>
    %106 = vector.broadcast %98 : vector<16x1xf32> to vector<16x32xf32>
    %107 = arith.subf %90, %106 : vector<16x32xf32>
    %cst_62 = arith.constant 9.99999974E-6 : f32
    %108 = vector.broadcast %cst_62 : f32 to vector<16x1xf32>
    %109 = arith.addf %105, %108 : vector<16x1xf32>
    %110 = math.rsqrt %109 : vector<16x1xf32>
    %111 = vector.broadcast %110 : vector<16x1xf32> to vector<16x32xf32>
    %112 = arith.mulf %107, %111 : vector<16x32xf32>
    %113 = vector.broadcast %92 : vector<1x32xf32> to vector<16x32xf32>
    %114 = arith.mulf %112, %113 : vector<16x32xf32>
    %115 = vector.broadcast %94 : vector<1x32xf32> to vector<16x32xf32>
    %116 = arith.addf %114, %115 : vector<16x32xf32>
    %c0_63 = arith.constant 0 : index
    %c0_64 = arith.constant 0 : index
    %117 = vector.load %arg22[%c0_63, %c0_64] : memref<16x32xf32, #tpu.memory_space<vmem>>, vector<16x32xf32>
    tpu.vector_store %arg22[%c0_63, %c0_64], %116 {strides = array<i32>} : memref<16x32xf32, #tpu.memory_space<vmem>>, vector<16x32xf32>,
    %c1_i32 = arith.constant 1 : i32
    %118 = arith.cmpi eq, %arg0, %c1_i32 : i32
    %119 = arith.extui %118 : i1 to i32
    %c0_i32_65 = arith.constant 0 : i32
    %120 = arith.cmpi ne, %119, %c0_i32_65 : i32
    scf.if %120 {
      %c0_66 = arith.constant 0 : index
      %c0_67 = arith.constant 0 : index
      %121 = vector.load %arg19[%c0_66, %c0_67] : memref<32x128xf32, #tpu.memory_space<vmem>>, vector<32x128xf32>
      %cst_68 = arith.constant dense<0.000000e+00> : vector<16x128xf32>
      %122 = tpu.matmul %116, %121, %cst_68 {dimension_numbers = #tpu.dot_dimension_numbers<[1], [0], [0], [1], [0, 0, 1, 1], [], []>} : vector<16x32xf32>, vector<32x128xf32>, vector<16x128xf32> -> vector<16x128xf32>
      %c0_69 = arith.constant 0 : index
      %c0_70 = arith.constant 0 : index
      %123 = vector.load %arg20[%c0_69, %c0_70] : memref<1x128xf32, #tpu.memory_space<vmem>>, vector<1x128xf32>
      %124 = vector.broadcast %123 : vector<1x128xf32> to vector<16x128xf32>
      %125 = arith.addf %122, %124 : vector<16x128xf32>
      %c0_71 = arith.constant 0 : index
      %c0_72 = arith.constant 0 : index
      %126 = vector.load %arg21[%c0_71, %c0_72] : memref<16x128xf32, #tpu.memory_space<vmem>>, vector<16x128xf32>
      tpu.vector_store %arg21[%c0_71, %c0_72], %125 {strides = array<i32>} : memref<16x128xf32, #tpu.memory_space<vmem>>, vector<16x128xf32>,
    } else {
    }
    return
  }
  func.func @transform_0(%arg0: i32) -> (i32, i32) {
    %c0_i32 = arith.constant 0 : i32
    %c0_i32_0 = arith.constant 0 : i32
    %c0_i32_1 = arith.constant 0 : i32
    return %c0_i32, %c0_i32_0 : i32, i32
  }
  func.func @transform_1(%arg0: i32) -> (i32, i32) {
    %c0_i32 = arith.constant 0 : i32
    %c0_i32_0 = arith.constant 0 : i32
    %c0_i32_1 = arith.constant 0 : i32
    return %c0_i32, %c0_i32_0 : i32, i32
  }
  func.func @transform_2(%arg0: i32) -> (i32, i32) {
    %c0_i32 = arith.constant 0 : i32
    %c0_i32_0 = arith.constant 0 : i32
    %c0_i32_1 = arith.constant 0 : i32
    return %c0_i32, %c0_i32_0 : i32, i32
  }
  func.func @transform_3(%arg0: i32) -> (i32, i32) {
    %c0_i32 = arith.constant 0 : i32
    %c0_i32_0 = arith.constant 0 : i32
    %c0_i32_1 = arith.constant 0 : i32
    return %c0_i32, %c0_i32_0 : i32, i32
  }
  func.func @transform_4(%arg0: i32) -> (i32, i32) {
    %c0_i32 = arith.constant 0 : i32
    %c0_i32_0 = arith.constant 0 : i32
    %c0_i32_1 = arith.constant 0 : i32
    return %c0_i32, %c0_i32_0 : i32, i32
  }
  func.func @transform_5(%arg0: i32) -> (i32, i32, i32) {
    %c0_i32 = arith.constant 0 : i32
    %c0_i32_0 = arith.constant 0 : i32
    %c0_i32_1 = arith.constant 0 : i32
    %c0_i32_2 = arith.constant 0 : i32
    return %c0_i32, %c0_i32_0, %c0_i32_1 : i32, i32, i32
  }
  func.func @transform_6(%arg0: i32) -> (i32, i32, i32) {
    %c0_i32 = arith.constant 0 : i32
    %c0_i32_0 = arith.constant 0 : i32
    %c0_i32_1 = arith.constant 0 : i32
    return %arg0, %c0_i32, %c0_i32_0 : i32, i32, i32
  }
  func.func @transform_7(%arg0: i32) -> (i32, i32, i32) {
    %c0_i32 = arith.constant 0 : i32
    %c0_i32_0 = arith.constant 0 : i32
    %c0_i32_1 = arith.constant 0 : i32
    return %arg0, %c0_i32, %c0_i32_0 : i32, i32, i32
  }
  func.func @transform_8(%arg0: i32) -> (i32, i32, i32) {
    %c0_i32 = arith.constant 0 : i32
    %c0_i32_0 = arith.constant 0 : i32
    %c0_i32_1 = arith.constant 0 : i32
    return %arg0, %c0_i32, %c0_i32_0 : i32, i32, i32
  }
  func.func @transform_9(%arg0: i32) -> (i32, i32, i32) {
    %c0_i32 = arith.constant 0 : i32
    %c0_i32_0 = arith.constant 0 : i32
    %c0_i32_1 = arith.constant 0 : i32
    return %arg0, %c0_i32, %c0_i32_0 : i32, i32, i32
  }
  func.func @transform_10(%arg0: i32) -> (i32, i32, i32) {
    %c0_i32 = arith.constant 0 : i32
    %c0_i32_0 = arith.constant 0 : i32
    %c0_i32_1 = arith.constant 0 : i32
    return %arg0, %c0_i32, %c0_i32_0 : i32, i32, i32
  }
  func.func @transform_11(%arg0: i32) -> (i32, i32, i32) {
    %c0_i32 = arith.constant 0 : i32
    %c0_i32_0 = arith.constant 0 : i32
    %c0_i32_1 = arith.constant 0 : i32
    return %arg0, %c0_i32, %c0_i32_0 : i32, i32, i32
  }
  func.func @transform_12(%arg0: i32) -> (i32, i32, i32) {
    %c0_i32 = arith.constant 0 : i32
    %c0_i32_0 = arith.constant 0 : i32
    %c0_i32_1 = arith.constant 0 : i32
    return %arg0, %c0_i32, %c0_i32_0 : i32, i32, i32
  }
  func.func @transform_13(%arg0: i32) -> (i32, i32, i32) {
    %c0_i32 = arith.constant 0 : i32
    %c0_i32_0 = arith.constant 0 : i32
    %c0_i32_1 = arith.constant 0 : i32
    return %arg0, %c0_i32, %c0_i32_0 : i32, i32, i32
  }
  func.func @transform_14(%arg0: i32) -> (i32, i32, i32) {
    %c0_i32 = arith.constant 0 : i32
    %c0_i32_0 = arith.constant 0 : i32
    %c0_i32_1 = arith.constant 0 : i32
    return %arg0, %c0_i32, %c0_i32_0 : i32, i32, i32
  }
  func.func @transform_15(%arg0: i32) -> (i32, i32, i32) {
    %c0_i32 = arith.constant 0 : i32
    %c0_i32_0 = arith.constant 0 : i32
    %c0_i32_1 = arith.constant 0 : i32
    return %arg0, %c0_i32, %c0_i32_0 : i32, i32, i32
  }
  func.func @transform_16(%arg0: i32) -> (i32, i32, i32) {
    %c0_i32 = arith.constant 0 : i32
    %c0_i32_0 = arith.constant 0 : i32
    %c0_i32_1 = arith.constant 0 : i32
    return %arg0, %c0_i32, %c0_i32_0 : i32, i32, i32
  }
  func.func @transform_17(%arg0: i32) -> (i32, i32, i32) {
    %c0_i32 = arith.constant 0 : i32
    %c0_i32_0 = arith.constant 0 : i32
    %c0_i32_1 = arith.constant 0 : i32
    return %arg0, %c0_i32, %c0_i32_0 : i32, i32, i32
  }
  func.func @transform_18(%arg0: i32) -> (i32, i32) {
    %c0_i32 = arith.constant 0 : i32
    %c0_i32_0 = arith.constant 0 : i32
    %c0_i32_1 = arith.constant 0 : i32
    return %c0_i32, %c0_i32_0 : i32, i32
  }
  func.func @transform_19(%arg0: i32) -> (i32, i32) {
    %c0_i32 = arith.constant 0 : i32
    %c0_i32_0 = arith.constant 0 : i32
    %c0_i32_1 = arith.constant 0 : i32
    return %c0_i32, %c0_i32_0 : i32, i32
  }
  func.func @transform_20(%arg0: i32) -> (i32, i32) {
    %c0_i32 = arith.constant 0 : i32
    %c0_i32_0 = arith.constant 0 : i32
    %c0_i32_1 = arith.constant 0 : i32
    return %c0_i32, %c0_i32_0 : i32, i32
  }
}

</mosaic_0001>

<llo_original>
// kernel: tpu_custom_call.1
$region0: #{tpu_custom_call.1}
  #allocation0 [shape = 'u32[]', space=smem, size = 0x4, offset = 0x4, fixed_abs, tag = 'smem constant byte address 0x4 - core index']
  #allocation1 [shape = 'u32[144,128]{1,0:T(1,128)}', space=vmem, size = 0x12000, scoped, tag = 'internal scratch']
  #allocation2 [shape = 'f32[16,32]{1,0:T(8,128)}', space=vmem, size = 0x2000, scoped, tag = 'scratch operand']
  %s0 = inlined_call_operand.vmem [shape: f32[16,8], index: 0, kind: input, shape index: {}]
  %s1 = inlined_call_operand.hbm [shape: f32[16,32], index: 1, kind: input, shape index: {}]
  %s2 = inlined_call_operand.hbm [shape: f32[8,32], index: 2, kind: input, shape index: {}]
  %s3 = inlined_call_operand.vmem [shape: f32[1,32], index: 3, kind: input, shape index: {}]
  %s4 = inlined_call_operand.vmem [shape: f32[32,32], index: 4, kind: input, shape index: {}]
  %s5 = inlined_call_operand.hbm [shape: f32[1,16,16], index: 5, kind: input, shape index: {}]
  %s6 = inlined_call_operand.hbm [shape: f32[2,32,96], index: 6, kind: input, shape index: {}]
  %s7 = inlined_call_operand.hbm [shape: f32[2,1,96], index: 7, kind: input, shape index: {}]
  %s8 = inlined_call_operand.hbm [shape: f32[2,32,32], index: 8, kind: input, shape index: {}]
  %s9 = inlined_call_operand.hbm [shape: f32[2,1,32], index: 9, kind: input, shape index: {}]
  %s10 = inlined_call_operand.hbm [shape: f32[2,1,32], index: 10, kind: input, shape index: {}]
  %s11 = inlined_call_operand.hbm [shape: f32[2,1,32], index: 11, kind: input, shape index: {}]
  %s12 = inlined_call_operand.hbm [shape: bf16[2,32,2048], index: 12, kind: input, shape index: {}]
  %s13 = inlined_call_operand.vmem [shape: f32[2,1,2048], index: 13, kind: input, shape index: {}]
  %s14 = inlined_call_operand.hbm [shape: bf16[2,32,2048], index: 14, kind: input, shape index: {}]
  %s15 = inlined_call_operand.vmem [shape: f32[2,1,32], index: 15, kind: input, shape index: {}]
  %s16 = inlined_call_operand.vmem [shape: f32[2,1,32], index: 16, kind: input, shape index: {}]
  %s17 = inlined_call_operand.vmem [shape: f32[2,1,32], index: 17, kind: input, shape index: {}]
  %s18 = inlined_call_operand.hbm [shape: f32[32,128], index: 18, kind: input, shape index: {}]
  %s19 = inlined_call_operand.vmem [shape: f32[1,128], index: 19, kind: input, shape index: {}]
  %s20 = inlined_call_operand.hbm [shape: f32[16,128], index: 20, kind: output, shape index: {}]
  %s21 = sld [smem:[#allocation0]]
  $region169: #{tpu_custom_call.1} parent=0
    _
  %s23 = ssub.s32 1, %s21
  %s24 = scalar_select 0, %s23, %s21
  $region1: #{tpu_custom_call.1} parent=0
    #allocation3 [shape = 'u8[8192]{0}', space=vmem, size = 0x2000, scoped, tag = 'input window, operand 1, single buffered']
    #allocation4 [shape = 's32[2]{0}', space=sflag, size = 0x8, scoped, tag = 'scoped memory for tpu_custom_call.1']
    #allocation5 [shape = 's32[2]{0}', space=sflag, size = 0x8, scoped, tag = 'scoped memory for tpu_custom_call.1']
    #allocation6 [shape = 'u8[4096]{0}', space=vmem, size = 0x1000, scoped, tag = 'input window, operand 2, single buffered']
    #allocation7 [shape = 's32[1]{0}', space=sflag, size = 0x4, scoped, tag = 'scoped memory for tpu_custom_call.1']
    #allocation8 [shape = 'u8[8192]{0}', space=vmem, size = 0x2000, scoped, tag = 'input window, operand 5, single buffered']
    #allocation9 [shape = 'u8[32768]{0}', space=vmem, size = 0x8000, scoped, tag = 'input window, operand 6']
    #allocation10 [shape = 's32[2]{0}', space=sflag, size = 0x8, scoped, tag = 'scoped memory for tpu_custom_call.1']
    #allocation11 [shape = 'u8[1024]{0}', space=vmem, size = 0x400, scoped, tag = 'input window, operand 7']
    #allocation12 [shape = 'u8[32768]{0}', space=vmem, size = 0x8000, scoped, tag = 'input window, operand 8']
    #allocation13 [shape = 's32[2]{0}', space=sflag, size = 0x8, scoped, tag = 'scoped memory for tpu_custom_call.1']
    #allocation14 [shape = 'u8[1024]{0}', space=vmem, size = 0x400, scoped, tag = 'input window, operand 9']
    #allocation15 [shape = 'u8[1024]{0}', space=vmem, size = 0x400, scoped, tag = 'input window, operand 10']
    #allocation16 [shape = 's32[2]{0}', space=sflag, size = 0x8, scoped, tag = 'scoped memory for tpu_custom_call.1']
    #allocation17 [shape = 'u8[1024]{0}', space=vmem, size = 0x400, scoped, tag = 'input window, operand 11']
    #allocation18 [shape = 'u8[262144]{0}', space=vmem, size = 0x40000, scoped, tag = 'input window, operand 12']
    #allocation19 [shape = 's32[2]{0}', space=sflag, size = 0x8, scoped, tag = 'scoped memory for tpu_custom_call.1']
    #allocation20 [shape = 'u8[262144]{0}', space=vmem, size = 0x40000, scoped, tag = 'input window, operand 14']
    #allocation21 [shape = 'u8[16384]{0}', space=vmem, size = 0x4000, scoped, tag = 'input window, operand 18, single buffered']
    #allocation22 [shape = 's32[1]{0}', space=sflag, size = 0x4, scoped, tag = 'scoped memory for tpu_custom_call.1']
    #allocation23 [shape = 'u8[8192]{0}', space=vmem, size = 0x2000, scoped, tag = 'output window, operand 0, single buffered']
    %25 = vsyncpa [#allocation4], 0
    %26 = vsyncpa [#allocation7], 0
    %27 = vsyncpa [#allocation10], 0
    %s28 = scalar_lea.sflag [#allocation10], 1
    %29 = vsyncpa %s28, 0
    %30 = vsyncpa [#allocation13], 0
    %s31 = scalar_lea.sflag [#allocation13], 1
    %32 = vsyncpa %s31, 0
    %33 = vsyncpa [#allocation16], 0
    %s34 = scalar_lea.sflag [#allocation16], 1
    %35 = vsyncpa %s34, 0
    %36 = vsyncpa [#allocation19], 0
    %s37 = scalar_lea.sflag [#allocation19], 1
    %38 = vsyncpa %s37, 0
    %39 = vsyncpa [#allocation22], 0
    %40 = vsyncpa [#allocation5], 0
    loop: start=0, step=1, limit=4
    $region2: #{tpu_custom_call.1} parent=1 // loop_pre_header
      _
    $region3: #{tpu_custom_call.1} parent=1 // loop_header
      %s42 = sphi 0, %s46
      %p43 = scmp.ge.s32.totalorder %s42, 4
      %s50 = sphi 0, %s50
      %s52 = sphi 0, %s50
      %s53 = sphi 0, %s52
      %s67 = sphi 0, %s53
      %s71 = sphi 0, %s71
      %s73 = sphi 0, %s71
      %s74 = sphi 0, %s73
      %s88 = sphi 0, %s74
      %s92 = sphi 0, %s92
      %s94 = sphi 0, %s92
      %s95 = sphi 0, %s94
      %s109 = sphi 0, %s95
      %s113 = sphi 0, %s113
      %s115 = sphi 0, %s113
      %s116 = sphi 0, %s115
      %s130 = sphi 0, %s116
      %s134 = sphi 0, %s134
      %s136 = sphi 0, %s134
      %s137 = sphi 0, %s136
      %s151 = sphi 0, %s137
      %s155 = sphi 0, %s155
      %s157 = sphi 0, %s155
      %s158 = sphi 0, %s157
      %s172 = sphi 0, %s158
      %s178 = sphi 0, %s180
      %s181 = sphi 0, %s178
      %s182 = sphi 0, %s181
      %s198 = sphi 0, %s182
      %s204 = sphi 0, %s206
      %s207 = sphi 0, %s204
      %s208 = sphi 0, %s207
      %s224 = sphi 0, %s208
      %s230 = sphi 0, %s232
      %s233 = sphi 0, %s230
      %s234 = sphi 0, %s233
      %s250 = sphi 0, %s234
      %s256 = sphi 0, %s258
      %s259 = sphi 0, %s256
      %s260 = sphi 0, %s259
      %s276 = sphi 0, %s260
      %s282 = sphi 0, %s284
      %s285 = sphi 0, %s282
      %s286 = sphi 0, %s285
      %s302 = sphi 0, %s286
      %s308 = sphi 0, %s310
      %s311 = sphi 0, %s308
      %s312 = sphi 0, %s311
      %s328 = sphi 0, %s312
      %s334 = sphi 0, %s336
      %s337 = sphi 0, %s334
      %s338 = sphi 0, %s337
      %s354 = sphi 0, %s338
      %s360 = sphi 0, %s362
      %s363 = sphi 0, %s360
      %s364 = sphi 0, %s363
      %s380 = sphi 0, %s364
      %s386 = sphi 0, %s388
      %s389 = sphi 0, %s386
      %s390 = sphi 0, %s389
      %s406 = sphi 0, %s390
      %s412 = sphi 0, %s414
      %s415 = sphi 0, %s412
      %s416 = sphi 0, %s415
      %s432 = sphi 0, %s416
      %s438 = sphi 0, %s440
      %s441 = sphi 0, %s438
      %s442 = sphi 0, %s441
      %s458 = sphi 0, %s442
      %s464 = sphi 0, %s466
      %s467 = sphi 0, %s464
      %s468 = sphi 0, %s467
      %s484 = sphi 0, %s468
      %s488 = sphi 0, %s488
      %s490 = sphi 0, %s488
      %s491 = sphi 0, %s490
      %s505 = sphi 0, %s491
      %s509 = sphi 0, %s509
      %s511 = sphi 0, %s509
      %s512 = sphi 0, %s511
      %s526 = sphi 0, %s512
      %s530 = sphi 0, %s530
      %s532 = sphi 0, %s530
      %s533 = sphi 0, %s532
      %s547 = sphi 0, %s533
    $region4: #{tpu_custom_call.1} parent=1 // loop_header_branch
      %45 = sbr.rel (%p43) target = $region8
    $region5: #{tpu_custom_call.1} parent=1 // loop_body
      %s47 = ssub.s32 %s42, 1
      %s48 = ssub.s32 %s42, 2
      %s49 = sadd.s32 %s42, 1
      %s51 = sadd.s32 %s50, 1
      %p54 = scmp.eq.s32.totalorder %s42, 1
      %p55 = scmp.ne.s32.totalorder %s50, %s52
      %p56 = scmp.eq.s32.totalorder %s42, 0
      %p57 = por %p55, %p56
      %p58 = scmp.ne.s32.totalorder %s50, %s52
      %p59 = scmp.eq.s32.totalorder %s47, 1
      %p60 = por %p58, %p59
      %p61 = scmp.ne.s32.totalorder %s52, %s53
      %p62 = scmp.eq.s32.totalorder %s47, 0
      %p63 = por %p61, %p62
      %p64 = scmp.ne.s32.totalorder %s52, %s53
      %p65 = scmp.eq.s32.totalorder %s48, 1
      %p66 = por %p64, %p65
      %p68 = scmp.ne.s32.totalorder %s53, %s67
      %p69 = scmp.eq.s32.totalorder %s48, 0
      %p70 = por %p68, %p69
      %s72 = sadd.s32 %s71, 1
      %p75 = scmp.eq.s32.totalorder %s42, 1
      %p76 = scmp.ne.s32.totalorder %s71, %s73
      %p77 = scmp.eq.s32.totalorder %s42, 0
      %p78 = por %p76, %p77
      %p79 = scmp.ne.s32.totalorder %s71, %s73
      %p80 = scmp.eq.s32.totalorder %s47, 1
      %p81 = por %p79, %p80
      %p82 = scmp.ne.s32.totalorder %s73, %s74
      %p83 = scmp.eq.s32.totalorder %s47, 0
      %p84 = por %p82, %p83
      %p85 = scmp.ne.s32.totalorder %s73, %s74
      %p86 = scmp.eq.s32.totalorder %s48, 1
      %p87 = por %p85, %p86
      %p89 = scmp.ne.s32.totalorder %s74, %s88
      %p90 = scmp.eq.s32.totalorder %s48, 0
      %p91 = por %p89, %p90
      %s93 = sadd.s32 %s92, 1
      %p96 = scmp.eq.s32.totalorder %s42, 1
      %p97 = scmp.ne.s32.totalorder %s92, %s94
      %p98 = scmp.eq.s32.totalorder %s42, 0
      %p99 = por %p97, %p98
      %p100 = scmp.ne.s32.totalorder %s92, %s94
      %p101 = scmp.eq.s32.totalorder %s47, 1
      %p102 = por %p100, %p101
      %p103 = scmp.ne.s32.totalorder %s94, %s95
      %p104 = scmp.eq.s32.totalorder %s47, 0
      %p105 = por %p103, %p104
      %p106 = scmp.ne.s32.totalorder %s94, %s95
      %p107 = scmp.eq.s32.totalorder %s48, 1
      %p108 = por %p106, %p107
      %p110 = scmp.ne.s32.totalorder %s95, %s109
      %p111 = scmp.eq.s32.totalorder %s48, 0
      %p112 = por %p110, %p111
      %s114 = sadd.s32 %s113, 1
      %p117 = scmp.eq.s32.totalorder %s42, 1
      %p118 = scmp.ne.s32.totalorder %s113, %s115
      %p119 = scmp.eq.s32.totalorder %s42, 0
      %p120 = por %p118, %p119
      %p121 = scmp.ne.s32.totalorder %s113, %s115
      %p122 = scmp.eq.s32.totalorder %s47, 1
      %p123 = por %p121, %p122
      %p124 = scmp.ne.s32.totalorder %s115, %s116
      %p125 = scmp.eq.s32.totalorder %s47, 0
      %p126 = por %p124, %p125
      %p127 = scmp.ne.s32.totalorder %s115, %s116
      %p128 = scmp.eq.s32.totalorder %s48, 1
      %p129 = por %p127, %p128
      %p131 = scmp.ne.s32.totalorder %s116, %s130
      %p132 = scmp.eq.s32.totalorder %s48, 0
      %p133 = por %p131, %p132
      %s135 = sadd.s32 %s134, 1
      %p138 = scmp.eq.s32.totalorder %s42, 1
      %p139 = scmp.ne.s32.totalorder %s134, %s136
      %p140 = scmp.eq.s32.totalorder %s42, 0
      %p141 = por %p139, %p140
      %p142 = scmp.ne.s32.totalorder %s134, %s136
      %p143 = scmp.eq.s32.totalorder %s47, 1
      %p144 = por %p142, %p143
      %p145 = scmp.ne.s32.totalorder %s136, %s137
      %p146 = scmp.eq.s32.totalorder %s47, 0
      %p147 = por %p145, %p146
      %p148 = scmp.ne.s32.totalorder %s136, %s137
      %p149 = scmp.eq.s32.totalorder %s48, 1
      %p150 = por %p148, %p149
      %p152 = scmp.ne.s32.totalorder %s137, %s151
      %p153 = scmp.eq.s32.totalorder %s48, 0
      %p154 = por %p152, %p153
      %s156 = sadd.s32 %s155, 1
      %p159 = scmp.eq.s32.totalorder %s42, 1
      %p160 = scmp.ne.s32.totalorder %s155, %s157
      %p161 = scmp.eq.s32.totalorder %s42, 0
      %p162 = por %p160, %p161
      %p163 = scmp.ne.s32.totalorder %s155, %s157
      %p164 = scmp.eq.s32.totalorder %s47, 1
      %p165 = por %p163, %p164
      %p166 = scmp.ne.s32.totalorder %s157, %s158
      %p167 = scmp.eq.s32.totalorder %s47, 0
      %p168 = por %p166, %p167
      %p169 = scmp.ne.s32.totalorder %s157, %s158
      %p170 = scmp.eq.s32.totalorder %s48, 1
      %p171 = por %p169, %p170
      %p173 = scmp.ne.s32.totalorder %s158, %s172
      %p174 = scmp.eq.s32.totalorder %s48, 0
      %p175 = por %p173, %p174
      %s176 = ssub.s32 %s42, %s49
      %p177 = scmp.eq.s32.totalorder %s176, 0
      %s179 = sadd.s32 %s178, 1
      %s180 = scalar_select %p177, %s178, %s179
      %p183 = pneg %p177
      %p184 = scmp.eq.s32.totalorder %s42, 1
      %p185 = por %p183, %p184
      %p186 = scmp.ne.s32.totalorder %s178, %s181
      %p187 = scmp.eq.s32.totalorder %s42, 0
      %p188 = por %p186, %p187
      %p189 = scmp.ne.s32.totalorder %s178, %s181
      %p190 = scmp.eq.s32.totalorder %s47, 1
      %p191 = por %p189, %p190
      %p192 = scmp.ne.s32.totalorder %s181, %s182
      %p193 = scmp.eq.s32.totalorder %s47, 0
      %p194 = por %p192, %p193
      %p195 = scmp.ne.s32.totalorder %s181, %s182
      %p196 = scmp.eq.s32.totalorder %s48, 1
      %p197 = por %p195, %p196
      %p199 = scmp.ne.s32.totalorder %s182, %s198
      %p200 = scmp.eq.s32.totalorder %s48, 0
      %p201 = por %p199, %p200
      %s202 = ssub.s32 %s42, %s49
      %p203 = scmp.eq.s32.totalorder %s202, 0
      %s205 = sadd.s32 %s204, 1
      %s206 = scalar_select %p203, %s204, %s205
      %p209 = pneg %p203
      %p210 = scmp.eq.s32.totalorder %s42, 1
      %p211 = por %p209, %p210
      %p212 = scmp.ne.s32.totalorder %s204, %s207
      %p213 = scmp.eq.s32.totalorder %s42, 0
      %p214 = por %p212, %p213
      %p215 = scmp.ne.s32.totalorder %s204, %s207
      %p216 = scmp.eq.s32.totalorder %s47, 1
      %p217 = por %p215, %p216
      %p218 = scmp.ne.s32.totalorder %s207, %s208
      %p219 = scmp.eq.s32.totalorder %s47, 0
      %p220 = por %p218, %p219
      %p221 = scmp.ne.s32.totalorder %s207, %s208
      %p222 = scmp.eq.s32.totalorder %s48, 1
      %p223 = por %p221, %p222
      %p225 = scmp.ne.s32.totalorder %s208, %s224
      %p226 = scmp.eq.s32.totalorder %s48, 0
      %p227 = por %p225, %p226
      %s228 = ssub.s32 %s42, %s49
      %p229 = scmp.eq.s32.totalorder %s228, 0
      %s231 = sadd.s32 %s230, 1
      %s232 = scalar_select %p229, %s230, %s231
      %p235 = pneg %p229
      %p236 = scmp.eq.s32.totalorder %s42, 1
      %p237 = por %p235, %p236
      %p238 = scmp.ne.s32.totalorder %s230, %s233
      %p239 = scmp.eq.s32.totalorder %s42, 0
      %p240 = por %p238, %p239
      %p241 = scmp.ne.s32.totalorder %s230, %s233
      %p242 = scmp.eq.s32.totalorder %s47, 1
      %p243 = por %p241, %p242
      %p244 = scmp.ne.s32.totalorder %s233, %s234
      %p245 = scmp.eq.s32.totalorder %s47, 0
      %p246 = por %p244, %p245
      %p247 = scmp.ne.s32.totalorder %s233, %s234
      %p248 = scmp.eq.s32.totalorder %s48, 1
      %p249 = por %p247, %p248
      %p251 = scmp.ne.s32.totalorder %s234, %s250
      %p252 = scmp.eq.s32.totalorder %s48, 0
      %p253 = por %p251, %p252
      %s254 = ssub.s32 %s42, %s49
      %p255 = scmp.eq.s32.totalorder %s254, 0
      %s257 = sadd.s32 %s256, 1
      %s258 = scalar_select %p255, %s256, %s257
      %p261 = pneg %p255
      %p262 = scmp.eq.s32.totalorder %s42, 1
      %p263 = por %p261, %p262
      %p264 = scmp.ne.s32.totalorder %s256, %s259
      %p265 = scmp.eq.s32.totalorder %s42, 0
      %p266 = por %p264, %p265
      %p267 = scmp.ne.s32.totalorder %s256, %s259
      %p268 = scmp.eq.s32.totalorder %s47, 1
      %p269 = por %p267, %p268
      %p270 = scmp.ne.s32.totalorder %s259, %s260
      %p271 = scmp.eq.s32.totalorder %s47, 0
      %p272 = por %p270, %p271
      %p273 = scmp.ne.s32.totalorder %s259, %s260
      %p274 = scmp.eq.s32.totalorder %s48, 1
      %p275 = por %p273, %p274
      %p277 = scmp.ne.s32.totalorder %s260, %s276
      %p278 = scmp.eq.s32.totalorder %s48, 0
      %p279 = por %p277, %p278
      %s280 = ssub.s32 %s42, %s49
      %p281 = scmp.eq.s32.totalorder %s280, 0
      %s283 = sadd.s32 %s282, 1
      %s284 = scalar_select %p281, %s282, %s283
      %p287 = pneg %p281
      %p288 = scmp.eq.s32.totalorder %s42, 1
      %p289 = por %p287, %p288
      %p290 = scmp.ne.s32.totalorder %s282, %s285
      %p291 = scmp.eq.s32.totalorder %s42, 0
      %p292 = por %p290, %p291
      %p293 = scmp.ne.s32.totalorder %s282, %s285
      %p294 = scmp.eq.s32.totalorder %s47, 1
      %p295 = por %p293, %p294
      %p296 = scmp.ne.s32.totalorder %s285, %s286
      %p297 = scmp.eq.s32.totalorder %s47, 0
      %p298 = por %p296, %p297
      %p299 = scmp.ne.s32.totalorder %s285, %s286
      %p300 = scmp.eq.s32.totalorder %s48, 1
      %p301 = por %p299, %p300
      %p303 = scmp.ne.s32.totalorder %s286, %s302
      %p304 = scmp.eq.s32.totalorder %s48, 0
      %p305 = por %p303, %p304
      %s306 = ssub.s32 %s42, %s49
      %p307 = scmp.eq.s32.totalorder %s306, 0
      %s309 = sadd.s32 %s308, 1
      %s310 = scalar_select %p307, %s308, %s309
      %p313 = pneg %p307
      %p314 = scmp.eq.s32.totalorder %s42, 1
      %p315 = por %p313, %p314
      %p316 = scmp.ne.s32.totalorder %s308, %s311
      %p317 = scmp.eq.s32.totalorder %s42, 0
      %p318 = por %p316, %p317
      %p319 = scmp.ne.s32.totalorder %s308, %s311
      %p320 = scmp.eq.s32.totalorder %s47, 1
      %p321 = por %p319, %p320
      %p322 = scmp.ne.s32.totalorder %s311, %s312
      %p323 = scmp.eq.s32.totalorder %s47, 0
      %p324 = por %p322, %p323
      %p325 = scmp.ne.s32.totalorder %s311, %s312
      %p326 = scmp.eq.s32.totalorder %s48, 1
      %p327 = por %p325, %p326
      %p329 = scmp.ne.s32.totalorder %s312, %s328
      %p330 = scmp.eq.s32.totalorder %s48, 0
      %p331 = por %p329, %p330
      %s332 = ssub.s32 %s42, %s49
      %p333 = scmp.eq.s32.totalorder %s332, 0
      %s335 = sadd.s32 %s334, 1
      %s336 = scalar_select %p333, %s334, %s335
      %p339 = pneg %p333
      %p340 = scmp.eq.s32.totalorder %s42, 1
      %p341 = por %p339, %p340
      %p342 = scmp.ne.s32.totalorder %s334, %s337
      %p343 = scmp.eq.s32.totalorder %s42, 0
      %p344 = por %p342, %p343
      %p345 = scmp.ne.s32.totalorder %s334, %s337
      %p346 = scmp.eq.s32.totalorder %s47, 1
      %p347 = por %p345, %p346
      %p348 = scmp.ne.s32.totalorder %s337, %s338
      %p349 = scmp.eq.s32.totalorder %s47, 0
      %p350 = por %p348, %p349
      %p351 = scmp.ne.s32.totalorder %s337, %s338
      %p352 = scmp.eq.s32.totalorder %s48, 1
      %p353 = por %p351, %p352
      %p355 = scmp.ne.s32.totalorder %s338, %s354
      %p356 = scmp.eq.s32.totalorder %s48, 0
      %p357 = por %p355, %p356
      %s358 = ssub.s32 %s42, %s49
      %p359 = scmp.eq.s32.totalorder %s358, 0
      %s361 = sadd.s32 %s360, 1
      %s362 = scalar_select %p359, %s360, %s361
      %p365 = pneg %p359
      %p366 = scmp.eq.s32.totalorder %s42, 1
      %p367 = por %p365, %p366
      %p368 = scmp.ne.s32.totalorder %s360, %s363
      %p369 = scmp.eq.s32.totalorder %s42, 0
      %p370 = por %p368, %p369
      %p371 = scmp.ne.s32.totalorder %s360, %s363
      %p372 = scmp.eq.s32.totalorder %s47, 1
      %p373 = por %p371, %p372
      %p374 = scmp.ne.s32.totalorder %s363, %s364
      %p375 = scmp.eq.s32.totalorder %s47, 0
      %p376 = por %p374, %p375
      %p377 = scmp.ne.s32.totalorder %s363, %s364
      %p378 = scmp.eq.s32.totalorder %s48, 1
      %p379 = por %p377, %p378
      %p381 = scmp.ne.s32.totalorder %s364, %s380
      %p382 = scmp.eq.s32.totalorder %s48, 0
      %p383 = por %p381, %p382
      %s384 = ssub.s32 %s42, %s49
      %p385 = scmp.eq.s32.totalorder %s384, 0
      %s387 = sadd.s32 %s386, 1
      %s388 = scalar_select %p385, %s386, %s387
      %p391 = pneg %p385
      %p392 = scmp.eq.s32.totalorder %s42, 1
      %p393 = por %p391, %p392
      %p394 = scmp.ne.s32.totalorder %s386, %s389
      %p395 = scmp.eq.s32.totalorder %s42, 0
      %p396 = por %p394, %p395
      %p397 = scmp.ne.s32.totalorder %s386, %s389
      %p398 = scmp.eq.s32.totalorder %s47, 1
      %p399 = por %p397, %p398
      %p400 = scmp.ne.s32.totalorder %s389, %s390
      %p401 = scmp.eq.s32.totalorder %s47, 0
      %p402 = por %p400, %p401
      %p403 = scmp.ne.s32.totalorder %s389, %s390
      %p404 = scmp.eq.s32.totalorder %s48, 1
      %p405 = por %p403, %p404
      %p407 = scmp.ne.s32.totalorder %s390, %s406
      %p408 = scmp.eq.s32.totalorder %s48, 0
      %p409 = por %p407, %p408
      %s410 = ssub.s32 %s42, %s49
      %p411 = scmp.eq.s32.totalorder %s410, 0
      %s413 = sadd.s32 %s412, 1
      %s414 = scalar_select %p411, %s412, %s413
      %p417 = pneg %p411
      %p418 = scmp.eq.s32.totalorder %s42, 1
      %p419 = por %p417, %p418
      %p420 = scmp.ne.s32.totalorder %s412, %s415
      %p421 = scmp.eq.s32.totalorder %s42, 0
      %p422 = por %p420, %p421
      %p423 = scmp.ne.s32.totalorder %s412, %s415
      %p424 = scmp.eq.s32.totalorder %s47, 1
      %p425 = por %p423, %p424
      %p426 = scmp.ne.s32.totalorder %s415, %s416
      %p427 = scmp.eq.s32.totalorder %s47, 0
      %p428 = por %p426, %p427
      %p429 = scmp.ne.s32.totalorder %s415, %s416
      %p430 = scmp.eq.s32.totalorder %s48, 1
      %p431 = por %p429, %p430
      %p433 = scmp.ne.s32.totalorder %s416, %s432
      %p434 = scmp.eq.s32.totalorder %s48, 0
      %p435 = por %p433, %p434
      %s436 = ssub.s32 %s42, %s49
      %p437 = scmp.eq.s32.totalorder %s436, 0
      %s439 = sadd.s32 %s438, 1
      %s440 = scalar_select %p437, %s438, %s439
      %p443 = pneg %p437
      %p444 = scmp.eq.s32.totalorder %s42, 1
      %p445 = por %p443, %p444
      %p446 = scmp.ne.s32.totalorder %s438, %s441
      %p447 = scmp.eq.s32.totalorder %s42, 0
      %p448 = por %p446, %p447
      %p449 = scmp.ne.s32.totalorder %s438, %s441
      %p450 = scmp.eq.s32.totalorder %s47, 1
      %p451 = por %p449, %p450
      %p452 = scmp.ne.s32.totalorder %s441, %s442
      %p453 = scmp.eq.s32.totalorder %s47, 0
      %p454 = por %p452, %p453
      %p455 = scmp.ne.s32.totalorder %s441, %s442
      %p456 = scmp.eq.s32.totalorder %s48, 1
      %p457 = por %p455, %p456
      %p459 = scmp.ne.s32.totalorder %s442, %s458
      %p460 = scmp.eq.s32.totalorder %s48, 0
      %p461 = por %p459, %p460
      %s462 = ssub.s32 %s42, %s49
      %p463 = scmp.eq.s32.totalorder %s462, 0
      %s465 = sadd.s32 %s464, 1
      %s466 = scalar_select %p463, %s464, %s465
      %p469 = pneg %p463
      %p470 = scmp.eq.s32.totalorder %s42, 1
      %p471 = por %p469, %p470
      %p472 = scmp.ne.s32.totalorder %s464, %s467
      %p473 = scmp.eq.s32.totalorder %s42, 0
      %p474 = por %p472, %p473
      %p475 = scmp.ne.s32.totalorder %s464, %s467
      %p476 = scmp.eq.s32.totalorder %s47, 1
      %p477 = por %p475, %p476
      %p478 = scmp.ne.s32.totalorder %s467, %s468
      %p479 = scmp.eq.s32.totalorder %s47, 0
      %p480 = por %p478, %p479
      %p481 = scmp.ne.s32.totalorder %s467, %s468
      %p482 = scmp.eq.s32.totalorder %s48, 1
      %p483 = por %p481, %p482
      %p485 = scmp.ne.s32.totalorder %s468, %s484
      %p486 = scmp.eq.s32.totalorder %s48, 0
      %p487 = por %p485, %p486
      %s489 = sadd.s32 %s488, 1
      %p492 = scmp.eq.s32.totalorder %s42, 1
      %p493 = scmp.ne.s32.totalorder %s488, %s490
      %p494 = scmp.eq.s32.totalorder %s42, 0
      %p495 = por %p493, %p494
      %p496 = scmp.ne.s32.totalorder %s488, %s490
      %p497 = scmp.eq.s32.totalorder %s47, 1
      %p498 = por %p496, %p497
      %p499 = scmp.ne.s32.totalorder %s490, %s491
      %p500 = scmp.eq.s32.totalorder %s47, 0
      %p501 = por %p499, %p500
      %p502 = scmp.ne.s32.totalorder %s490, %s491
      %p503 = scmp.eq.s32.totalorder %s48, 1
      %p504 = por %p502, %p503
      %p506 = scmp.ne.s32.totalorder %s491, %s505
      %p507 = scmp.eq.s32.totalorder %s48, 0
      %p508 = por %p506, %p507
      %s510 = sadd.s32 %s509, 1
      %p513 = scmp.eq.s32.totalorder %s42, 1
      %p514 = scmp.ne.s32.totalorder %s509, %s511
      %p515 = scmp.eq.s32.totalorder %s42, 0
      %p516 = por %p514, %p515
      %p517 = scmp.ne.s32.totalorder %s509, %s511
      %p518 = scmp.eq.s32.totalorder %s47, 1
      %p519 = por %p517, %p518
      %p520 = scmp.ne.s32.totalorder %s511, %s512
      %p521 = scmp.eq.s32.totalorder %s47, 0
      %p522 = por %p520, %p521
      %p523 = scmp.ne.s32.totalorder %s511, %s512
      %p524 = scmp.eq.s32.totalorder %s48, 1
      %p525 = por %p523, %p524
      %p527 = scmp.ne.s32.totalorder %s512, %s526
      %p528 = scmp.eq.s32.totalorder %s48, 0
      %p529 = por %p527, %p528
      %s531 = sadd.s32 %s530, 1
      %p534 = scmp.eq.s32.totalorder %s42, 1
      %p535 = scmp.ne.s32.totalorder %s530, %s532
      %p536 = scmp.eq.s32.totalorder %s42, 0
      %p537 = por %p535, %p536
      %p538 = scmp.ne.s32.totalorder %s530, %s532
      %p539 = scmp.eq.s32.totalorder %s47, 1
      %p540 = por %p538, %p539
      %p541 = scmp.ne.s32.totalorder %s532, %s533
      %p542 = scmp.eq.s32.totalorder %s47, 0
      %p543 = por %p541, %p542
      %p544 = scmp.ne.s32.totalorder %s532, %s533
      %p545 = scmp.eq.s32.totalorder %s48, 1
      %p546 = por %p544, %p545
      %p548 = scmp.ne.s32.totalorder %s533, %s547
      %p549 = scmp.eq.s32.totalorder %s48, 0
      %p550 = por %p548, %p549
      %p551 = scmp.le.s32.totalorder 1, %s42
      %p552 = scmp.lt.s32.totalorder %s42, 3
      %p553 = pnand %p551, %p552
      %p554 = pneg %p553
      // Predicated region
      $region9: #{tpu_custom_call.1} parent=5 // pred_check
        _
      $region10: #{tpu_custom_call.1} parent=5 // pred_check_branch
        %556 = sbr.rel (%p553) target = $region12
      $region11: #{tpu_custom_call.1} parent=5 // pred_region
        %s557 = ssub.s32 %s42, 1
        // Predicated region
        $region13: #{tpu_custom_call.1} parent=11 // pred_check
          %p558 = pneg %p63
        $region14: #{tpu_custom_call.1} parent=11 // pred_check_branch
          %560 = sbr.rel (%p558) target = $region16
        $region15: #{tpu_custom_call.1} parent=11 // pred_region
          _
        $region16: #{tpu_custom_call.1} parent=11 // pred_fallthru
          _
        // Predicated region
        $region17: #{tpu_custom_call.1} parent=11 // pred_check
          %p561 = pneg %p84
        $region18: #{tpu_custom_call.1} parent=11 // pred_check_branch
          %563 = sbr.rel (%p561) target = $region20
        $region19: #{tpu_custom_call.1} parent=11 // pred_region
          %s565 = ssub.s32 256, 256
          %566 = vsyncadd [#allocation4], %s565
          %s567 = sshll.u32 [#allocation3], 4
          %s568 = int_to_ptr.vmem [resolvable:$true] %s567
          %573 = dma.hbm_to_vmem [thread:$0]  %s1, 256, %s568, [#allocation4], 128, 128, 8
        $region20: #{tpu_custom_call.1} parent=11 // pred_fallthru
          _
        // Predicated region
        $region21: #{tpu_custom_call.1} parent=11 // pred_check
          %p574 = pneg %p105
        $region22: #{tpu_custom_call.1} parent=11 // pred_check_branch
          %576 = sbr.rel (%p574) target = $region24
        $region23: #{tpu_custom_call.1} parent=11 // pred_region
          %s578 = ssub.s32 128, 128
          %579 = vsyncadd [#allocation7], %s578
          %s581 = sshll.u32 [#allocation6], 4
          %s582 = int_to_ptr.vmem [resolvable:$true] %s581
          %584 = dma.hbm_to_vmem [thread:$0]  %s2, 128, %s582, [#allocation7]
        $region24: #{tpu_custom_call.1} parent=11 // pred_fallthru
          _
        // Predicated region
        $region25: #{tpu_custom_call.1} parent=11 // pred_check
          %p585 = pneg %p126
        $region26: #{tpu_custom_call.1} parent=11 // pred_check_branch
          %587 = sbr.rel (%p585) target = $region28
        $region27: #{tpu_custom_call.1} parent=11 // pred_region
          _
        $region28: #{tpu_custom_call.1} parent=11 // pred_fallthru
          _
        // Predicated region
        $region29: #{tpu_custom_call.1} parent=11 // pred_check
          %p588 = pneg %p147
        $region30: #{tpu_custom_call.1} parent=11 // pred_check_branch
          %590 = sbr.rel (%p588) target = $region32
        $region31: #{tpu_custom_call.1} parent=11 // pred_region
          _
        $region32: #{tpu_custom_call.1} parent=11 // pred_fallthru
          _
        // Predicated region
        $region33: #{tpu_custom_call.1} parent=11 // pred_check
          %p591 = pneg %p168
        $region34: #{tpu_custom_call.1} parent=11 // pred_check_branch
          %593 = sbr.rel (%p591) target = $region36
        $region35: #{tpu_custom_call.1} parent=11 // pred_region
          %s595 = ssub.s32 256, 256
          %596 = vsyncadd [#allocation7], %s595
          %s597 = sshll.u32 [#allocation8], 4
          %s598 = int_to_ptr.vmem [resolvable:$true] %s597
          %603 = dma.hbm_to_vmem [thread:$0]  %s5, 256, %s598, [#allocation7], 128, 128, 8
        $region36: #{tpu_custom_call.1} parent=11 // pred_fallthru
          _
        // Predicated region
        $region37: #{tpu_custom_call.1} parent=11 // pred_check
          %p604 = pneg %p501
        $region38: #{tpu_custom_call.1} parent=11 // pred_check_branch
          %606 = sbr.rel (%p604) target = $region40
        $region39: #{tpu_custom_call.1} parent=11 // pred_region
          %s608 = ssub.s32 512, 512
          %609 = vsyncadd [#allocation22], %s608
          %s610 = sshll.u32 [#allocation21], 4
          %s611 = int_to_ptr.vmem [resolvable:$true] %s610
          %616 = dma.hbm_to_vmem [thread:$0]  %s18, 512, %s611, [#allocation22], 128, 128, 8
        $region40: #{tpu_custom_call.1} parent=11 // pred_fallthru
          _
        // Predicated region
        $region41: #{tpu_custom_call.1} parent=11 // pred_check
          %p617 = pneg %p522
        $region42: #{tpu_custom_call.1} parent=11 // pred_check_branch
          %619 = sbr.rel (%p617) target = $region44
        $region43: #{tpu_custom_call.1} parent=11 // pred_region
          _
        $region44: #{tpu_custom_call.1} parent=11 // pred_fallthru
          _
      $region12: #{tpu_custom_call.1} parent=5 // pred_fallthru
        _
      %p620 = scmp.lt.s32.totalorder %s42, 2
      // Predicated region
      $region45: #{tpu_custom_call.1} parent=5 // pred_check
        %p621 = pneg %p620
      $region46: #{tpu_custom_call.1} parent=5 // pred_check_branch
        %623 = sbr.rel (%p621) target = $region48
      $region47: #{tpu_custom_call.1} parent=5 // pred_region
        // Predicated region
        $region49: #{tpu_custom_call.1} parent=47 // pred_check
          %p624 = pneg %p188
        $region50: #{tpu_custom_call.1} parent=47 // pred_check_branch
          %626 = sbr.rel (%p624) target = $region52
        $region51: #{tpu_custom_call.1} parent=47 // pred_region
          %s627 = sand.u32 %s42, 1
          %s628 = scalar_lea.sflag [#allocation10], %s627
          %s629 = sand.u32 %s178, 1
          %s630 = smul.addr %s629, 32
          %s631 = scalar_lea.vmem [#allocation9], %s630
          %s633 = ssub.s32 512, 512
          %634 = vsyncadd %s628, %s633
          %s635 = smul.addr %s42, 4
          %s636 = smul.addr %s635, 128
          %s637 = scalar_lea.hbm %s6, %s636
          %s638 = sshll.u32 %s631, 4
          %s639 = int_to_ptr.vmem [resolvable:$true] %s638
          %644 = dma.hbm_to_vmem [thread:$0]  %s637, 512, %s639, %s628, 128, 128, 8
        $region52: #{tpu_custom_call.1} parent=47 // pred_fallthru
          _
        // Predicated region
        $region53: #{tpu_custom_call.1} parent=47 // pred_check
          %p645 = pneg %p214
        $region54: #{tpu_custom_call.1} parent=47 // pred_check_branch
          %647 = sbr.rel (%p645) target = $region56
        $region55: #{tpu_custom_call.1} parent=47 // pred_region
          %s648 = sand.u32 %s42, 1
          %s649 = scalar_lea.sflag [#allocation10], %s648
          %s650 = sand.u32 %s204, 1
          %s651 = scalar_lea.vmem [#allocation11], %s650
          %s653 = ssub.s32 16, 16
          %654 = vsyncadd %s649, %s653
          %s655 = smul.addr %s42, 16
          %s656 = scalar_lea.hbm %s7, %s655
          %s658 = sshll.u32 %s651, 4
          %s659 = int_to_ptr.vmem [resolvable:$true] %s658
          %661 = dma.hbm_to_vmem [thread:$0]  %s656, 16, %s659, %s649
        $region56: #{tpu_custom_call.1} parent=47 // pred_fallthru
          _
        // Predicated region
        $region57: #{tpu_custom_call.1} parent=47 // pred_check
          %p662 = pneg %p240
        $region58: #{tpu_custom_call.1} parent=47 // pred_check_branch
          %664 = sbr.rel (%p662) target = $region60
        $region59: #{tpu_custom_call.1} parent=47 // pred_region
          %s665 = sand.u32 %s42, 1
          %s666 = scalar_lea.sflag [#allocation13], %s665
          %s667 = sand.u32 %s230, 1
          %s668 = smul.addr %s667, 32
          %s669 = scalar_lea.vmem [#allocation12], %s668
          %s671 = ssub.s32 512, 512
          %672 = vsyncadd %s666, %s671
          %s673 = smul.addr %s42, 4
          %s674 = smul.addr %s673, 128
          %s675 = scalar_lea.hbm %s8, %s674
          %s676 = sshll.u32 %s669, 4
          %s677 = int_to_ptr.vmem [resolvable:$true] %s676
          %682 = dma.hbm_to_vmem [thread:$0]  %s675, 512, %s677, %s666, 128, 128, 8
        $region60: #{tpu_custom_call.1} parent=47 // pred_fallthru
          _
        // Predicated region
        $region61: #{tpu_custom_call.1} parent=47 // pred_check
          %p683 = pneg %p266
        $region62: #{tpu_custom_call.1} parent=47 // pred_check_branch
          %685 = sbr.rel (%p683) target = $region64
        $region63: #{tpu_custom_call.1} parent=47 // pred_region
          %s686 = sand.u32 %s42, 1
          %s687 = scalar_lea.sflag [#allocation13], %s686
          %s688 = sand.u32 %s256, 1
          %s689 = scalar_lea.vmem [#allocation14], %s688
          %s691 = ssub.s32 16, 16
          %692 = vsyncadd %s687, %s691
          %s693 = smul.addr %s42, 16
          %s694 = scalar_lea.hbm %s9, %s693
          %s696 = sshll.u32 %s689, 4
          %s697 = int_to_ptr.vmem [resolvable:$true] %s696
          %699 = dma.hbm_to_vmem [thread:$0]  %s694, 16, %s697, %s687
        $region64: #{tpu_custom_call.1} parent=47 // pred_fallthru
          _
        // Predicated region
        $region65: #{tpu_custom_call.1} parent=47 // pred_check
          %p700 = pneg %p292
        $region66: #{tpu_custom_call.1} parent=47 // pred_check_branch
          %702 = sbr.rel (%p700) target = $region68
        $region67: #{tpu_custom_call.1} parent=47 // pred_region
          %s703 = sand.u32 %s42, 1
          %s704 = scalar_lea.sflag [#allocation16], %s703
          %s705 = sand.u32 %s282, 1
          %s706 = scalar_lea.vmem [#allocation15], %s705
          %s708 = ssub.s32 16, 16
          %709 = vsyncadd %s704, %s708
          %s710 = smul.addr %s42, 16
          %s711 = scalar_lea.hbm %s10, %s710
          %s713 = sshll.u32 %s706, 4
          %s714 = int_to_ptr.vmem [resolvable:$true] %s713
          %716 = dma.hbm_to_vmem [thread:$0]  %s711, 16, %s714, %s704
        $region68: #{tpu_custom_call.1} parent=47 // pred_fallthru
          _
        // Predicated region
        $region69: #{tpu_custom_call.1} parent=47 // pred_check
          %p717 = pneg %p318
        $region70: #{tpu_custom_call.1} parent=47 // pred_check_branch
          %719 = sbr.rel (%p717) target = $region72
        $region71: #{tpu_custom_call.1} parent=47 // pred_region
          %s720 = sand.u32 %s42, 1
          %s721 = scalar_lea.sflag [#allocation16], %s720
          %s722 = sand.u32 %s308, 1
          %s723 = scalar_lea.vmem [#allocation17], %s722
          %s725 = ssub.s32 16, 16
          %726 = vsyncadd %s721, %s725
          %s727 = smul.addr %s42, 16
          %s728 = scalar_lea.hbm %s11, %s727
          %s730 = sshll.u32 %s723, 4
          %s731 = int_to_ptr.vmem [resolvable:$true] %s730
          %733 = dma.hbm_to_vmem [thread:$0]  %s728, 16, %s731, %s721
        $region72: #{tpu_custom_call.1} parent=47 // pred_fallthru
          _
        // Predicated region
        $region73: #{tpu_custom_call.1} parent=47 // pred_check
          %p734 = pneg %p344
        $region74: #{tpu_custom_call.1} parent=47 // pred_check_branch
          %736 = sbr.rel (%p734) target = $region76
        $region75: #{tpu_custom_call.1} parent=47 // pred_region
          %s737 = sand.u32 %s42, 1
          %s738 = scalar_lea.sflag [#allocation19], %s737
          %s739 = sand.u32 %s334, 1
          %s740 = smul.addr %s739, 256
          %s741 = scalar_lea.vmem [#allocation18], %s740
          %s743 = ssub.s32 4096, 4096
          %744 = vsyncadd %s738, %s743
          %s745 = smul.addr %s42, 64
          %s746 = smul.addr %s745, 64
          %s747 = scalar_lea.hbm %s12, %s746
          %s748 = sshll.u32 %s741, 4
          %s749 = int_to_ptr.vmem [resolvable:$true] %s748
          %754 = dma.hbm_to_vmem [thread:$0]  %s747, 4096, %s749, %s738, 1024, 1024, 64
        $region76: #{tpu_custom_call.1} parent=47 // pred_fallthru
          _
        // Predicated region
        $region77: #{tpu_custom_call.1} parent=47 // pred_check
          %p755 = pneg %p370
        $region78: #{tpu_custom_call.1} parent=47 // pred_check_branch
          %757 = sbr.rel (%p755) target = $region80
        $region79: #{tpu_custom_call.1} parent=47 // pred_region
          %p758 = scmp.lt.s32.totalorder %s42, 1
          %s759 = scalar_select %p758, %s42, 1
          %s760 = smul.addr %s759, 16
          %s761 = scalar_lea.vmem %s13, %s760
        $region80: #{tpu_custom_call.1} parent=47 // pred_fallthru
          _
        // Predicated region
        $region81: #{tpu_custom_call.1} parent=47 // pred_check
          %p762 = pneg %p396
        $region82: #{tpu_custom_call.1} parent=47 // pred_check_branch
          %764 = sbr.rel (%p762) target = $region84
        $region83: #{tpu_custom_call.1} parent=47 // pred_region
          %s765 = sand.u32 %s42, 1
          %s766 = scalar_lea.sflag [#allocation19], %s765
          %s767 = sand.u32 %s386, 1
          %s768 = smul.addr %s767, 256
          %s769 = scalar_lea.vmem [#allocation20], %s768
          %s771 = ssub.s32 4096, 4096
          %772 = vsyncadd %s766, %s771
          %s773 = smul.addr %s42, 64
          %s774 = smul.addr %s773, 64
          %s775 = scalar_lea.hbm %s14, %s774
          %s776 = sshll.u32 %s769, 4
          %s777 = int_to_ptr.vmem [resolvable:$true] %s776
          %782 = dma.hbm_to_vmem [thread:$0]  %s775, 4096, %s777, %s766, 1024, 1024, 64
        $region84: #{tpu_custom_call.1} parent=47 // pred_fallthru
          _
        // Predicated region
        $region85: #{tpu_custom_call.1} parent=47 // pred_check
          %p783 = pneg %p422
        $region86: #{tpu_custom_call.1} parent=47 // pred_check_branch
          %785 = sbr.rel (%p783) target = $region88
        $region87: #{tpu_custom_call.1} parent=47 // pred_region
          %p786 = scmp.lt.s32.totalorder %s42, 1
          %s787 = scalar_select %p786, %s42, 1
          %s788 = scalar_lea.vmem %s15, %s787
        $region88: #{tpu_custom_call.1} parent=47 // pred_fallthru
          _
        // Predicated region
        $region89: #{tpu_custom_call.1} parent=47 // pred_check
          %p789 = pneg %p448
        $region90: #{tpu_custom_call.1} parent=47 // pred_check_branch
          %791 = sbr.rel (%p789) target = $region92
        $region91: #{tpu_custom_call.1} parent=47 // pred_region
          %p792 = scmp.lt.s32.totalorder %s42, 1
          %s793 = scalar_select %p792, %s42, 1
          %s794 = scalar_lea.vmem %s16, %s793
        $region92: #{tpu_custom_call.1} parent=47 // pred_fallthru
          _
        // Predicated region
        $region93: #{tpu_custom_call.1} parent=47 // pred_check
          %p795 = pneg %p474
        $region94: #{tpu_custom_call.1} parent=47 // pred_check_branch
          %797 = sbr.rel (%p795) target = $region96
        $region95: #{tpu_custom_call.1} parent=47 // pred_region
          %p798 = scmp.lt.s32.totalorder %s42, 1
          %s799 = scalar_select %p798, %s42, 1
          %s800 = scalar_lea.vmem %s17, %s799
        $region96: #{tpu_custom_call.1} parent=47 // pred_fallthru
          _
      $region48: #{tpu_custom_call.1} parent=5 // pred_fallthru
        _
      %p801 = scmp.le.s32.totalorder 1, %s42
      %p802 = scmp.lt.s32.totalorder %s42, 3
      %p803 = pnand %p801, %p802
      %p804 = pneg %p803
      // Predicated region
      $region97: #{tpu_custom_call.1} parent=5 // pred_check
        _
      $region98: #{tpu_custom_call.1} parent=5 // pred_check_branch
        %806 = sbr.rel (%p803) target = $region100
      $region99: #{tpu_custom_call.1} parent=5 // pred_region
        %s807 = ssub.s32 %s42, 1
        // Predicated region
        $region101: #{tpu_custom_call.1} parent=99 // pred_check
          %p808 = pneg %p84
        $region102: #{tpu_custom_call.1} parent=99 // pred_check_branch
          %810 = sbr.rel (%p808) target = $region104
        $region103: #{tpu_custom_call.1} parent=99 // pred_region
          %811 = dma.done [#allocation4], 256
        $region104: #{tpu_custom_call.1} parent=99 // pred_fallthru
          _
        // Predicated region
        $region105: #{tpu_custom_call.1} parent=99 // pred_check
          %p812 = pneg %p105
        $region106: #{tpu_custom_call.1} parent=99 // pred_check_branch
          %814 = sbr.rel (%p812) target = $region108
        $region107: #{tpu_custom_call.1} parent=99 // pred_region
          %815 = dma.done [#allocation7], 128
        $region108: #{tpu_custom_call.1} parent=99 // pred_fallthru
          _
        // Predicated region
        $region109: #{tpu_custom_call.1} parent=99 // pred_check
          %p816 = pneg %p168
        $region110: #{tpu_custom_call.1} parent=99 // pred_check_branch
          %818 = sbr.rel (%p816) target = $region112
        $region111: #{tpu_custom_call.1} parent=99 // pred_region
          %819 = dma.done [#allocation7], 256
        $region112: #{tpu_custom_call.1} parent=99 // pred_fallthru
          _
        %s820 = sand.u32 %s47, 1
        %s821 = scalar_lea.sflag [#allocation10], %s820
        %s822 = sand.u32 %s181, 1
        %s823 = smul.addr %s822, 32
        %s824 = scalar_lea.vmem [#allocation9], %s823
        // Predicated region
        $region113: #{tpu_custom_call.1} parent=99 // pred_check
          %p825 = pneg %p194
        $region114: #{tpu_custom_call.1} parent=99 // pred_check_branch
          %827 = sbr.rel (%p825) target = $region116
        $region115: #{tpu_custom_call.1} parent=99 // pred_region
          %828 = dma.done %s821, 512
        $region116: #{tpu_custom_call.1} parent=99 // pred_fallthru
          _
        %s829 = sand.u32 %s47, 1
        %s830 = scalar_lea.sflag [#allocation10], %s829
        %s831 = sand.u32 %s207, 1
        %s832 = scalar_lea.vmem [#allocation11], %s831
        // Predicated region
        $region117: #{tpu_custom_call.1} parent=99 // pred_check
          %p833 = pneg %p220
        $region118: #{tpu_custom_call.1} parent=99 // pred_check_branch
          %835 = sbr.rel (%p833) target = $region120
        $region119: #{tpu_custom_call.1} parent=99 // pred_region
          %836 = dma.done %s830, 16
        $region120: #{tpu_custom_call.1} parent=99 // pred_fallthru
          _
        %s837 = sand.u32 %s47, 1
        %s838 = scalar_lea.sflag [#allocation13], %s837
        %s839 = sand.u32 %s233, 1
        %s840 = smul.addr %s839, 32
        %s841 = scalar_lea.vmem [#allocation12], %s840
        // Predicated region
        $region121: #{tpu_custom_call.1} parent=99 // pred_check
          %p842 = pneg %p246
        $region122: #{tpu_custom_call.1} parent=99 // pred_check_branch
          %844 = sbr.rel (%p842) target = $region124
        $region123: #{tpu_custom_call.1} parent=99 // pred_region
          %845 = dma.done %s838, 512
        $region124: #{tpu_custom_call.1} parent=99 // pred_fallthru
          _
        %s846 = sand.u32 %s47, 1
        %s847 = scalar_lea.sflag [#allocation13], %s846
        %s848 = sand.u32 %s259, 1
        %s849 = scalar_lea.vmem [#allocation14], %s848
        // Predicated region
        $region125: #{tpu_custom_call.1} parent=99 // pred_check
          %p850 = pneg %p272
        $region126: #{tpu_custom_call.1} parent=99 // pred_check_branch
          %852 = sbr.rel (%p850) target = $region128
        $region127: #{tpu_custom_call.1} parent=99 // pred_region
          %853 = dma.done %s847, 16
        $region128: #{tpu_custom_call.1} parent=99 // pred_fallthru
          _
        %s854 = sand.u32 %s47, 1
        %s855 = scalar_lea.sflag [#allocation16], %s854
        %s856 = sand.u32 %s285, 1
        %s857 = scalar_lea.vmem [#allocation15], %s856
        // Predicated region
        $region129: #{tpu_custom_call.1} parent=99 // pred_check
          %p858 = pneg %p298
        $region130: #{tpu_custom_call.1} parent=99 // pred_check_branch
          %860 = sbr.rel (%p858) target = $region132
        $region131: #{tpu_custom_call.1} parent=99 // pred_region
          %861 = dma.done %s855, 16
        $region132: #{tpu_custom_call.1} parent=99 // pred_fallthru
          _
        %s862 = sand.u32 %s47, 1
        %s863 = scalar_lea.sflag [#allocation16], %s862
        %s864 = sand.u32 %s311, 1
        %s865 = scalar_lea.vmem [#allocation17], %s864
        // Predicated region
        $region133: #{tpu_custom_call.1} parent=99 // pred_check
          %p866 = pneg %p324
        $region134: #{tpu_custom_call.1} parent=99 // pred_check_branch
          %868 = sbr.rel (%p866) target = $region136
        $region135: #{tpu_custom_call.1} parent=99 // pred_region
          %869 = dma.done %s863, 16
        $region136: #{tpu_custom_call.1} parent=99 // pred_fallthru
          _
        %s870 = sand.u32 %s47, 1
        %s871 = scalar_lea.sflag [#allocation19], %s870
        %s872 = sand.u32 %s337, 1
        %s873 = smul.addr %s872, 256
        %s874 = scalar_lea.vmem [#allocation18], %s873
        // Predicated region
        $region137: #{tpu_custom_call.1} parent=99 // pred_check
          %p875 = pneg %p350
        $region138: #{tpu_custom_call.1} parent=99 // pred_check_branch
          %877 = sbr.rel (%p875) target = $region140
        $region139: #{tpu_custom_call.1} parent=99 // pred_region
          %878 = dma.done %s871, 4096
        $region140: #{tpu_custom_call.1} parent=99 // pred_fallthru
          _
        %s879 = sand.u32 %s47, 1
        %s880 = scalar_lea.sflag [#allocation19], %s879
        %s881 = sand.u32 %s389, 1
        %s882 = smul.addr %s881, 256
        %s883 = scalar_lea.vmem [#allocation20], %s882
        // Predicated region
        $region141: #{tpu_custom_call.1} parent=99 // pred_check
          %p884 = pneg %p402
        $region142: #{tpu_custom_call.1} parent=99 // pred_check_branch
          %886 = sbr.rel (%p884) target = $region144
        $region143: #{tpu_custom_call.1} parent=99 // pred_region
          %887 = dma.done %s880, 4096
        $region144: #{tpu_custom_call.1} parent=99 // pred_fallthru
          _
        // Predicated region
        $region145: #{tpu_custom_call.1} parent=99 // pred_check
          %p888 = pneg %p501
        $region146: #{tpu_custom_call.1} parent=99 // pred_check_branch
          %890 = sbr.rel (%p888) target = $region148
        $region147: #{tpu_custom_call.1} parent=99 // pred_region
          %891 = dma.done [#allocation22], 512
        $region148: #{tpu_custom_call.1} parent=99 // pred_fallthru
          _
        %p892 = pneg %p63
        %p893 = pneg %p60
        %p894 = pneg %p84
        %p895 = pneg %p81
        %p896 = pneg %p105
        %p897 = pneg %p102
        %p898 = pneg %p126
        %p899 = pneg %p123
        %p900 = pneg %p147
        %p901 = pneg %p144
        %p902 = pneg %p168
        %p903 = pneg %p165
        %s904 = sand.u32 %s47, 1
        %s905 = scalar_lea.sflag [#allocation10], %s904
        %s906 = sand.u32 %s181, 1
        %s907 = smul.addr %s906, 32
        %s908 = scalar_lea.vmem [#allocation9], %s907
        %p909 = pneg %p194
        %p910 = pneg %p191
        %s911 = sand.u32 %s47, 1
        %s912 = scalar_lea.sflag [#allocation10], %s911
        %s913 = sand.u32 %s207, 1
        %s914 = scalar_lea.vmem [#allocation11], %s913
        %p915 = pneg %p220
        %p916 = pneg %p217
        %s917 = sand.u32 %s47, 1
        %s918 = scalar_lea.sflag [#allocation13], %s917
        %s919 = sand.u32 %s233, 1
        %s920 = smul.addr %s919, 32
        %s921 = scalar_lea.vmem [#allocation12], %s920
        %p922 = pneg %p246
        %p923 = pneg %p243
        %s924 = sand.u32 %s47, 1
        %s925 = scalar_lea.sflag [#allocation13], %s924
        %s926 = sand.u32 %s259, 1
        %s927 = scalar_lea.vmem [#allocation14], %s926
        %p928 = pneg %p272
        %p929 = pneg %p269
        %s930 = sand.u32 %s47, 1
        %s931 = scalar_lea.sflag [#allocation16], %s930
        %s932 = sand.u32 %s285, 1
        %s933 = scalar_lea.vmem [#allocation15], %s932
        %p934 = pneg %p298
        %p935 = pneg %p295
        %s936 = sand.u32 %s47, 1
        %s937 = scalar_lea.sflag [#allocation16], %s936
        %s938 = sand.u32 %s311, 1
        %s939 = scalar_lea.vmem [#allocation17], %s938
        %p940 = pneg %p324
        %p941 = pneg %p321
        %s942 = sand.u32 %s47, 1
        %s943 = scalar_lea.sflag [#allocation19], %s942
        %s944 = sand.u32 %s337, 1
        %s945 = smul.addr %s944, 256
        %s946 = scalar_lea.vmem [#allocation18], %s945
        %p947 = pneg %p350
        %p948 = pneg %p347
        %p949 = scmp.lt.s32.totalorder %s47, 1
        %s950 = scalar_select %p949, %s47, 1
        %s951 = smul.addr %s950, 16
        %s952 = scalar_lea.vmem %s13, %s951
        %p953 = pneg %p376
        %p954 = pneg %p373
        %s955 = sand.u32 %s47, 1
        %s956 = scalar_lea.sflag [#allocation19], %s955
        %s957 = sand.u32 %s389, 1
        %s958 = smul.addr %s957, 256
        %s959 = scalar_lea.vmem [#allocation20], %s958
        %p960 = pneg %p402
        %p961 = pneg %p399
        %p962 = scmp.lt.s32.totalorder %s47, 1
        %s963 = scalar_select %p962, %s47, 1
        %s964 = scalar_lea.vmem %s15, %s963
        %p965 = pneg %p428
        %p966 = pneg %p425
        %p967 = scmp.lt.s32.totalorder %s47, 1
        %s968 = scalar_select %p967, %s47, 1
        %s969 = scalar_lea.vmem %s16, %s968
        %p970 = pneg %p454
        %p971 = pneg %p451
        %p972 = scmp.lt.s32.totalorder %s47, 1
        %s973 = scalar_select %p972, %s47, 1
        %s974 = scalar_lea.vmem %s17, %s973
        %p975 = pneg %p480
        %p976 = pneg %p477
        %p977 = pneg %p501
        %p978 = pneg %p498
        %p979 = pneg %p522
        %p980 = pneg %p519
        %p981 = pneg %p543
        %p982 = pneg %p540
        %p983 = scmp.lt.s32.totalorder %s47, 1
        %s984 = scalar_select %p983, %s47, 1
        %s985 = smul.addr %s984, 16
        %s986 = scalar_lea.vmem %s13, %s985
        %p987 = scmp.lt.s32.totalorder %s47, 1
        %s988 = scalar_select %p987, %s47, 1
        %s989 = scalar_lea.vmem %s15, %s988
        %p990 = scmp.lt.s32.totalorder %s47, 1
        %s991 = scalar_select %p990, %s47, 1
        %s992 = scalar_lea.vmem %s16, %s991
        %p993 = scmp.lt.s32.totalorder %s47, 1
        %s994 = scalar_select %p993, %s47, 1
        %s995 = scalar_lea.vmem %s17, %s994
        %p997 = scmp.eq.s32.totalorder %s47, 0
        // Predicated region
        $region149: #{tpu_custom_call.1} parent=99 // pred_check
          %p998 = pneg %p997
        $region150: #{tpu_custom_call.1} parent=99 // pred_check_branch
          %1000 = sbr.rel (%p998) target = $region152
        $region151: #{tpu_custom_call.1} parent=99 // pred_region
          %v1001 = vld [vmem:[%s0] sm:$0xff]
          %v1002 = vld [vmem:[%s0 + $0x8] sm:$0xff]
          %v1003 = vld [vmem:[#allocation6] sm:$0xff]
          %v1004 = vld [vmem:[%s3] sm:$0x1]
          %v1006 = vlaneseq
          %v1007 = vshrl.u32 %v1006, 7
          %v1008 = vsub.s32 0, %v1007
          %v1009 = vrot.slane %v1004, %v1008
          %vm1011 = vcmask 64512
          %v1013 = vsel %vm1011, %v1001, 0
          %v1016 = vsel %vm1011, %v1002, 0
          %1018 = vmatprep.subr.mxu0 0.0
          %1019 = vmatpush1.msra.mxu0 %v1003
          %1020 = vmatprep.subr.mxu0 0.0
          %1021 = vmatpush1.msra.mxu0 0.0
          %1022 = vmatprep.subr.mxu0 0.0
          %1023 = vmatpush1.msra.mxu0 0.0
          %1024 = vmatprep.subr.mxu0 0.0
          %1025 = vmatpush1.msra.mxu0 0.0
          %1026 = vmatprep.subr.mxu0 0.0
          %1027 = vmatpush1.msra.mxu0 0.0
          %1028 = vmatprep.subr.mxu0 0.0
          %1029 = vmatpush1.msra.mxu0 0.0
          %1030 = vmatprep.subr.mxu0 0.0
          %1031 = vmatpush1.msra.mxu0 0.0
          %1032 = vmatprep.subr.mxu0 0.0
          %1033 = vmatpush1.msra.mxu0 0.0
          %1034 = vmatprep.subr.mxu0 0.0
          %1035 = vmatpush1.msra.mxu0 0.0
          %1036 = vmatprep.subr.mxu0 0.0
          %1037 = vmatpush1.msra.mxu0 0.0
          %1038 = vmatprep.subr.mxu0 0.0
          %1039 = vmatpush1.msra.mxu0 0.0
          %1040 = vmatprep.subr.mxu0 0.0
          %1041 = vmatpush1.msra.mxu0 0.0
          %1042 = vmatprep.subr.mxu0 0.0
          %1043 = vmatpush1.msra.mxu0 0.0
          %1044 = vmatprep.subr.mxu0 0.0
          %1045 = vmatpush1.msra.mxu0 0.0
          %1046 = vmatprep.subr.mxu0 0.0
          %1047 = vmatpush1.msra.mxu0 0.0
          %1048 = vmatprep.subr.mxu0 0.0
          %1049 = vmatpush1.msra.mxu0 0.0
          %1050 = vmatprep.subr.mxu0 0.0
          %1051 = vmatpush1.msra.mxu0 0.0
          %1052 = vmatprep.subr.mxu0 0.0
          %1053 = vmatpush1.msra.mxu0 0.0
          %1054 = vmatprep.subr.mxu0 0.0
          %1055 = vmatpush1.msra.mxu0 0.0
          %1056 = vmatprep.subr.mxu0 0.0
          %1057 = vmatpush1.msra.mxu0 0.0
          %1058 = vmatprep.subr.mxu0 0.0
          %1059 = vmatpush1.msra.mxu0 0.0
          %1060 = vmatprep.subr.mxu0 0.0
          %1061 = vmatpush1.msra.mxu0 0.0
          %1062 = vmatprep.subr.mxu0 0.0
          %1063 = vmatpush1.msra.mxu0 0.0
          %1064 = vmatprep.subr.mxu0 0.0
          %1065 = vmatpush1.msra.mxu0 0.0
          %1066 = vmatprep.subr.mxu0 0.0
          %1067 = vmatpush1.msra.mxu0 0.0
          %1068 = vmatprep.subr.mxu0 0.0
          %1069 = vmatpush1.msra.mxu0 0.0
          %1070 = vmatprep.subr.mxu0 0.0
          %1071 = vmatpush1.msra.mxu0 0.0
          %1072 = vmatprep.subr.mxu0 0.0
          %1073 = vmatpush1.msra.mxu0 0.0
          %1074 = vmatprep.subr.mxu0 0.0
          %1075 = vmatpush1.msra.mxu0 0.0
          %1076 = vmatprep.subr.mxu0 0.0
          %1077 = vmatpush1.msra.mxu0 0.0
          %1078 = vmatprep.subr.mxu0 0.0
          %1079 = vmatpush1.msra.mxu0 0.0
          %1080 = vmatprep.subr.mxu0 0.0
          %1081 = vmatpush1.msra.mxu0 0.0
          %1082 = vmatprep.mubr.f32.mxu0 0.0
          %1083 = vmatmul.mubr.f32.gmra.mrb[0].mxu0 %v1013
          %v1084 = vpop.f32.mrb[0].mxu0
          %v1085 = vadd.f32 %v1009, %v1084
          %v1086 = vpop.f32.mrb[0].mxu0
          %1087 = vmatprep.mubr.f32.mxu0 0.0
          %1088 = vmatmul.mubr.f32.gmra.mrb[0].mxu0 %v1016
          %v1089 = vpop.f32.mrb[0].mxu0
          %v1090 = vadd.f32 %v1009, %v1089
          %v1091 = vpop.f32.mrb[0].mxu0
          %1092 = vdwg.mxu0
          %v1093 = vld [vmem:[#allocation3] sm:$0xff]
          %v1094 = vld [vmem:[#allocation3 + $0x8] sm:$0xff]
          %v1095 = vadd.f32 %v1085, %v1093
          %v1096 = vadd.f32 %v1090, %v1094
          %vm1097 = vcmask 261120
          %1098 = vst.msk [vmem:[#allocation2] sm:$0xff] %vm1097, %v1095
          %1099 = vst.msk [vmem:[#allocation2 + $0x8] sm:$0xff] %vm1097, %v1096
        $region152: #{tpu_custom_call.1} parent=99 // pred_fallthru
          _
        %v1100 = vld [vmem:[#allocation2] sm:$0xff]
        %v1101 = vld [vmem:[#allocation2 + $0x8] sm:$0xff]
        %v1102 = vld [vmem:[%s824] sm:$0xff]
        %v1103 = vld [vmem:[%s824 + $0x8] sm:$0xff]
        %v1104 = vld [vmem:[%s824 + $0x10] sm:$0xff]
        %v1105 = vld [vmem:[%s824 + $0x18] sm:$0xff]
        %v1106 = vld [vmem:[%s832] sm:$0x1]
        %v1108 = vlaneseq
        %v1109 = vshrl.u32 %v1108, 7
        %v1110 = vsub.s32 0, %v1109
        %v1111 = vrot.slane %v1106, %v1110
        %vm1113 = vcmask 261120
        %v1115 = vsel %vm1113, %v1100, 0
        %v1118 = vsel %vm1113, %v1101, 0
        %1120 = vmatprep.subr.mxu0 0.0
        %1121 = vmatpush1.msra.mxu0 %v1102
        %1122 = vmatprep.subr.mxu0 0.0
        %1123 = vmatpush1.msra.mxu0 %v1103
        %1124 = vmatprep.subr.mxu0 0.0
        %1125 = vmatpush1.msra.mxu0 %v1104
        %1126 = vmatprep.subr.mxu0 0.0
        %1127 = vmatpush1.msra.mxu0 %v1105
        %1128 = vmatprep.subr.mxu0 0.0
        %1129 = vmatpush1.msra.mxu0 0.0
        %1130 = vmatprep.subr.mxu0 0.0
        %1131 = vmatpush1.msra.mxu0 0.0
        %1132 = vmatprep.subr.mxu0 0.0
        %1133 = vmatpush1.msra.mxu0 0.0
        %1134 = vmatprep.subr.mxu0 0.0
        %1135 = vmatpush1.msra.mxu0 0.0
        %1136 = vmatprep.subr.mxu0 0.0
        %1137 = vmatpush1.msra.mxu0 0.0
        %1138 = vmatprep.subr.mxu0 0.0
        %1139 = vmatpush1.msra.mxu0 0.0
        %1140 = vmatprep.subr.mxu0 0.0
        %1141 = vmatpush1.msra.mxu0 0.0
        %1142 = vmatprep.subr.mxu0 0.0
        %1143 = vmatpush1.msra.mxu0 0.0
        %1144 = vmatprep.subr.mxu0 0.0
        %1145 = vmatpush1.msra.mxu0 0.0
        %1146 = vmatprep.subr.mxu0 0.0
        %1147 = vmatpush1.msra.mxu0 0.0
        %1148 = vmatprep.subr.mxu0 0.0
        %1149 = vmatpush1.msra.mxu0 0.0
        %1150 = vmatprep.subr.mxu0 0.0
        %1151 = vmatpush1.msra.mxu0 0.0
        %1152 = vmatprep.subr.mxu0 0.0
        %1153 = vmatpush1.msra.mxu0 0.0
        %1154 = vmatprep.subr.mxu0 0.0
        %1155 = vmatpush1.msra.mxu0 0.0
        %1156 = vmatprep.subr.mxu0 0.0
        %1157 = vmatpush1.msra.mxu0 0.0
        %1158 = vmatprep.subr.mxu0 0.0
        %1159 = vmatpush1.msra.mxu0 0.0
        %1160 = vmatprep.subr.mxu0 0.0
        %1161 = vmatpush1.msra.mxu0 0.0
        %1162 = vmatprep.subr.mxu0 0.0
        %1163 = vmatpush1.msra.mxu0 0.0
        %1164 = vmatprep.subr.mxu0 0.0
        %1165 = vmatpush1.msra.mxu0 0.0
        %1166 = vmatprep.subr.mxu0 0.0
        %1167 = vmatpush1.msra.mxu0 0.0
        %1168 = vmatprep.subr.mxu0 0.0
        %1169 = vmatpush1.msra.mxu0 0.0
        %1170 = vmatprep.subr.mxu0 0.0
        %1171 = vmatpush1.msra.mxu0 0.0
        %1172 = vmatprep.subr.mxu0 0.0
        %1173 = vmatpush1.msra.mxu0 0.0
        %1174 = vmatprep.subr.mxu0 0.0
        %1175 = vmatpush1.msra.mxu0 0.0
        %1176 = vmatprep.subr.mxu0 0.0
        %1177 = vmatpush1.msra.mxu0 0.0
        %1178 = vmatprep.subr.mxu0 0.0
        %1179 = vmatpush1.msra.mxu0 0.0
        %1180 = vmatprep.subr.mxu0 0.0
        %1181 = vmatpush1.msra.mxu0 0.0
        %1182 = vmatprep.subr.mxu0 0.0
        %1183 = vmatpush1.msra.mxu0 0.0
        %1184 = vmatprep.mubr.f32.mxu0 0.0
        %1185 = vmatmul.mubr.f32.gmra.mrb[0].mxu0 %v1115
        %v1186 = vpop.f32.mrb[0].mxu0
        %v1187 = vadd.f32 %v1111, %v1186
        %v1188 = vpop.f32.mrb[0].mxu0
        %1189 = vmatprep.mubr.f32.mxu0 0.0
        %1190 = vmatmul.mubr.f32.gmra.mrb[0].mxu0 %v1118
        %v1191 = vpop.f32.mrb[0].mxu0
        %v1192 = vadd.f32 %v1111, %v1191
        %v1193 = vpop.f32.mrb[0].mxu0
        %1194 = vdwg.mxu0
        %v1195 = vmul.f32 %v1187, 0.35355338
        %v1196 = vmul.f32 %v1192, 0.35355338
        %v1197 = vld [vmem:[%s4] sm:$0xff]
        %v1198 = vld [vmem:[%s4 + $0x8] sm:$0xff]
        %v1199 = vld [vmem:[%s4 + $0x10] sm:$0xff]
        %v1200 = vld [vmem:[%s4 + $0x18] sm:$0xff]
        %1203 = vrot.lane.b32.xlu0 %v1187, 96
        %v1204 = vpop.permute.xlu0 %1203
        %1205 = vrot.lane.b32.xlu0 %v1192, 96
        %v1206 = vpop.permute.xlu0 %1205
        %v1209 = vmul.f32 %v1195, %v1204
        %v1210 = vmul.f32 %v1196, %v1206
        %v1212 = vsel %vm1113, %v1209, 0
        %v1215 = vsel %vm1113, %v1210, 0
        %1217 = vmatprep.subr.mxu0 0.0
        %1218 = vmatpush1.msra.mxu0 %v1197
        %1219 = vmatprep.subr.mxu0 0.0
        %1220 = vmatpush1.msra.mxu0 %v1198
        %1221 = vmatprep.subr.mxu0 0.0
        %1222 = vmatpush1.msra.mxu0 %v1199
        %1223 = vmatprep.subr.mxu0 0.0
        %1224 = vmatpush1.msra.mxu0 %v1200
        %1225 = vmatprep.subr.mxu0 0.0
        %1226 = vmatpush1.msra.mxu0 0.0
        %1227 = vmatprep.subr.mxu0 0.0
        %1228 = vmatpush1.msra.mxu0 0.0
        %1229 = vmatprep.subr.mxu0 0.0
        %1230 = vmatpush1.msra.mxu0 0.0
        %1231 = vmatprep.subr.mxu0 0.0
        %1232 = vmatpush1.msra.mxu0 0.0
        %1233 = vmatprep.subr.mxu0 0.0
        %1234 = vmatpush1.msra.mxu0 0.0
        %1235 = vmatprep.subr.mxu0 0.0
        %1236 = vmatpush1.msra.mxu0 0.0
        %1237 = vmatprep.subr.mxu0 0.0
        %1238 = vmatpush1.msra.mxu0 0.0
        %1239 = vmatprep.subr.mxu0 0.0
        %1240 = vmatpush1.msra.mxu0 0.0
        %1241 = vmatprep.subr.mxu0 0.0
        %1242 = vmatpush1.msra.mxu0 0.0
        %1243 = vmatprep.subr.mxu0 0.0
        %1244 = vmatpush1.msra.mxu0 0.0
        %1245 = vmatprep.subr.mxu0 0.0
        %1246 = vmatpush1.msra.mxu0 0.0
        %1247 = vmatprep.subr.mxu0 0.0
        %1248 = vmatpush1.msra.mxu0 0.0
        %1249 = vmatprep.subr.mxu0 0.0
        %1250 = vmatpush1.msra.mxu0 0.0
        %1251 = vmatprep.subr.mxu0 0.0
        %1252 = vmatpush1.msra.mxu0 0.0
        %1253 = vmatprep.subr.mxu0 0.0
        %1254 = vmatpush1.msra.mxu0 0.0
        %1255 = vmatprep.subr.mxu0 0.0
        %1256 = vmatpush1.msra.mxu0 0.0
        %1257 = vmatprep.subr.mxu0 0.0
        %1258 = vmatpush1.msra.mxu0 0.0
        %1259 = vmatprep.subr.mxu0 0.0
        %1260 = vmatpush1.msra.mxu0 0.0
        %1261 = vmatprep.subr.mxu0 0.0
        %1262 = vmatpush1.msra.mxu0 0.0
        %1263 = vmatprep.subr.mxu0 0.0
        %1264 = vmatpush1.msra.mxu0 0.0
        %1265 = vmatprep.subr.mxu0 0.0
        %1266 = vmatpush1.msra.mxu0 0.0
        %1267 = vmatprep.subr.mxu0 0.0
        %1268 = vmatpush1.msra.mxu0 0.0
        %1269 = vmatprep.subr.mxu0 0.0
        %1270 = vmatpush1.msra.mxu0 0.0
        %1271 = vmatprep.subr.mxu0 0.0
        %1272 = vmatpush1.msra.mxu0 0.0
        %1273 = vmatprep.subr.mxu0 0.0
        %1274 = vmatpush1.msra.mxu0 0.0
        %1275 = vmatprep.subr.mxu0 0.0
        %1276 = vmatpush1.msra.mxu0 0.0
        %1277 = vmatprep.subr.mxu0 0.0
        %1278 = vmatpush1.msra.mxu0 0.0
        %1279 = vmatprep.subr.mxu0 0.0
        %1280 = vmatpush1.msra.mxu0 0.0
        %1281 = vmatprep.mubr.f32.mxu0 0.0
        %1282 = vmatmul.mubr.f32.gmra.mrb[0].mxu0 %v1212
        %v1283 = vpop.f32.mrb[0].mxu0
        %v1284 = vadd.f32 0.0, %v1283
        %v1285 = vpop.f32.mrb[0].mxu0
        %1286 = vmatprep.mubr.f32.mxu0 0.0
        %1287 = vmatmul.mubr.f32.gmra.mrb[0].mxu0 %v1215
        %v1288 = vpop.f32.mrb[0].mxu0
        %v1289 = vadd.f32 0.0, %v1288
        %v1290 = vpop.f32.mrb[0].mxu0
        %1291 = vdwg.mxu0
        %v1292 = vld [vmem:[#allocation8] sm:$0xff]
        %v1293 = vld [vmem:[#allocation8 + $0x8] sm:$0xff]
        %vm1294 = vcmask 130048
        %v1296 = vsel %vm1294, %v1292, 0
        %v1299 = vsel %vm1294, %v1293, 0
        %1301 = vmatprep.subr.mxu0 0.0
        %1302 = vmatpush1.msra.mxu0 %v1204
        %1303 = vmatprep.subr.mxu0 0.0
        %1304 = vmatpush1.msra.mxu0 %v1206
        %1305 = vmatprep.subr.mxu0 0.0
        %1306 = vmatpush1.msra.mxu0 0.0
        %1307 = vmatprep.subr.mxu0 0.0
        %1308 = vmatpush1.msra.mxu0 0.0
        %1309 = vmatprep.subr.mxu0 0.0
        %1310 = vmatpush1.msra.mxu0 0.0
        %1311 = vmatprep.subr.mxu0 0.0
        %1312 = vmatpush1.msra.mxu0 0.0
        %1313 = vmatprep.subr.mxu0 0.0
        %1314 = vmatpush1.msra.mxu0 0.0
        %1315 = vmatprep.subr.mxu0 0.0
        %1316 = vmatpush1.msra.mxu0 0.0
        %1317 = vmatprep.subr.mxu0 0.0
        %1318 = vmatpush1.msra.mxu0 0.0
        %1319 = vmatprep.subr.mxu0 0.0
        %1320 = vmatpush1.msra.mxu0 0.0
        %1321 = vmatprep.subr.mxu0 0.0
        %1322 = vmatpush1.msra.mxu0 0.0
        %1323 = vmatprep.subr.mxu0 0.0
        %1324 = vmatpush1.msra.mxu0 0.0
        %1325 = vmatprep.subr.mxu0 0.0
        %1326 = vmatpush1.msra.mxu0 0.0
        %1327 = vmatprep.subr.mxu0 0.0
        %1328 = vmatpush1.msra.mxu0 0.0
        %1329 = vmatprep.subr.mxu0 0.0
        %1330 = vmatpush1.msra.mxu0 0.0
        %1331 = vmatprep.subr.mxu0 0.0
        %1332 = vmatpush1.msra.mxu0 0.0
        %1333 = vmatprep.subr.mxu0 0.0
        %1334 = vmatpush1.msra.mxu0 0.0
        %1335 = vmatprep.subr.mxu0 0.0
        %1336 = vmatpush1.msra.mxu0 0.0
        %1337 = vmatprep.subr.mxu0 0.0
        %1338 = vmatpush1.msra.mxu0 0.0
        %1339 = vmatprep.subr.mxu0 0.0
        %1340 = vmatpush1.msra.mxu0 0.0
        %1341 = vmatprep.subr.mxu0 0.0
        %1342 = vmatpush1.msra.mxu0 0.0
        %1343 = vmatprep.subr.mxu0 0.0
        %1344 = vmatpush1.msra.mxu0 0.0
        %1345 = vmatprep.subr.mxu0 0.0
        %1346 = vmatpush1.msra.mxu0 0.0
        %1347 = vmatprep.subr.mxu0 0.0
        %1348 = vmatpush1.msra.mxu0 0.0
        %1349 = vmatprep.subr.mxu0 0.0
        %1350 = vmatpush1.msra.mxu0 0.0
        %1351 = vmatprep.subr.mxu0 0.0
        %1352 = vmatpush1.msra.mxu0 0.0
        %1353 = vmatprep.subr.mxu0 0.0
        %1354 = vmatpush1.msra.mxu0 0.0
        %1355 = vmatprep.subr.mxu0 0.0
        %1356 = vmatpush1.msra.mxu0 0.0
        %1357 = vmatprep.subr.mxu0 0.0
        %1358 = vmatpush1.msra.mxu0 0.0
        %1359 = vmatprep.subr.mxu0 0.0
        %1360 = vmatpush1.msra.mxu0 0.0
        %1361 = vmatprep.subr.mxu0 0.0
        %1362 = vmatpush1.msra.mxu0 0.0
        %1363 = vmatprep.subr.mxu0 0.0
        %1364 = vmatpush1.msra.mxu0 0.0
        %1365 = vmatprep.mubr.f32.mxu0 0.0
        %1366 = vmatmul.mubr.f32.gmra.mrb[0].mxu0 %v1296
        %v1367 = vpop.f32.mrb[0].mxu0
        %v1368 = vadd.f32 0.0, %v1367
        %v1369 = vpop.f32.mrb[0].mxu0
        %1370 = vmatprep.mubr.f32.mxu0 0.0
        %1371 = vmatmul.mubr.f32.gmra.mrb[0].mxu0 %v1299
        %v1372 = vpop.f32.mrb[0].mxu0
        %v1373 = vadd.f32 0.0, %v1372
        %v1374 = vpop.f32.mrb[0].mxu0
        %1375 = vdwg.mxu0
        %1376 = vrot.lane.b32.xlu0 %v1187, 64
        %v1377 = vpop.permute.xlu0 %1376
        %1378 = vrot.lane.b32.xlu0 %v1192, 64
        %v1379 = vpop.permute.xlu0 %1378
        %1382 = vmatprep.subr.mxu0 0.0
        %1383 = vmatpush1.msra.mxu0 %v1377
        %1384 = vmatprep.subr.mxu0 0.0
        %1385 = vmatpush1.msra.mxu0 %v1379
        %1386 = vmatprep.subr.mxu0 0.0
        %1387 = vmatpush1.msra.mxu0 0.0
        %1388 = vmatprep.subr.mxu0 0.0
        %1389 = vmatpush1.msra.mxu0 0.0
        %1390 = vmatprep.subr.mxu0 0.0
        %1391 = vmatpush1.msra.mxu0 0.0
        %1392 = vmatprep.subr.mxu0 0.0
        %1393 = vmatpush1.msra.mxu0 0.0
        %1394 = vmatprep.subr.mxu0 0.0
        %1395 = vmatpush1.msra.mxu0 0.0
        %1396 = vmatprep.subr.mxu0 0.0
        %1397 = vmatpush1.msra.mxu0 0.0
        %1398 = vmatprep.subr.mxu0 0.0
        %1399 = vmatpush1.msra.mxu0 0.0
        %1400 = vmatprep.subr.mxu0 0.0
        %1401 = vmatpush1.msra.mxu0 0.0
        %1402 = vmatprep.subr.mxu0 0.0
        %1403 = vmatpush1.msra.mxu0 0.0
        %1404 = vmatprep.subr.mxu0 0.0
        %1405 = vmatpush1.msra.mxu0 0.0
        %1406 = vmatprep.subr.mxu0 0.0
        %1407 = vmatpush1.msra.mxu0 0.0
        %1408 = vmatprep.subr.mxu0 0.0
        %1409 = vmatpush1.msra.mxu0 0.0
        %1410 = vmatprep.subr.mxu0 0.0
        %1411 = vmatpush1.msra.mxu0 0.0
        %1412 = vmatprep.subr.mxu0 0.0
        %1413 = vmatpush1.msra.mxu0 0.0
        %1414 = vmatprep.subr.mxu0 0.0
        %1415 = vmatpush1.msra.mxu0 0.0
        %1416 = vmatprep.subr.mxu0 0.0
        %1417 = vmatpush1.msra.mxu0 0.0
        %1418 = vmatprep.subr.mxu0 0.0
        %1419 = vmatpush1.msra.mxu0 0.0
        %1420 = vmatprep.subr.mxu0 0.0
        %1421 = vmatpush1.msra.mxu0 0.0
        %1422 = vmatprep.subr.mxu0 0.0
        %1423 = vmatpush1.msra.mxu0 0.0
        %1424 = vmatprep.subr.mxu0 0.0
        %1425 = vmatpush1.msra.mxu0 0.0
        %1426 = vmatprep.subr.mxu0 0.0
        %1427 = vmatpush1.msra.mxu0 0.0
        %1428 = vmatprep.subr.mxu0 0.0
        %1429 = vmatpush1.msra.mxu0 0.0
        %1430 = vmatprep.subr.mxu0 0.0
        %1431 = vmatpush1.msra.mxu0 0.0
        %1432 = vmatprep.subr.mxu0 0.0
        %1433 = vmatpush1.msra.mxu0 0.0
        %1434 = vmatprep.subr.mxu0 0.0
        %1435 = vmatpush1.msra.mxu0 0.0
        %1436 = vmatprep.subr.mxu0 0.0
        %1437 = vmatpush1.msra.mxu0 0.0
        %1438 = vmatprep.subr.mxu0 0.0
        %1439 = vmatpush1.msra.mxu0 0.0
        %1440 = vmatprep.subr.mxu0 0.0
        %1441 = vmatpush1.msra.mxu0 0.0
        %1442 = vmatprep.subr.mxu0 0.0
        %1443 = vmatpush1.msra.mxu0 0.0
        %1444 = vmatprep.subr.mxu0 0.0
        %1445 = vmatpush1.msra.mxu0 0.0
        %1446 = vmatprep.mubr.f32.mxu0 0.0
        %1447 = vmatmul.mubr.f32.gmra.mrb[0].mxu0 %v1296
        %v1448 = vpop.f32.mrb[0].mxu0
        %v1449 = vadd.f32 0.0, %v1448
        %v1450 = vpop.f32.mrb[0].mxu0
        %1451 = vmatprep.mubr.f32.mxu0 0.0
        %1452 = vmatmul.mubr.f32.gmra.mrb[0].mxu0 %v1299
        %v1453 = vpop.f32.mrb[0].mxu0
        %v1454 = vadd.f32 0.0, %v1453
        %v1455 = vpop.f32.mrb[0].mxu0
        %1456 = vdwg.mxu0
        %v1457 = vmul.f32 %v1195, %v1368
        %v1458 = vmul.f32 %v1196, %v1373
        %v1460 = vsel %vm1113, %v1457, 0
        %v1463 = vsel %vm1113, %v1458, 0
        %1465 = vmatprep.subr.mxu0 0.0
        %1466 = vmatpush1.msra.mxu0 %v1197
        %1467 = vmatprep.subr.mxu0 0.0
        %1468 = vmatpush1.msra.mxu0 %v1198
        %1469 = vmatprep.subr.mxu0 0.0
        %1470 = vmatpush1.msra.mxu0 %v1199
        %1471 = vmatprep.subr.mxu0 0.0
        %1472 = vmatpush1.msra.mxu0 %v1200
        %1473 = vmatprep.subr.mxu0 0.0
        %1474 = vmatpush1.msra.mxu0 0.0
        %1475 = vmatprep.subr.mxu0 0.0
        %1476 = vmatpush1.msra.mxu0 0.0
        %1477 = vmatprep.subr.mxu0 0.0
        %1478 = vmatpush1.msra.mxu0 0.0
        %1479 = vmatprep.subr.mxu0 0.0
        %1480 = vmatpush1.msra.mxu0 0.0
        %1481 = vmatprep.subr.mxu0 0.0
        %1482 = vmatpush1.msra.mxu0 0.0
        %1483 = vmatprep.subr.mxu0 0.0
        %1484 = vmatpush1.msra.mxu0 0.0
        %1485 = vmatprep.subr.mxu0 0.0
        %1486 = vmatpush1.msra.mxu0 0.0
        %1487 = vmatprep.subr.mxu0 0.0
        %1488 = vmatpush1.msra.mxu0 0.0
        %1489 = vmatprep.subr.mxu0 0.0
        %1490 = vmatpush1.msra.mxu0 0.0
        %1491 = vmatprep.subr.mxu0 0.0
        %1492 = vmatpush1.msra.mxu0 0.0
        %1493 = vmatprep.subr.mxu0 0.0
        %1494 = vmatpush1.msra.mxu0 0.0
        %1495 = vmatprep.subr.mxu0 0.0
        %1496 = vmatpush1.msra.mxu0 0.0
        %1497 = vmatprep.subr.mxu0 0.0
        %1498 = vmatpush1.msra.mxu0 0.0
        %1499 = vmatprep.subr.mxu0 0.0
        %1500 = vmatpush1.msra.mxu0 0.0
        %1501 = vmatprep.subr.mxu0 0.0
        %1502 = vmatpush1.msra.mxu0 0.0
        %1503 = vmatprep.subr.mxu0 0.0
        %1504 = vmatpush1.msra.mxu0 0.0
        %1505 = vmatprep.subr.mxu0 0.0
        %1506 = vmatpush1.msra.mxu0 0.0
        %1507 = vmatprep.subr.mxu0 0.0
        %1508 = vmatpush1.msra.mxu0 0.0
        %1509 = vmatprep.subr.mxu0 0.0
        %1510 = vmatpush1.msra.mxu0 0.0
        %1511 = vmatprep.subr.mxu0 0.0
        %1512 = vmatpush1.msra.mxu0 0.0
        %1513 = vmatprep.subr.mxu0 0.0
        %1514 = vmatpush1.msra.mxu0 0.0
        %1515 = vmatprep.subr.mxu0 0.0
        %1516 = vmatpush1.msra.mxu0 0.0
        %1517 = vmatprep.subr.mxu0 0.0
        %1518 = vmatpush1.msra.mxu0 0.0
        %1519 = vmatprep.subr.mxu0 0.0
        %1520 = vmatpush1.msra.mxu0 0.0
        %1521 = vmatprep.subr.mxu0 0.0
        %1522 = vmatpush1.msra.mxu0 0.0
        %1523 = vmatprep.subr.mxu0 0.0
        %1524 = vmatpush1.msra.mxu0 0.0
        %1525 = vmatprep.subr.mxu0 0.0
        %1526 = vmatpush1.msra.mxu0 0.0
        %1527 = vmatprep.subr.mxu0 0.0
        %1528 = vmatpush1.msra.mxu0 0.0
        %1529 = vmatprep.mubr.f32.mxu0 0.0
        %1530 = vmatmul.mubr.f32.gmra.mrb[0].mxu0 %v1460
        %v1531 = vpop.f32.mrb[0].mxu0
        %v1532 = vadd.f32 0.0, %v1531
        %v1533 = vpop.f32.mrb[0].mxu0
        %1534 = vmatprep.mubr.f32.mxu0 0.0
        %1535 = vmatmul.mubr.f32.gmra.mrb[0].mxu0 %v1463
        %v1536 = vpop.f32.mrb[0].mxu0
        %v1537 = vadd.f32 0.0, %v1536
        %v1538 = vpop.f32.mrb[0].mxu0
        %1539 = vdwg.mxu0
        %v1540 = vmax.f32 %v1284, %v1532
        %v1541 = vmax.f32 %v1289, %v1537
        %v1542 = vsub.f32 %v1284, %v1540
        %v1543 = vsub.f32 %v1289, %v1541
        %v1544 = vmul.f32 %v1542, 1.442695
        %v1545 = vpow.pop %v1544
        %v1546 = vmul.f32 %v1543, 1.442695
        %v1547 = vpow.pop %v1546
        %v1548 = vsub.f32 %v1532, %v1540
        %v1549 = vsub.f32 %v1537, %v1541
        %v1550 = vmul.f32 %v1548, 1.442695
        %v1551 = vpow.pop %v1550
        %v1552 = vmul.f32 %v1549, 1.442695
        %v1553 = vpow.pop %v1552
        %v1554 = vadd.f32 %v1545, %v1551
        %v1555 = vadd.f32 %v1547, %v1553
        %v1556 = vrcp.pop %v1554
        %v1557 = vmul.f32 1.0, %v1556
        %v1558 = vrcp.pop %v1555
        %v1559 = vmul.f32 1.0, %v1558
        %v1560 = vmul.f32 %v1545, %v1557
        %v1561 = vmul.f32 %v1547, %v1559
        %v1562 = vmul.f32 %v1560, %v1377
        %v1563 = vmul.f32 %v1561, %v1379
        %v1564 = vmul.f32 %v1551, %v1557
        %v1565 = vmul.f32 %v1553, %v1559
        %v1566 = vmul.f32 %v1564, %v1449
        %v1567 = vmul.f32 %v1565, %v1454
        %v1568 = vadd.f32 %v1562, %v1566
        %v1569 = vadd.f32 %v1563, %v1567
        %v1570 = vld [vmem:[%s841] sm:$0xff]
        %v1571 = vld [vmem:[%s841 + $0x8] sm:$0xff]
        %v1572 = vld [vmem:[%s841 + $0x10] sm:$0xff]
        %v1573 = vld [vmem:[%s841 + $0x18] sm:$0xff]
        %v1574 = vld [vmem:[%s849] sm:$0x1]
        %v1576 = vlaneseq
        %v1577 = vshrl.u32 %v1576, 7
        %v1578 = vsub.s32 0, %v1577
        %v1579 = vrot.slane %v1574, %v1578
        %v1582 = vsel %vm1113, %v1568, 0
        %v1585 = vsel %vm1113, %v1569, 0
        %1587 = vmatprep.subr.mxu0 0.0
        %1588 = vmatpush1.msra.mxu0 %v1570
        %1589 = vmatprep.subr.mxu0 0.0
        %1590 = vmatpush1.msra.mxu0 %v1571
        %1591 = vmatprep.subr.mxu0 0.0
        %1592 = vmatpush1.msra.mxu0 %v1572
        %1593 = vmatprep.subr.mxu0 0.0
        %1594 = vmatpush1.msra.mxu0 %v1573
        %1595 = vmatprep.subr.mxu0 0.0
        %1596 = vmatpush1.msra.mxu0 0.0
        %1597 = vmatprep.subr.mxu0 0.0
        %1598 = vmatpush1.msra.mxu0 0.0
        %1599 = vmatprep.subr.mxu0 0.0
        %1600 = vmatpush1.msra.mxu0 0.0
        %1601 = vmatprep.subr.mxu0 0.0
        %1602 = vmatpush1.msra.mxu0 0.0
        %1603 = vmatprep.subr.mxu0 0.0
        %1604 = vmatpush1.msra.mxu0 0.0
        %1605 = vmatprep.subr.mxu0 0.0
        %1606 = vmatpush1.msra.mxu0 0.0
        %1607 = vmatprep.subr.mxu0 0.0
        %1608 = vmatpush1.msra.mxu0 0.0
        %1609 = vmatprep.subr.mxu0 0.0
        %1610 = vmatpush1.msra.mxu0 0.0
        %1611 = vmatprep.subr.mxu0 0.0
        %1612 = vmatpush1.msra.mxu0 0.0
        %1613 = vmatprep.subr.mxu0 0.0
        %1614 = vmatpush1.msra.mxu0 0.0
        %1615 = vmatprep.subr.mxu0 0.0
        %1616 = vmatpush1.msra.mxu0 0.0
        %1617 = vmatprep.subr.mxu0 0.0
        %1618 = vmatpush1.msra.mxu0 0.0
        %1619 = vmatprep.subr.mxu0 0.0
        %1620 = vmatpush1.msra.mxu0 0.0
        %1621 = vmatprep.subr.mxu0 0.0
        %1622 = vmatpush1.msra.mxu0 0.0
        %1623 = vmatprep.subr.mxu0 0.0
        %1624 = vmatpush1.msra.mxu0 0.0
        %1625 = vmatprep.subr.mxu0 0.0
        %1626 = vmatpush1.msra.mxu0 0.0
        %1627 = vmatprep.subr.mxu0 0.0
        %1628 = vmatpush1.msra.mxu0 0.0
        %1629 = vmatprep.subr.mxu0 0.0
        %1630 = vmatpush1.msra.mxu0 0.0
        %1631 = vmatprep.subr.mxu0 0.0
        %1632 = vmatpush1.msra.mxu0 0.0
        %1633 = vmatprep.subr.mxu0 0.0
        %1634 = vmatpush1.msra.mxu0 0.0
        %1635 = vmatprep.subr.mxu0 0.0
        %1636 = vmatpush1.msra.mxu0 0.0
        %1637 = vmatprep.subr.mxu0 0.0
        %1638 = vmatpush1.msra.mxu0 0.0
        %1639 = vmatprep.subr.mxu0 0.0
        %1640 = vmatpush1.msra.mxu0 0.0
        %1641 = vmatprep.subr.mxu0 0.0
        %1642 = vmatpush1.msra.mxu0 0.0
        %1643 = vmatprep.subr.mxu0 0.0
        %1644 = vmatpush1.msra.mxu0 0.0
        %1645 = vmatprep.subr.mxu0 0.0
        %1646 = vmatpush1.msra.mxu0 0.0
        %1647 = vmatprep.subr.mxu0 0.0
        %1648 = vmatpush1.msra.mxu0 0.0
        %1649 = vmatprep.subr.mxu0 0.0
        %1650 = vmatpush1.msra.mxu0 0.0
        %1651 = vmatprep.mubr.f32.mxu0 0.0
        %1652 = vmatmul.mubr.f32.gmra.mrb[0].mxu0 %v1582
        %v1653 = vpop.f32.mrb[0].mxu0
        %v1654 = vadd.f32 %v1579, %v1653
        %v1655 = vpop.f32.mrb[0].mxu0
        %1656 = vmatprep.mubr.f32.mxu0 0.0
        %1657 = vmatmul.mubr.f32.gmra.mrb[0].mxu0 %v1585
        %v1658 = vpop.f32.mrb[0].mxu0
        %v1659 = vadd.f32 %v1579, %v1658
        %v1660 = vpop.f32.mrb[0].mxu0
        %1661 = vdwg.mxu0
        %v1662 = vadd.f32 %v1100, %v1654
        %v1663 = vadd.f32 %v1101, %v1659
        %v1664 = vld [vmem:[%s857] sm:$0x1]
        %v1665 = vld [vmem:[%s865] sm:$0x1]
        %v1666 = vsel %vm1113, %v1662, 0.0
        %1667 = vadd.xlane.f32.xlu0 %v1666
        %v1668 = vpop.xlane.xlu0 %1667
        %v1669 = vsel %vm1113, %v1663, 0.0
        %1670 = vadd.xlane.f32.xlu0 %v1669
        %v1671 = vpop.xlane.xlu0 %1670
        %v1672 = vrcp.pop 32.0
        %v1673 = vmul.f32 %v1668, %v1672
        %v1674 = vmul.f32 %v1671, %v1672
        %v1675 = vsub.f32 %v1662, %v1673
        %v1676 = vsub.f32 %v1663, %v1674
        %v1677 = vmul.f32 %v1675, %v1675
        %v1678 = vmul.f32 %v1676, %v1676
        %v1679 = vsel %vm1113, %v1677, 0.0
        %1680 = vadd.xlane.f32.xlu0 %v1679
        %v1681 = vpop.xlane.xlu0 %1680
        %v1682 = vsel %vm1113, %v1678, 0.0
        %1683 = vadd.xlane.f32.xlu0 %v1682
        %v1684 = vpop.xlane.xlu0 %1683
        %v1685 = vmul.f32 %v1681, %v1672
        %v1686 = vmul.f32 %v1684, %v1672
        %v1687 = vadd.f32 %v1685, 1e-05
        %v1688 = vadd.f32 %v1686, 1e-05
        %v1689 = vrsqrt.pop %v1687
        %v1690 = vrsqrt.pop %v1688
        %v1691 = vmul.f32 %v1675, %v1689
        %v1692 = vmul.f32 %v1676, %v1690
        %v1694 = vlaneseq
        %v1695 = vshrl.u32 %v1694, 7
        %v1696 = vsub.s32 0, %v1695
        %v1697 = vrot.slane %v1664, %v1696
        %v1699 = vmul.f32 %v1691, %v1697
        %v1700 = vmul.f32 %v1692, %v1697
        %v1702 = vlaneseq
        %v1703 = vshrl.u32 %v1702, 7
        %v1704 = vsub.s32 0, %v1703
        %v1705 = vrot.slane %v1665, %v1704
        %v1707 = vadd.f32 %v1699, %v1705
        %v1708 = vadd.f32 %v1700, %v1705
        %v1709 = vpack.c.bf16 %v1708, %v1707
        %v1710 = vld [vmem:[%s874] sm:$0xff]
        %v1711 = vld [vmem:[%s874 + $0x8] sm:$0xff]
        %v1712 = vld [vmem:[%s874 + $0x10] sm:$0xff]
        %v1713 = vld [vmem:[%s874 + $0x18] sm:$0xff]
        %v1714 = vld [vmem:[%s874 + $0x20] sm:$0xff]
        %v1715 = vld [vmem:[%s874 + $0x28] sm:$0xff]
        %v1716 = vld [vmem:[%s874 + $0x30] sm:$0xff]
        %v1717 = vld [vmem:[%s874 + $0x38] sm:$0xff]
        %v1718 = vld [vmem:[%s874 + $0x40] sm:$0xff]
        %v1719 = vld [vmem:[%s874 + $0x48] sm:$0xff]
        %v1720 = vld [vmem:[%s874 + $0x50] sm:$0xff]
        %v1721 = vld [vmem:[%s874 + $0x58] sm:$0xff]
        %v1722 = vld [vmem:[%s874 + $0x60] sm:$0xff]
        %v1723 = vld [vmem:[%s874 + $0x68] sm:$0xff]
        %v1724 = vld [vmem:[%s874 + $0x70] sm:$0xff]
        %v1725 = vld [vmem:[%s874 + $0x78] sm:$0xff]
        %v1726 = vld [vmem:[%s874 + $0x80] sm:$0xff]
        %v1727 = vld [vmem:[%s874 + $0x88] sm:$0xff]
        %v1728 = vld [vmem:[%s874 + $0x90] sm:$0xff]
        %v1729 = vld [vmem:[%s874 + $0x98] sm:$0xff]
        %v1730 = vld [vmem:[%s874 + $0xa0] sm:$0xff]
        %v1731 = vld [vmem:[%s874 + $0xa8] sm:$0xff]
        %v1732 = vld [vmem:[%s874 + $0xb0] sm:$0xff]
        %v1733 = vld [vmem:[%s874 + $0xb8] sm:$0xff]
        %v1734 = vld [vmem:[%s874 + $0xc0] sm:$0xff]
        %v1735 = vld [vmem:[%s874 + $0xc8] sm:$0xff]
        %v1736 = vld [vmem:[%s874 + $0xd0] sm:$0xff]
        %v1737 = vld [vmem:[%s874 + $0xd8] sm:$0xff]
        %v1738 = vld [vmem:[%s874 + $0xe0] sm:$0xff]
        %v1739 = vld [vmem:[%s874 + $0xe8] sm:$0xff]
        %v1740 = vld [vmem:[%s874 + $0xf0] sm:$0xff]
        %v1741 = vld [vmem:[%s874 + $0xf8] sm:$0xff]
        %v1742 = vld [vmem:[%s986] sm:$0xff]
        %v1743 = vld [vmem:[%s986 + $0x8] sm:$0xff]
        %v1746 = vlaneseq
        %v1747 = vshrl.u32 %v1746, 7
        %v1748 = vsub.s32 0, %v1747
        %v1749 = vrot.slane %v1742, %v1748
        %v1750 = vlaneseq
        %v1751 = vshrl.u32 %v1750, 7
        %v1752 = vsub.s32 1, %v1751
        %v1753 = vrot.slane %v1742, %v1752
        %v1754 = vlaneseq
        %v1755 = vshrl.u32 %v1754, 7
        %v1756 = vsub.s32 2, %v1755
        %v1757 = vrot.slane %v1742, %v1756
        %v1758 = vlaneseq
        %v1759 = vshrl.u32 %v1758, 7
        %v1760 = vsub.s32 3, %v1759
        %v1761 = vrot.slane %v1742, %v1760
        %v1762 = vlaneseq
        %v1763 = vshrl.u32 %v1762, 7
        %v1764 = vsub.s32 4, %v1763
        %v1765 = vrot.slane %v1742, %v1764
        %v1766 = vlaneseq
        %v1767 = vshrl.u32 %v1766, 7
        %v1768 = vsub.s32 5, %v1767
        %v1769 = vrot.slane %v1742, %v1768
        %v1770 = vlaneseq
        %v1771 = vshrl.u32 %v1770, 7
        %v1772 = vsub.s32 6, %v1771
        %v1773 = vrot.slane %v1742, %v1772
        %v1774 = vlaneseq
        %v1775 = vshrl.u32 %v1774, 7
        %v1776 = vsub.s32 7, %v1775
        %v1777 = vrot.slane %v1742, %v1776
        %v1778 = vlaneseq
        %v1779 = vshrl.u32 %v1778, 7
        %v1780 = vsub.s32 0, %v1779
        %v1781 = vrot.slane %v1743, %v1780
        %v1782 = vlaneseq
        %v1783 = vshrl.u32 %v1782, 7
        %v1784 = vsub.s32 1, %v1783
        %v1785 = vrot.slane %v1743, %v1784
        %v1786 = vlaneseq
        %v1787 = vshrl.u32 %v1786, 7
        %v1788 = vsub.s32 2, %v1787
        %v1789 = vrot.slane %v1743, %v1788
        %v1790 = vlaneseq
        %v1791 = vshrl.u32 %v1790, 7
        %v1792 = vsub.s32 3, %v1791
        %v1793 = vrot.slane %v1743, %v1792
        %v1794 = vlaneseq
        %v1795 = vshrl.u32 %v1794, 7
        %v1796 = vsub.s32 4, %v1795
        %v1797 = vrot.slane %v1743, %v1796
        %v1798 = vlaneseq
        %v1799 = vshrl.u32 %v1798, 7
        %v1800 = vsub.s32 5, %v1799
        %v1801 = vrot.slane %v1743, %v1800
        %v1802 = vlaneseq
        %v1803 = vshrl.u32 %v1802, 7
        %v1804 = vsub.s32 6, %v1803
        %v1805 = vrot.slane %v1743, %v1804
        %v1806 = vlaneseq
        %v1807 = vshrl.u32 %v1806, 7
        %v1808 = vsub.s32 7, %v1807
        %v1809 = vrot.slane %v1743, %v1808
        %v1858 = vunpack.c.l.b16 %v1710
        %v1859 = vunpack.c.h.b16 %v1710
        %v1860 = vunpack.c.l.b16 %v1711
        %v1861 = vunpack.c.h.b16 %v1711
        %v1862 = vunpack.c.l.b16 %v1712
        %v1863 = vunpack.c.h.b16 %v1712
        %v1864 = vunpack.c.l.b16 %v1713
        %v1865 = vunpack.c.h.b16 %v1713
        %v1866 = vunpack.c.l.b16 %v1714
        %v1867 = vunpack.c.h.b16 %v1714
        %v1868 = vunpack.c.l.b16 %v1715
        %v1869 = vunpack.c.h.b16 %v1715
        %v1870 = vunpack.c.l.b16 %v1716
        %v1871 = vunpack.c.h.b16 %v1716
        %v1872 = vunpack.c.l.b16 %v1717
        %v1873 = vunpack.c.h.b16 %v1717
        %v1874 = vunpack.c.l.b16 %v1718
        %v1875 = vunpack.c.h.b16 %v1718
        %v1876 = vunpack.c.l.b16 %v1719
        %v1877 = vunpack.c.h.b16 %v1719
        %v1878 = vunpack.c.l.b16 %v1720
        %v1879 = vunpack.c.h.b16 %v1720
        %v1880 = vunpack.c.l.b16 %v1721
        %v1881 = vunpack.c.h.b16 %v1721
        %v1882 = vunpack.c.l.b16 %v1722
        %v1883 = vunpack.c.h.b16 %v1722
        %v1884 = vunpack.c.l.b16 %v1723
        %v1885 = vunpack.c.h.b16 %v1723
        %v1886 = vunpack.c.l.b16 %v1724
        %v1887 = vunpack.c.h.b16 %v1724
        %v1888 = vunpack.c.l.b16 %v1725
        %v1889 = vunpack.c.h.b16 %v1725
        %v1890 = vunpack.c.l.b16 %v1726
        %v1891 = vunpack.c.h.b16 %v1726
        %v1892 = vunpack.c.l.b16 %v1727
        %v1893 = vunpack.c.h.b16 %v1727
        %v1894 = vunpack.c.l.b16 %v1728
        %v1895 = vunpack.c.h.b16 %v1728
        %v1896 = vunpack.c.l.b16 %v1729
        %v1897 = vunpack.c.h.b16 %v1729
        %v1898 = vunpack.c.l.b16 %v1730
        %v1899 = vunpack.c.h.b16 %v1730
        %v1900 = vunpack.c.l.b16 %v1731
        %v1901 = vunpack.c.h.b16 %v1731
        %v1902 = vunpack.c.l.b16 %v1732
        %v1903 = vunpack.c.h.b16 %v1732
        %v1904 = vunpack.c.l.b16 %v1733
        %v1905 = vunpack.c.h.b16 %v1733
        %v1906 = vunpack.c.l.b16 %v1734
        %v1907 = vunpack.c.h.b16 %v1734
        %v1908 = vunpack.c.l.b16 %v1735
        %v1909 = vunpack.c.h.b16 %v1735
        %v1910 = vunpack.c.l.b16 %v1736
        %v1911 = vunpack.c.h.b16 %v1736
        %v1912 = vunpack.c.l.b16 %v1737
        %v1913 = vunpack.c.h.b16 %v1737
        %v1914 = vunpack.c.l.b16 %v1738
        %v1915 = vunpack.c.h.b16 %v1738
        %v1916 = vunpack.c.l.b16 %v1739
        %v1917 = vunpack.c.h.b16 %v1739
        %v1918 = vunpack.c.l.b16 %v1740
        %v1919 = vunpack.c.h.b16 %v1740
        %v1920 = vunpack.c.l.b16 %v1741
        %v1921 = vunpack.c.h.b16 %v1741
        %v1922 = vpack.c.b16 %v1874, %v1858
        %v1923 = vpack.c.b16 %v1875, %v1859
        %v1924 = vpack.c.b16 %v1876, %v1860
        %v1925 = vpack.c.b16 %v1877, %v1861
        %v1926 = vpack.c.b16 %v1878, %v1862
        %v1927 = vpack.c.b16 %v1879, %v1863
        %v1928 = vpack.c.b16 %v1880, %v1864
        %v1929 = vpack.c.b16 %v1881, %v1865
        %v1930 = vpack.c.b16 %v1882, %v1866
        %v1931 = vpack.c.b16 %v1883, %v1867
        %v1932 = vpack.c.b16 %v1884, %v1868
        %v1933 = vpack.c.b16 %v1885, %v1869
        %v1934 = vpack.c.b16 %v1886, %v1870
        %v1935 = vpack.c.b16 %v1887, %v1871
        %v1936 = vpack.c.b16 %v1888, %v1872
        %v1937 = vpack.c.b16 %v1889, %v1873
        %v1938 = vpack.c.b16 %v1906, %v1890
        %v1939 = vpack.c.b16 %v1907, %v1891
        %v1940 = vpack.c.b16 %v1908, %v1892
        %v1941 = vpack.c.b16 %v1909, %v1893
        %v1942 = vpack.c.b16 %v1910, %v1894
        %v1943 = vpack.c.b16 %v1911, %v1895
        %v1944 = vpack.c.b16 %v1912, %v1896
        %v1945 = vpack.c.b16 %v1913, %v1897
        %v1946 = vpack.c.b16 %v1914, %v1898
        %v1947 = vpack.c.b16 %v1915, %v1899
        %v1948 = vpack.c.b16 %v1916, %v1900
        %v1949 = vpack.c.b16 %v1917, %v1901
        %v1950 = vpack.c.b16 %v1918, %v1902
        %v1951 = vpack.c.b16 %v1919, %v1903
        %v1952 = vpack.c.b16 %v1920, %v1904
        %v1953 = vpack.c.b16 %v1921, %v1905
        %v1987 = vsel %vm1113, %v1709, 0
        %1989 = vmatprep.subr.bf16.mxu0 %v1923
        %1990 = vmatpush1.bf16.msra.mxu0 %v1922
        %1991 = vmatprep.subr.bf16.mxu0 %v1939
        %1992 = vmatpush1.bf16.msra.mxu0 %v1938
        %1993 = vmatprep.subr.bf16.mxu0 0
        %1994 = vmatpush1.bf16.msra.mxu0 0
        %1995 = vmatprep.subr.bf16.mxu0 0
        %1996 = vmatpush1.bf16.msra.mxu0 0
        %1997 = vmatprep.subr.bf16.mxu0 0
        %1998 = vmatpush1.bf16.msra.mxu0 0
        %1999 = vmatprep.subr.bf16.mxu0 0
        %2000 = vmatpush1.bf16.msra.mxu0 0
        %2001 = vmatprep.subr.bf16.mxu0 0
        %2002 = vmatpush1.bf16.msra.mxu0 0
        %2003 = vmatprep.subr.bf16.mxu0 0
        %2004 = vmatpush1.bf16.msra.mxu0 0
        %2005 = vmatprep.subr.bf16.mxu0 0
        %2006 = vmatpush1.bf16.msra.mxu0 0
        %2007 = vmatprep.subr.bf16.mxu0 0
        %2008 = vmatpush1.bf16.msra.mxu0 0
        %2009 = vmatprep.subr.bf16.mxu0 0
        %2010 = vmatpush1.bf16.msra.mxu0 0
        %2011 = vmatprep.subr.bf16.mxu0 0
        %2012 = vmatpush1.bf16.msra.mxu0 0
        %2013 = vmatprep.subr.bf16.mxu0 0
        %2014 = vmatpush1.bf16.msra.mxu0 0
        %2015 = vmatprep.subr.bf16.mxu0 0
        %2016 = vmatpush1.bf16.msra.mxu0 0
        %2017 = vmatprep.subr.bf16.mxu0 0
        %2018 = vmatpush1.bf16.msra.mxu0 0
        %2019 = vmatprep.subr.bf16.mxu0 0
        %2020 = vmatpush1.bf16.msra.mxu0 0
        %2021 = vmatprep.mubr.bf16.mxu0 0
        %2022 = vmatmul.mubr.bf16.gmra.mrb[0].mxu0 %v1987
        %v2023 = vpop.f32.mrb[0].mxu0
        %v2024 = vadd.f32 %v1749, %v2023
        %v2025 = vpop.f32.mrb[0].mxu0
        %v2026 = vadd.f32 %v1753, %v2025
        %v2027 = vpop.f32.mrb[0].mxu0
        %v2028 = vadd.f32 %v1749, %v2027
        %v2029 = vpop.f32.mrb[0].mxu0
        %v2030 = vadd.f32 %v1753, %v2029
        %2031 = vdwg.mxu0
        %2032 = vmatprep.subr.bf16.mxu0 %v1925
        %2033 = vmatpush1.bf16.msra.mxu0 %v1924
        %2034 = vmatprep.subr.bf16.mxu0 %v1941
        %2035 = vmatpush1.bf16.msra.mxu0 %v1940
        %2036 = vmatprep.subr.bf16.mxu0 0
        %2037 = vmatpush1.bf16.msra.mxu0 0
        %2038 = vmatprep.subr.bf16.mxu0 0
        %2039 = vmatpush1.bf16.msra.mxu0 0
        %2040 = vmatprep.subr.bf16.mxu0 0
        %2041 = vmatpush1.bf16.msra.mxu0 0
        %2042 = vmatprep.subr.bf16.mxu0 0
        %2043 = vmatpush1.bf16.msra.mxu0 0
        %2044 = vmatprep.subr.bf16.mxu0 0
        %2045 = vmatpush1.bf16.msra.mxu0 0
        %2046 = vmatprep.subr.bf16.mxu0 0
        %2047 = vmatpush1.bf16.msra.mxu0 0
        %2048 = vmatprep.subr.bf16.mxu0 0
        %2049 = vmatpush1.bf16.msra.mxu0 0
        %2050 = vmatprep.subr.bf16.mxu0 0
        %2051 = vmatpush1.bf16.msra.mxu0 0
        %2052 = vmatprep.subr.bf16.mxu0 0
        %2053 = vmatpush1.bf16.msra.mxu0 0
        %2054 = vmatprep.subr.bf16.mxu0 0
        %2055 = vmatpush1.bf16.msra.mxu0 0
        %2056 = vmatprep.subr.bf16.mxu0 0
        %2057 = vmatpush1.bf16.msra.mxu0 0
        %2058 = vmatprep.subr.bf16.mxu0 0
        %2059 = vmatpush1.bf16.msra.mxu0 0
        %2060 = vmatprep.subr.bf16.mxu0 0
        %2061 = vmatpush1.bf16.msra.mxu0 0
        %2062 = vmatprep.subr.bf16.mxu0 0
        %2063 = vmatpush1.bf16.msra.mxu0 0
        %2064 = vmatprep.mubr.bf16.mxu0 0
        %2065 = vmatmul.mubr.bf16.gmra.mrb[0].mxu0 %v1987
        %v2066 = vpop.f32.mrb[0].mxu0
        %v2067 = vadd.f32 %v1757, %v2066
        %v2068 = vpop.f32.mrb[0].mxu0
        %v2069 = vadd.f32 %v1761, %v2068
        %v2070 = vpop.f32.mrb[0].mxu0
        %v2071 = vadd.f32 %v1757, %v2070
        %v2072 = vpop.f32.mrb[0].mxu0
        %v2073 = vadd.f32 %v1761, %v2072
        %2074 = vdwg.mxu0
        %2075 = vmatprep.subr.bf16.mxu0 %v1927
        %2076 = vmatpush1.bf16.msra.mxu0 %v1926
        %2077 = vmatprep.subr.bf16.mxu0 %v1943
        %2078 = vmatpush1.bf16.msra.mxu0 %v1942
        %2079 = vmatprep.subr.bf16.mxu0 0
        %2080 = vmatpush1.bf16.msra.mxu0 0
        %2081 = vmatprep.subr.bf16.mxu0 0
        %2082 = vmatpush1.bf16.msra.mxu0 0
        %2083 = vmatprep.subr.bf16.mxu0 0
        %2084 = vmatpush1.bf16.msra.mxu0 0
        %2085 = vmatprep.subr.bf16.mxu0 0
        %2086 = vmatpush1.bf16.msra.mxu0 0
        %2087 = vmatprep.subr.bf16.mxu0 0
        %2088 = vmatpush1.bf16.msra.mxu0 0
        %2089 = vmatprep.subr.bf16.mxu0 0
        %2090 = vmatpush1.bf16.msra.mxu0 0
        %2091 = vmatprep.subr.bf16.mxu0 0
        %2092 = vmatpush1.bf16.msra.mxu0 0
        %2093 = vmatprep.subr.bf16.mxu0 0
        %2094 = vmatpush1.bf16.msra.mxu0 0
        %2095 = vmatprep.subr.bf16.mxu0 0
        %2096 = vmatpush1.bf16.msra.mxu0 0
        %2097 = vmatprep.subr.bf16.mxu0 0
        %2098 = vmatpush1.bf16.msra.mxu0 0
        %2099 = vmatprep.subr.bf16.mxu0 0
        %2100 = vmatpush1.bf16.msra.mxu0 0
        %2101 = vmatprep.subr.bf16.mxu0 0
        %2102 = vmatpush1.bf16.msra.mxu0 0
        %2103 = vmatprep.subr.bf16.mxu0 0
        %2104 = vmatpush1.bf16.msra.mxu0 0
        %2105 = vmatprep.subr.bf16.mxu0 0
        %2106 = vmatpush1.bf16.msra.mxu0 0
        %2107 = vmatprep.mubr.bf16.mxu0 0
        %2108 = vmatmul.mubr.bf16.gmra.mrb[0].mxu0 %v1987
        %v2109 = vpop.f32.mrb[0].mxu0
        %v2110 = vadd.f32 %v1765, %v2109
        %v2111 = vpop.f32.mrb[0].mxu0
        %v2112 = vadd.f32 %v1769, %v2111
        %v2113 = vpop.f32.mrb[0].mxu0
        %v2114 = vadd.f32 %v1765, %v2113
        %v2115 = vpop.f32.mrb[0].mxu0
        %v2116 = vadd.f32 %v1769, %v2115
        %2117 = vdwg.mxu0
        %2118 = vmatprep.subr.bf16.mxu0 %v1929
        %2119 = vmatpush1.bf16.msra.mxu0 %v1928
        %2120 = vmatprep.subr.bf16.mxu0 %v1945
        %2121 = vmatpush1.bf16.msra.mxu0 %v1944
        %2122 = vmatprep.subr.bf16.mxu0 0
        %2123 = vmatpush1.bf16.msra.mxu0 0
        %2124 = vmatprep.subr.bf16.mxu0 0
        %2125 = vmatpush1.bf16.msra.mxu0 0
        %2126 = vmatprep.subr.bf16.mxu0 0
        %2127 = vmatpush1.bf16.msra.mxu0 0
        %2128 = vmatprep.subr.bf16.mxu0 0
        %2129 = vmatpush1.bf16.msra.mxu0 0
        %2130 = vmatprep.subr.bf16.mxu0 0
        %2131 = vmatpush1.bf16.msra.mxu0 0
        %2132 = vmatprep.subr.bf16.mxu0 0
        %2133 = vmatpush1.bf16.msra.mxu0 0
        %2134 = vmatprep.subr.bf16.mxu0 0
        %2135 = vmatpush1.bf16.msra.mxu0 0
        %2136 = vmatprep.subr.bf16.mxu0 0
        %2137 = vmatpush1.bf16.msra.mxu0 0
        %2138 = vmatprep.subr.bf16.mxu0 0
        %2139 = vmatpush1.bf16.msra.mxu0 0
        %2140 = vmatprep.subr.bf16.mxu0 0
        %2141 = vmatpush1.bf16.msra.mxu0 0
        %2142 = vmatprep.subr.bf16.mxu0 0
        %2143 = vmatpush1.bf16.msra.mxu0 0
        %2144 = vmatprep.subr.bf16.mxu0 0
        %2145 = vmatpush1.bf16.msra.mxu0 0
        %2146 = vmatprep.subr.bf16.mxu0 0
        %2147 = vmatpush1.bf16.msra.mxu0 0
        %2148 = vmatprep.subr.bf16.mxu0 0
        %2149 = vmatpush1.bf16.msra.mxu0 0
        %2150 = vmatprep.mubr.bf16.mxu0 0
        %2151 = vmatmul.mubr.bf16.gmra.mrb[0].mxu0 %v1987
        %v2152 = vpop.f32.mrb[0].mxu0
        %v2153 = vadd.f32 %v1773, %v2152
        %v2154 = vpop.f32.mrb[0].mxu0
        %v2155 = vadd.f32 %v1777, %v2154
        %v2156 = vpop.f32.mrb[0].mxu0
        %v2157 = vadd.f32 %v1773, %v2156
        %v2158 = vpop.f32.mrb[0].mxu0
        %v2159 = vadd.f32 %v1777, %v2158
        %2160 = vdwg.mxu0
        %2161 = vmatprep.subr.bf16.mxu0 %v1931
        %2162 = vmatpush1.bf16.msra.mxu0 %v1930
        %2163 = vmatprep.subr.bf16.mxu0 %v1947
        %2164 = vmatpush1.bf16.msra.mxu0 %v1946
        %2165 = vmatprep.subr.bf16.mxu0 0
        %2166 = vmatpush1.bf16.msra.mxu0 0
        %2167 = vmatprep.subr.bf16.mxu0 0
        %2168 = vmatpush1.bf16.msra.mxu0 0
        %2169 = vmatprep.subr.bf16.mxu0 0
        %2170 = vmatpush1.bf16.msra.mxu0 0
        %2171 = vmatprep.subr.bf16.mxu0 0
        %2172 = vmatpush1.bf16.msra.mxu0 0
        %2173 = vmatprep.subr.bf16.mxu0 0
        %2174 = vmatpush1.bf16.msra.mxu0 0
        %2175 = vmatprep.subr.bf16.mxu0 0
        %2176 = vmatpush1.bf16.msra.mxu0 0
        %2177 = vmatprep.subr.bf16.mxu0 0
        %2178 = vmatpush1.bf16.msra.mxu0 0
        %2179 = vmatprep.subr.bf16.mxu0 0
        %2180 = vmatpush1.bf16.msra.mxu0 0
        %2181 = vmatprep.subr.bf16.mxu0 0
        %2182 = vmatpush1.bf16.msra.mxu0 0
        %2183 = vmatprep.subr.bf16.mxu0 0
        %2184 = vmatpush1.bf16.msra.mxu0 0
        %2185 = vmatprep.subr.bf16.mxu0 0
        %2186 = vmatpush1.bf16.msra.mxu0 0
        %2187 = vmatprep.subr.bf16.mxu0 0
        %2188 = vmatpush1.bf16.msra.mxu0 0
        %2189 = vmatprep.subr.bf16.mxu0 0
        %2190 = vmatpush1.bf16.msra.mxu0 0
        %2191 = vmatprep.subr.bf16.mxu0 0
        %2192 = vmatpush1.bf16.msra.mxu0 0
        %2193 = vmatprep.mubr.bf16.mxu0 0
        %2194 = vmatmul.mubr.bf16.gmra.mrb[0].mxu0 %v1987
        %v2195 = vpop.f32.mrb[0].mxu0
        %v2196 = vadd.f32 %v1781, %v2195
        %v2197 = vpop.f32.mrb[0].mxu0
        %v2198 = vadd.f32 %v1785, %v2197
        %v2199 = vpop.f32.mrb[0].mxu0
        %v2200 = vadd.f32 %v1781, %v2199
        %v2201 = vpop.f32.mrb[0].mxu0
        %v2202 = vadd.f32 %v1785, %v2201
        %2203 = vdwg.mxu0
        %2204 = vmatprep.subr.bf16.mxu0 %v1933
        %2205 = vmatpush1.bf16.msra.mxu0 %v1932
        %2206 = vmatprep.subr.bf16.mxu0 %v1949
        %2207 = vmatpush1.bf16.msra.mxu0 %v1948
        %2208 = vmatprep.subr.bf16.mxu0 0
        %2209 = vmatpush1.bf16.msra.mxu0 0
        %2210 = vmatprep.subr.bf16.mxu0 0
        %2211 = vmatpush1.bf16.msra.mxu0 0
        %2212 = vmatprep.subr.bf16.mxu0 0
        %2213 = vmatpush1.bf16.msra.mxu0 0
        %2214 = vmatprep.subr.bf16.mxu0 0
        %2215 = vmatpush1.bf16.msra.mxu0 0
        %2216 = vmatprep.subr.bf16.mxu0 0
        %2217 = vmatpush1.bf16.msra.mxu0 0
        %2218 = vmatprep.subr.bf16.mxu0 0
        %2219 = vmatpush1.bf16.msra.mxu0 0
        %2220 = vmatprep.subr.bf16.mxu0 0
        %2221 = vmatpush1.bf16.msra.mxu0 0
        %2222 = vmatprep.subr.bf16.mxu0 0
        %2223 = vmatpush1.bf16.msra.mxu0 0
        %2224 = vmatprep.subr.bf16.mxu0 0
        %2225 = vmatpush1.bf16.msra.mxu0 0
        %2226 = vmatprep.subr.bf16.mxu0 0
        %2227 = vmatpush1.bf16.msra.mxu0 0
        %2228 = vmatprep.subr.bf16.mxu0 0
        %2229 = vmatpush1.bf16.msra.mxu0 0
        %2230 = vmatprep.subr.bf16.mxu0 0
        %2231 = vmatpush1.bf16.msra.mxu0 0
        %2232 = vmatprep.subr.bf16.mxu0 0
        %2233 = vmatpush1.bf16.msra.mxu0 0
        %2234 = vmatprep.subr.bf16.mxu0 0
        %2235 = vmatpush1.bf16.msra.mxu0 0
        %2236 = vmatprep.mubr.bf16.mxu0 0
        %2237 = vmatmul.mubr.bf16.gmra.mrb[0].mxu0 %v1987
        %v2238 = vpop.f32.mrb[0].mxu0
        %v2239 = vadd.f32 %v1789, %v2238
        %v2240 = vpop.f32.mrb[0].mxu0
        %v2241 = vadd.f32 %v1793, %v2240
        %v2242 = vpop.f32.mrb[0].mxu0
        %v2243 = vadd.f32 %v1789, %v2242
        %v2244 = vpop.f32.mrb[0].mxu0
        %v2245 = vadd.f32 %v1793, %v2244
        %2246 = vdwg.mxu0
        %2247 = vmatprep.subr.bf16.mxu0 %v1935
        %2248 = vmatpush1.bf16.msra.mxu0 %v1934
        %2249 = vmatprep.subr.bf16.mxu0 %v1951
        %2250 = vmatpush1.bf16.msra.mxu0 %v1950
        %2251 = vmatprep.subr.bf16.mxu0 0
        %2252 = vmatpush1.bf16.msra.mxu0 0
        %2253 = vmatprep.subr.bf16.mxu0 0
        %2254 = vmatpush1.bf16.msra.mxu0 0
        %2255 = vmatprep.subr.bf16.mxu0 0
        %2256 = vmatpush1.bf16.msra.mxu0 0
        %2257 = vmatprep.subr.bf16.mxu0 0
        %2258 = vmatpush1.bf16.msra.mxu0 0
        %2259 = vmatprep.subr.bf16.mxu0 0
        %2260 = vmatpush1.bf16.msra.mxu0 0
        %2261 = vmatprep.subr.bf16.mxu0 0
        %2262 = vmatpush1.bf16.msra.mxu0 0
        %2263 = vmatprep.subr.bf16.mxu0 0
        %2264 = vmatpush1.bf16.msra.mxu0 0
        %2265 = vmatprep.subr.bf16.mxu0 0
        %2266 = vmatpush1.bf16.msra.mxu0 0
        %2267 = vmatprep.subr.bf16.mxu0 0
        %2268 = vmatpush1.bf16.msra.mxu0 0
        %2269 = vmatprep.subr.bf16.mxu0 0
        %2270 = vmatpush1.bf16.msra.mxu0 0
        %2271 = vmatprep.subr.bf16.mxu0 0
        %2272 = vmatpush1.bf16.msra.mxu0 0
        %2273 = vmatprep.subr.bf16.mxu0 0
        %2274 = vmatpush1.bf16.msra.mxu0 0
        %2275 = vmatprep.subr.bf16.mxu0 0
        %2276 = vmatpush1.bf16.msra.mxu0 0
        %2277 = vmatprep.subr.bf16.mxu0 0
        %2278 = vmatpush1.bf16.msra.mxu0 0
        %2279 = vmatprep.mubr.bf16.mxu0 0
        %2280 = vmatmul.mubr.bf16.gmra.mrb[0].mxu0 %v1987
        %v2281 = vpop.f32.mrb[0].mxu0
        %v2282 = vadd.f32 %v1797, %v2281
        %v2283 = vpop.f32.mrb[0].mxu0
        %v2284 = vadd.f32 %v1801, %v2283
        %v2285 = vpop.f32.mrb[0].mxu0
        %v2286 = vadd.f32 %v1797, %v2285
        %v2287 = vpop.f32.mrb[0].mxu0
        %v2288 = vadd.f32 %v1801, %v2287
        %2289 = vdwg.mxu0
        %2290 = vmatprep.subr.bf16.mxu0 %v1937
        %2291 = vmatpush1.bf16.msra.mxu0 %v1936
        %2292 = vmatprep.subr.bf16.mxu0 %v1953
        %2293 = vmatpush1.bf16.msra.mxu0 %v1952
        %2294 = vmatprep.subr.bf16.mxu0 0
        %2295 = vmatpush1.bf16.msra.mxu0 0
        %2296 = vmatprep.subr.bf16.mxu0 0
        %2297 = vmatpush1.bf16.msra.mxu0 0
        %2298 = vmatprep.subr.bf16.mxu0 0
        %2299 = vmatpush1.bf16.msra.mxu0 0
        %2300 = vmatprep.subr.bf16.mxu0 0
        %2301 = vmatpush1.bf16.msra.mxu0 0
        %2302 = vmatprep.subr.bf16.mxu0 0
        %2303 = vmatpush1.bf16.msra.mxu0 0
        %2304 = vmatprep.subr.bf16.mxu0 0
        %2305 = vmatpush1.bf16.msra.mxu0 0
        %2306 = vmatprep.subr.bf16.mxu0 0
        %2307 = vmatpush1.bf16.msra.mxu0 0
        %2308 = vmatprep.subr.bf16.mxu0 0
        %2309 = vmatpush1.bf16.msra.mxu0 0
        %2310 = vmatprep.subr.bf16.mxu0 0
        %2311 = vmatpush1.bf16.msra.mxu0 0
        %2312 = vmatprep.subr.bf16.mxu0 0
        %2313 = vmatpush1.bf16.msra.mxu0 0
        %2314 = vmatprep.subr.bf16.mxu0 0
        %2315 = vmatpush1.bf16.msra.mxu0 0
        %2316 = vmatprep.subr.bf16.mxu0 0
        %2317 = vmatpush1.bf16.msra.mxu0 0
        %2318 = vmatprep.subr.bf16.mxu0 0
        %2319 = vmatpush1.bf16.msra.mxu0 0
        %2320 = vmatprep.subr.bf16.mxu0 0
        %2321 = vmatpush1.bf16.msra.mxu0 0
        %2322 = vmatprep.mubr.bf16.mxu0 0
        %2323 = vmatmul.mubr.bf16.gmra.mrb[0].mxu0 %v1987
        %v2324 = vpop.f32.mrb[0].mxu0
        %v2325 = vadd.f32 %v1805, %v2324
        %v2326 = vpop.f32.mrb[0].mxu0
        %v2327 = vadd.f32 %v1809, %v2326
        %v2328 = vpop.f32.mrb[0].mxu0
        %v2329 = vadd.f32 %v1805, %v2328
        %v2330 = vpop.f32.mrb[0].mxu0
        %v2331 = vadd.f32 %v1809, %v2330
        %2332 = vdwg.mxu0
        %v2333 = vmax.f32 %v2024, 0.0
        %v2334 = vmax.f32 %v2026, 0.0
        %v2335 = vmax.f32 %v2067, 0.0
        %v2336 = vmax.f32 %v2069, 0.0
        %v2337 = vmax.f32 %v2110, 0.0
        %v2338 = vmax.f32 %v2112, 0.0
        %v2339 = vmax.f32 %v2153, 0.0
        %v2340 = vmax.f32 %v2155, 0.0
        %v2341 = vmax.f32 %v2196, 0.0
        %v2342 = vmax.f32 %v2198, 0.0
        %v2343 = vmax.f32 %v2239, 0.0
        %v2344 = vmax.f32 %v2241, 0.0
        %v2345 = vmax.f32 %v2282, 0.0
        %v2346 = vmax.f32 %v2284, 0.0
        %v2347 = vmax.f32 %v2325, 0.0
        %v2348 = vmax.f32 %v2327, 0.0
        %v2349 = vmax.f32 %v2028, 0.0
        %v2350 = vmax.f32 %v2030, 0.0
        %v2351 = vmax.f32 %v2071, 0.0
        %v2352 = vmax.f32 %v2073, 0.0
        %v2353 = vmax.f32 %v2114, 0.0
        %v2354 = vmax.f32 %v2116, 0.0
        %v2355 = vmax.f32 %v2157, 0.0
        %v2356 = vmax.f32 %v2159, 0.0
        %v2357 = vmax.f32 %v2200, 0.0
        %v2358 = vmax.f32 %v2202, 0.0
        %v2359 = vmax.f32 %v2243, 0.0
        %v2360 = vmax.f32 %v2245, 0.0
        %v2361 = vmax.f32 %v2286, 0.0
        %v2362 = vmax.f32 %v2288, 0.0
        %v2363 = vmax.f32 %v2329, 0.0
        %v2364 = vmax.f32 %v2331, 0.0
        %v2365 = vpack.c.bf16 %v2349, %v2333
        %v2366 = vpack.c.bf16 %v2350, %v2334
        %v2367 = vpack.c.bf16 %v2351, %v2335
        %v2368 = vpack.c.bf16 %v2352, %v2336
        %v2369 = vpack.c.bf16 %v2353, %v2337
        %v2370 = vpack.c.bf16 %v2354, %v2338
        %v2371 = vpack.c.bf16 %v2355, %v2339
        %v2372 = vpack.c.bf16 %v2356, %v2340
        %v2373 = vpack.c.bf16 %v2357, %v2341
        %v2374 = vpack.c.bf16 %v2358, %v2342
        %v2375 = vpack.c.bf16 %v2359, %v2343
        %v2376 = vpack.c.bf16 %v2360, %v2344
        %v2377 = vpack.c.bf16 %v2361, %v2345
        %v2378 = vpack.c.bf16 %v2362, %v2346
        %v2379 = vpack.c.bf16 %v2363, %v2347
        %v2380 = vpack.c.bf16 %v2364, %v2348
        %v2381 = vld [vmem:[%s883] sm:$0xff]
        %v2382 = vld [vmem:[%s883 + $0x8] sm:$0xff]
        %v2383 = vld [vmem:[%s883 + $0x10] sm:$0xff]
        %v2384 = vld [vmem:[%s883 + $0x18] sm:$0xff]
        %v2385 = vld [vmem:[%s883 + $0x20] sm:$0xff]
        %v2386 = vld [vmem:[%s883 + $0x28] sm:$0xff]
        %v2387 = vld [vmem:[%s883 + $0x30] sm:$0xff]
        %v2388 = vld [vmem:[%s883 + $0x38] sm:$0xff]
        %v2389 = vld [vmem:[%s883 + $0x40] sm:$0xff]
        %v2390 = vld [vmem:[%s883 + $0x48] sm:$0xff]
        %v2391 = vld [vmem:[%s883 + $0x50] sm:$0xff]
        %v2392 = vld [vmem:[%s883 + $0x58] sm:$0xff]
        %v2393 = vld [vmem:[%s883 + $0x60] sm:$0xff]
        %v2394 = vld [vmem:[%s883 + $0x68] sm:$0xff]
        %v2395 = vld [vmem:[%s883 + $0x70] sm:$0xff]
        %v2396 = vld [vmem:[%s883 + $0x78] sm:$0xff]
        %v2397 = vld [vmem:[%s883 + $0x80] sm:$0xff]
        %v2398 = vld [vmem:[%s883 + $0x88] sm:$0xff]
        %v2399 = vld [vmem:[%s883 + $0x90] sm:$0xff]
        %v2400 = vld [vmem:[%s883 + $0x98] sm:$0xff]
        %v2401 = vld [vmem:[%s883 + $0xa0] sm:$0xff]
        %v2402 = vld [vmem:[%s883 + $0xa8] sm:$0xff]
        %v2403 = vld [vmem:[%s883 + $0xb0] sm:$0xff]
        %v2404 = vld [vmem:[%s883 + $0xb8] sm:$0xff]
        %v2405 = vld [vmem:[%s883 + $0xc0] sm:$0xff]
        %v2406 = vld [vmem:[%s883 + $0xc8] sm:$0xff]
        %v2407 = vld [vmem:[%s883 + $0xd0] sm:$0xff]
        %v2408 = vld [vmem:[%s883 + $0xd8] sm:$0xff]
        %v2409 = vld [vmem:[%s883 + $0xe0] sm:$0xff]
        %v2410 = vld [vmem:[%s883 + $0xe8] sm:$0xff]
        %v2411 = vld [vmem:[%s883 + $0xf0] sm:$0xff]
        %v2412 = vld [vmem:[%s883 + $0xf8] sm:$0xff]
        %v2413 = vld [vmem:[%s989] sm:$0x1]
        %v2415 = vlaneseq
        %v2416 = vshrl.u32 %v2415, 7
        %v2417 = vsub.s32 0, %v2416
        %v2418 = vrot.slane %v2413, %v2417
        %v2452 = vunpack.c.l.b16 %v2381
        %v2453 = vunpack.c.h.b16 %v2381
        %v2454 = vunpack.c.l.b16 %v2382
        %v2455 = vunpack.c.h.b16 %v2382
        %v2456 = vunpack.c.l.b16 %v2383
        %v2457 = vunpack.c.h.b16 %v2383
        %v2458 = vunpack.c.l.b16 %v2384
        %v2459 = vunpack.c.h.b16 %v2384
        %v2460 = vunpack.c.l.b16 %v2385
        %v2461 = vunpack.c.h.b16 %v2385
        %v2462 = vunpack.c.l.b16 %v2386
        %v2463 = vunpack.c.h.b16 %v2386
        %v2464 = vunpack.c.l.b16 %v2387
        %v2465 = vunpack.c.h.b16 %v2387
        %v2466 = vunpack.c.l.b16 %v2388
        %v2467 = vunpack.c.h.b16 %v2388
        %v2468 = vunpack.c.l.b16 %v2389
        %v2469 = vunpack.c.h.b16 %v2389
        %v2470 = vunpack.c.l.b16 %v2390
        %v2471 = vunpack.c.h.b16 %v2390
        %v2472 = vunpack.c.l.b16 %v2391
        %v2473 = vunpack.c.h.b16 %v2391
        %v2474 = vunpack.c.l.b16 %v2392
        %v2475 = vunpack.c.h.b16 %v2392
        %v2476 = vunpack.c.l.b16 %v2393
        %v2477 = vunpack.c.h.b16 %v2393
        %v2478 = vunpack.c.l.b16 %v2394
        %v2479 = vunpack.c.h.b16 %v2394
        %v2480 = vunpack.c.l.b16 %v2395
        %v2481 = vunpack.c.h.b16 %v2395
        %v2482 = vunpack.c.l.b16 %v2396
        %v2483 = vunpack.c.h.b16 %v2396
        %v2484 = vunpack.c.l.b16 %v2397
        %v2485 = vunpack.c.h.b16 %v2397
        %v2486 = vunpack.c.l.b16 %v2398
        %v2487 = vunpack.c.h.b16 %v2398
        %v2488 = vunpack.c.l.b16 %v2399
        %v2489 = vunpack.c.h.b16 %v2399
        %v2490 = vunpack.c.l.b16 %v2400
        %v2491 = vunpack.c.h.b16 %v2400
        %v2492 = vunpack.c.l.b16 %v2401
        %v2493 = vunpack.c.h.b16 %v2401
        %v2494 = vunpack.c.l.b16 %v2402
        %v2495 = vunpack.c.h.b16 %v2402
        %v2496 = vunpack.c.l.b16 %v2403
        %v2497 = vunpack.c.h.b16 %v2403
        %v2498 = vunpack.c.l.b16 %v2404
        %v2499 = vunpack.c.h.b16 %v2404
        %v2500 = vunpack.c.l.b16 %v2405
        %v2501 = vunpack.c.h.b16 %v2405
        %v2502 = vunpack.c.l.b16 %v2406
        %v2503 = vunpack.c.h.b16 %v2406
        %v2504 = vunpack.c.l.b16 %v2407
        %v2505 = vunpack.c.h.b16 %v2407
        %v2506 = vunpack.c.l.b16 %v2408
        %v2507 = vunpack.c.h.b16 %v2408
        %v2508 = vunpack.c.l.b16 %v2409
        %v2509 = vunpack.c.h.b16 %v2409
        %v2510 = vunpack.c.l.b16 %v2410
        %v2511 = vunpack.c.h.b16 %v2410
        %v2512 = vunpack.c.l.b16 %v2411
        %v2513 = vunpack.c.h.b16 %v2411
        %v2514 = vunpack.c.l.b16 %v2412
        %v2515 = vunpack.c.h.b16 %v2412
        %v2516 = vpack.c.b16 %v2468, %v2452
        %v2517 = vpack.c.b16 %v2469, %v2453
        %v2518 = vpack.c.b16 %v2470, %v2454
        %v2519 = vpack.c.b16 %v2471, %v2455
        %v2520 = vpack.c.b16 %v2472, %v2456
        %v2521 = vpack.c.b16 %v2473, %v2457
        %v2522 = vpack.c.b16 %v2474, %v2458
        %v2523 = vpack.c.b16 %v2475, %v2459
        %v2524 = vpack.c.b16 %v2476, %v2460
        %v2525 = vpack.c.b16 %v2477, %v2461
        %v2526 = vpack.c.b16 %v2478, %v2462
        %v2527 = vpack.c.b16 %v2479, %v2463
        %v2528 = vpack.c.b16 %v2480, %v2464
        %v2529 = vpack.c.b16 %v2481, %v2465
        %v2530 = vpack.c.b16 %v2482, %v2466
        %v2531 = vpack.c.b16 %v2483, %v2467
        %v2532 = vpack.c.b16 %v2500, %v2484
        %v2533 = vpack.c.b16 %v2501, %v2485
        %v2534 = vpack.c.b16 %v2502, %v2486
        %v2535 = vpack.c.b16 %v2503, %v2487
        %v2536 = vpack.c.b16 %v2504, %v2488
        %v2537 = vpack.c.b16 %v2505, %v2489
        %v2538 = vpack.c.b16 %v2506, %v2490
        %v2539 = vpack.c.b16 %v2507, %v2491
        %v2540 = vpack.c.b16 %v2508, %v2492
        %v2541 = vpack.c.b16 %v2509, %v2493
        %v2542 = vpack.c.b16 %v2510, %v2494
        %v2543 = vpack.c.b16 %v2511, %v2495
        %v2544 = vpack.c.b16 %v2512, %v2496
        %v2545 = vpack.c.b16 %v2513, %v2497
        %v2546 = vpack.c.b16 %v2514, %v2498
        %v2547 = vpack.c.b16 %v2515, %v2499
        %2580 = vmatprep.subr.bf16.mxu0 %v2517
        %2581 = vmatpush1.bf16.xpose.msra.mxu0 %v2516
        %2582 = vmatprep.subr.bf16.mxu0 %v2533
        %2583 = vmatpush1.bf16.xpose.msra.mxu0 %v2532
        %2584 = vmatprep.subr.bf16.mxu0 0
        %2585 = vmatpush1.bf16.xpose.msra.mxu0 0
        %2586 = vmatprep.subr.bf16.mxu0 0
        %2587 = vmatpush1.bf16.xpose.msra.mxu0 0
        %2588 = vmatprep.subr.bf16.mxu0 0
        %2589 = vmatpush1.bf16.xpose.msra.mxu0 0
        %2590 = vmatprep.subr.bf16.mxu0 0
        %2591 = vmatpush1.bf16.xpose.msra.mxu0 0
        %2592 = vmatprep.subr.bf16.mxu0 0
        %2593 = vmatpush1.bf16.xpose.msra.mxu0 0
        %2594 = vmatprep.subr.bf16.mxu0 0
        %2595 = vmatpush1.bf16.xpose.msra.mxu0 0
        %2596 = vmatprep.subr.bf16.mxu0 0
        %2597 = vmatpush1.bf16.xpose.msra.mxu0 0
        %2598 = vmatprep.subr.bf16.mxu0 0
        %2599 = vmatpush1.bf16.xpose.msra.mxu0 0
        %2600 = vmatprep.subr.bf16.mxu0 0
        %2601 = vmatpush1.bf16.xpose.msra.mxu0 0
        %2602 = vmatprep.subr.bf16.mxu0 0
        %2603 = vmatpush1.bf16.xpose.msra.mxu0 0
        %2604 = vmatprep.subr.bf16.mxu0 0
        %2605 = vmatpush1.bf16.xpose.msra.mxu0 0
        %2606 = vmatprep.subr.bf16.mxu0 0
        %2607 = vmatpush1.bf16.xpose.msra.mxu0 0
        %2608 = vmatprep.subr.bf16.mxu0 0
        %2609 = vmatpush1.bf16.xpose.msra.mxu0 0
        %2610 = vmatprep.subr.bf16.mxu0 0
        %2611 = vmatpush1.bf16.xpose.msra.mxu0 0
        %2612 = vmatprep.mubr.bf16.mxu0 %v2366
        %2613 = vmatmul.mubr.bf16.gmra.mrb[0].mxu0 %v2365
        %v2614 = vpop.f32.mrb[0].mxu0
        %v2615 = vadd.f32 %v2418, %v2614
        %v2616 = vpop.f32.mrb[0].mxu0
        %v2617 = vpop.f32.mrb[0].mxu0
        %v2618 = vadd.f32 %v2418, %v2617
        %v2619 = vpop.f32.mrb[0].mxu0
        %2620 = vdwg.mxu0
        %2621 = vmatprep.subr.bf16.mxu0 %v2519
        %2622 = vmatpush1.bf16.xpose.msra.mxu0 %v2518
        %2623 = vmatprep.subr.bf16.mxu0 %v2535
        %2624 = vmatpush1.bf16.xpose.msra.mxu0 %v2534
        %2625 = vmatprep.subr.bf16.mxu0 0
        %2626 = vmatpush1.bf16.xpose.msra.mxu0 0
        %2627 = vmatprep.subr.bf16.mxu0 0
        %2628 = vmatpush1.bf16.xpose.msra.mxu0 0
        %2629 = vmatprep.subr.bf16.mxu0 0
        %2630 = vmatpush1.bf16.xpose.msra.mxu0 0
        %2631 = vmatprep.subr.bf16.mxu0 0
        %2632 = vmatpush1.bf16.xpose.msra.mxu0 0
        %2633 = vmatprep.subr.bf16.mxu0 0
        %2634 = vmatpush1.bf16.xpose.msra.mxu0 0
        %2635 = vmatprep.subr.bf16.mxu0 0
        %2636 = vmatpush1.bf16.xpose.msra.mxu0 0
        %2637 = vmatprep.subr.bf16.mxu0 0
        %2638 = vmatpush1.bf16.xpose.msra.mxu0 0
        %2639 = vmatprep.subr.bf16.mxu0 0
        %2640 = vmatpush1.bf16.xpose.msra.mxu0 0
        %2641 = vmatprep.subr.bf16.mxu0 0
        %2642 = vmatpush1.bf16.xpose.msra.mxu0 0
        %2643 = vmatprep.subr.bf16.mxu0 0
        %2644 = vmatpush1.bf16.xpose.msra.mxu0 0
        %2645 = vmatprep.subr.bf16.mxu0 0
        %2646 = vmatpush1.bf16.xpose.msra.mxu0 0
        %2647 = vmatprep.subr.bf16.mxu0 0
        %2648 = vmatpush1.bf16.xpose.msra.mxu0 0
        %2649 = vmatprep.subr.bf16.mxu0 0
        %2650 = vmatpush1.bf16.xpose.msra.mxu0 0
        %2651 = vmatprep.subr.bf16.mxu0 0
        %2652 = vmatpush1.bf16.xpose.msra.mxu0 0
        %2653 = vmatprep.mubr.bf16.mxu0 %v2368
        %2654 = vmatmul.mubr.bf16.gmra.mrb[0].mxu0 %v2367
        %v2655 = vpop.f32.mrb[0].mxu0
        %v2656 = vadd.f32 %v2615, %v2655
        %v2657 = vpop.f32.mrb[0].mxu0
        %v2658 = vpop.f32.mrb[0].mxu0
        %v2659 = vadd.f32 %v2618, %v2658
        %v2660 = vpop.f32.mrb[0].mxu0
        %2661 = vdwg.mxu0
        %2662 = vmatprep.subr.bf16.mxu0 %v2521
        %2663 = vmatpush1.bf16.xpose.msra.mxu0 %v2520
        %2664 = vmatprep.subr.bf16.mxu0 %v2537
        %2665 = vmatpush1.bf16.xpose.msra.mxu0 %v2536
        %2666 = vmatprep.subr.bf16.mxu0 0
        %2667 = vmatpush1.bf16.xpose.msra.mxu0 0
        %2668 = vmatprep.subr.bf16.mxu0 0
        %2669 = vmatpush1.bf16.xpose.msra.mxu0 0
        %2670 = vmatprep.subr.bf16.mxu0 0
        %2671 = vmatpush1.bf16.xpose.msra.mxu0 0
        %2672 = vmatprep.subr.bf16.mxu0 0
        %2673 = vmatpush1.bf16.xpose.msra.mxu0 0
        %2674 = vmatprep.subr.bf16.mxu0 0
        %2675 = vmatpush1.bf16.xpose.msra.mxu0 0
        %2676 = vmatprep.subr.bf16.mxu0 0
        %2677 = vmatpush1.bf16.xpose.msra.mxu0 0
        %2678 = vmatprep.subr.bf16.mxu0 0
        %2679 = vmatpush1.bf16.xpose.msra.mxu0 0
        %2680 = vmatprep.subr.bf16.mxu0 0
        %2681 = vmatpush1.bf16.xpose.msra.mxu0 0
        %2682 = vmatprep.subr.bf16.mxu0 0
        %2683 = vmatpush1.bf16.xpose.msra.mxu0 0
        %2684 = vmatprep.subr.bf16.mxu0 0
        %2685 = vmatpush1.bf16.xpose.msra.mxu0 0
        %2686 = vmatprep.subr.bf16.mxu0 0
        %2687 = vmatpush1.bf16.xpose.msra.mxu0 0
        %2688 = vmatprep.subr.bf16.mxu0 0
        %2689 = vmatpush1.bf16.xpose.msra.mxu0 0
        %2690 = vmatprep.subr.bf16.mxu0 0
        %2691 = vmatpush1.bf16.xpose.msra.mxu0 0
        %2692 = vmatprep.subr.bf16.mxu0 0
        %2693 = vmatpush1.bf16.xpose.msra.mxu0 0
        %2694 = vmatprep.mubr.bf16.mxu0 %v2370
        %2695 = vmatmul.mubr.bf16.gmra.mrb[0].mxu0 %v2369
        %v2696 = vpop.f32.mrb[0].mxu0
        %v2697 = vadd.f32 %v2656, %v2696
        %v2698 = vpop.f32.mrb[0].mxu0
        %v2699 = vpop.f32.mrb[0].mxu0
        %v2700 = vadd.f32 %v2659, %v2699
        %v2701 = vpop.f32.mrb[0].mxu0
        %2702 = vdwg.mxu0
        %2703 = vmatprep.subr.bf16.mxu0 %v2523
        %2704 = vmatpush1.bf16.xpose.msra.mxu0 %v2522
        %2705 = vmatprep.subr.bf16.mxu0 %v2539
        %2706 = vmatpush1.bf16.xpose.msra.mxu0 %v2538
        %2707 = vmatprep.subr.bf16.mxu0 0
        %2708 = vmatpush1.bf16.xpose.msra.mxu0 0
        %2709 = vmatprep.subr.bf16.mxu0 0
        %2710 = vmatpush1.bf16.xpose.msra.mxu0 0
        %2711 = vmatprep.subr.bf16.mxu0 0
        %2712 = vmatpush1.bf16.xpose.msra.mxu0 0
        %2713 = vmatprep.subr.bf16.mxu0 0
        %2714 = vmatpush1.bf16.xpose.msra.mxu0 0
        %2715 = vmatprep.subr.bf16.mxu0 0
        %2716 = vmatpush1.bf16.xpose.msra.mxu0 0
        %2717 = vmatprep.subr.bf16.mxu0 0
        %2718 = vmatpush1.bf16.xpose.msra.mxu0 0
        %2719 = vmatprep.subr.bf16.mxu0 0
        %2720 = vmatpush1.bf16.xpose.msra.mxu0 0
        %2721 = vmatprep.subr.bf16.mxu0 0
        %2722 = vmatpush1.bf16.xpose.msra.mxu0 0
        %2723 = vmatprep.subr.bf16.mxu0 0
        %2724 = vmatpush1.bf16.xpose.msra.mxu0 0
        %2725 = vmatprep.subr.bf16.mxu0 0
        %2726 = vmatpush1.bf16.xpose.msra.mxu0 0
        %2727 = vmatprep.subr.bf16.mxu0 0
        %2728 = vmatpush1.bf16.xpose.msra.mxu0 0
        %2729 = vmatprep.subr.bf16.mxu0 0
        %2730 = vmatpush1.bf16.xpose.msra.mxu0 0
        %2731 = vmatprep.subr.bf16.mxu0 0
        %2732 = vmatpush1.bf16.xpose.msra.mxu0 0
        %2733 = vmatprep.subr.bf16.mxu0 0
        %2734 = vmatpush1.bf16.xpose.msra.mxu0 0
        %2735 = vmatprep.mubr.bf16.mxu0 %v2372
        %2736 = vmatmul.mubr.bf16.gmra.mrb[0].mxu0 %v2371
        %v2737 = vpop.f32.mrb[0].mxu0
        %v2738 = vadd.f32 %v2697, %v2737
        %v2739 = vpop.f32.mrb[0].mxu0
        %v2740 = vpop.f32.mrb[0].mxu0
        %v2741 = vadd.f32 %v2700, %v2740
        %v2742 = vpop.f32.mrb[0].mxu0
        %2743 = vdwg.mxu0
        %2744 = vmatprep.subr.bf16.mxu0 %v2525
        %2745 = vmatpush1.bf16.xpose.msra.mxu0 %v2524
        %2746 = vmatprep.subr.bf16.mxu0 %v2541
        %2747 = vmatpush1.bf16.xpose.msra.mxu0 %v2540
        %2748 = vmatprep.subr.bf16.mxu0 0
        %2749 = vmatpush1.bf16.xpose.msra.mxu0 0
        %2750 = vmatprep.subr.bf16.mxu0 0
        %2751 = vmatpush1.bf16.xpose.msra.mxu0 0
        %2752 = vmatprep.subr.bf16.mxu0 0
        %2753 = vmatpush1.bf16.xpose.msra.mxu0 0
        %2754 = vmatprep.subr.bf16.mxu0 0
        %2755 = vmatpush1.bf16.xpose.msra.mxu0 0
        %2756 = vmatprep.subr.bf16.mxu0 0
        %2757 = vmatpush1.bf16.xpose.msra.mxu0 0
        %2758 = vmatprep.subr.bf16.mxu0 0
        %2759 = vmatpush1.bf16.xpose.msra.mxu0 0
        %2760 = vmatprep.subr.bf16.mxu0 0
        %2761 = vmatpush1.bf16.xpose.msra.mxu0 0
        %2762 = vmatprep.subr.bf16.mxu0 0
        %2763 = vmatpush1.bf16.xpose.msra.mxu0 0
        %2764 = vmatprep.subr.bf16.mxu0 0
        %2765 = vmatpush1.bf16.xpose.msra.mxu0 0
        %2766 = vmatprep.subr.bf16.mxu0 0
        %2767 = vmatpush1.bf16.xpose.msra.mxu0 0
        %2768 = vmatprep.subr.bf16.mxu0 0
        %2769 = vmatpush1.bf16.xpose.msra.mxu0 0
        %2770 = vmatprep.subr.bf16.mxu0 0
        %2771 = vmatpush1.bf16.xpose.msra.mxu0 0
        %2772 = vmatprep.subr.bf16.mxu0 0
        %2773 = vmatpush1.bf16.xpose.msra.mxu0 0
        %2774 = vmatprep.subr.bf16.mxu0 0
        %2775 = vmatpush1.bf16.xpose.msra.mxu0 0
        %2776 = vmatprep.mubr.bf16.mxu0 %v2374
        %2777 = vmatmul.mubr.bf16.gmra.mrb[0].mxu0 %v2373
        %v2778 = vpop.f32.mrb[0].mxu0
        %v2779 = vadd.f32 %v2738, %v2778
        %v2780 = vpop.f32.mrb[0].mxu0
        %v2781 = vpop.f32.mrb[0].mxu0
        %v2782 = vadd.f32 %v2741, %v2781
        %v2783 = vpop.f32.mrb[0].mxu0
        %2784 = vdwg.mxu0
        %2785 = vmatprep.subr.bf16.mxu0 %v2527
        %2786 = vmatpush1.bf16.xpose.msra.mxu0 %v2526
        %2787 = vmatprep.subr.bf16.mxu0 %v2543
        %2788 = vmatpush1.bf16.xpose.msra.mxu0 %v2542
        %2789 = vmatprep.subr.bf16.mxu0 0
        %2790 = vmatpush1.bf16.xpose.msra.mxu0 0
        %2791 = vmatprep.subr.bf16.mxu0 0
        %2792 = vmatpush1.bf16.xpose.msra.mxu0 0
        %2793 = vmatprep.subr.bf16.mxu0 0
        %2794 = vmatpush1.bf16.xpose.msra.mxu0 0
        %2795 = vmatprep.subr.bf16.mxu0 0
        %2796 = vmatpush1.bf16.xpose.msra.mxu0 0
        %2797 = vmatprep.subr.bf16.mxu0 0
        %2798 = vmatpush1.bf16.xpose.msra.mxu0 0
        %2799 = vmatprep.subr.bf16.mxu0 0
        %2800 = vmatpush1.bf16.xpose.msra.mxu0 0
        %2801 = vmatprep.subr.bf16.mxu0 0
        %2802 = vmatpush1.bf16.xpose.msra.mxu0 0
        %2803 = vmatprep.subr.bf16.mxu0 0
        %2804 = vmatpush1.bf16.xpose.msra.mxu0 0
        %2805 = vmatprep.subr.bf16.mxu0 0
        %2806 = vmatpush1.bf16.xpose.msra.mxu0 0
        %2807 = vmatprep.subr.bf16.mxu0 0
        %2808 = vmatpush1.bf16.xpose.msra.mxu0 0
        %2809 = vmatprep.subr.bf16.mxu0 0
        %2810 = vmatpush1.bf16.xpose.msra.mxu0 0
        %2811 = vmatprep.subr.bf16.mxu0 0
        %2812 = vmatpush1.bf16.xpose.msra.mxu0 0
        %2813 = vmatprep.subr.bf16.mxu0 0
        %2814 = vmatpush1.bf16.xpose.msra.mxu0 0
        %2815 = vmatprep.subr.bf16.mxu0 0
        %2816 = vmatpush1.bf16.xpose.msra.mxu0 0
        %2817 = vmatprep.mubr.bf16.mxu0 %v2376
        %2818 = vmatmul.mubr.bf16.gmra.mrb[0].mxu0 %v2375
        %v2819 = vpop.f32.mrb[0].mxu0
        %v2820 = vadd.f32 %v2779, %v2819
        %v2821 = vpop.f32.mrb[0].mxu0
        %v2822 = vpop.f32.mrb[0].mxu0
        %v2823 = vadd.f32 %v2782, %v2822
        %v2824 = vpop.f32.mrb[0].mxu0
        %2825 = vdwg.mxu0
        %2826 = vmatprep.subr.bf16.mxu0 %v2529
        %2827 = vmatpush1.bf16.xpose.msra.mxu0 %v2528
        %2828 = vmatprep.subr.bf16.mxu0 %v2545
        %2829 = vmatpush1.bf16.xpose.msra.mxu0 %v2544
        %2830 = vmatprep.subr.bf16.mxu0 0
        %2831 = vmatpush1.bf16.xpose.msra.mxu0 0
        %2832 = vmatprep.subr.bf16.mxu0 0
        %2833 = vmatpush1.bf16.xpose.msra.mxu0 0
        %2834 = vmatprep.subr.bf16.mxu0 0
        %2835 = vmatpush1.bf16.xpose.msra.mxu0 0
        %2836 = vmatprep.subr.bf16.mxu0 0
        %2837 = vmatpush1.bf16.xpose.msra.mxu0 0
        %2838 = vmatprep.subr.bf16.mxu0 0
        %2839 = vmatpush1.bf16.xpose.msra.mxu0 0
        %2840 = vmatprep.subr.bf16.mxu0 0
        %2841 = vmatpush1.bf16.xpose.msra.mxu0 0
        %2842 = vmatprep.subr.bf16.mxu0 0
        %2843 = vmatpush1.bf16.xpose.msra.mxu0 0
        %2844 = vmatprep.subr.bf16.mxu0 0
        %2845 = vmatpush1.bf16.xpose.msra.mxu0 0
        %2846 = vmatprep.subr.bf16.mxu0 0
        %2847 = vmatpush1.bf16.xpose.msra.mxu0 0
        %2848 = vmatprep.subr.bf16.mxu0 0
        %2849 = vmatpush1.bf16.xpose.msra.mxu0 0
        %2850 = vmatprep.subr.bf16.mxu0 0
        %2851 = vmatpush1.bf16.xpose.msra.mxu0 0
        %2852 = vmatprep.subr.bf16.mxu0 0
        %2853 = vmatpush1.bf16.xpose.msra.mxu0 0
        %2854 = vmatprep.subr.bf16.mxu0 0
        %2855 = vmatpush1.bf16.xpose.msra.mxu0 0
        %2856 = vmatprep.subr.bf16.mxu0 0
        %2857 = vmatpush1.bf16.xpose.msra.mxu0 0
        %2858 = vmatprep.mubr.bf16.mxu0 %v2378
        %2859 = vmatmul.mubr.bf16.gmra.mrb[0].mxu0 %v2377
        %v2860 = vpop.f32.mrb[0].mxu0
        %v2861 = vadd.f32 %v2820, %v2860
        %v2862 = vpop.f32.mrb[0].mxu0
        %v2863 = vpop.f32.mrb[0].mxu0
        %v2864 = vadd.f32 %v2823, %v2863
        %v2865 = vpop.f32.mrb[0].mxu0
        %2866 = vdwg.mxu0
        %2867 = vmatprep.subr.bf16.mxu0 %v2531
        %2868 = vmatpush1.bf16.xpose.msra.mxu0 %v2530
        %2869 = vmatprep.subr.bf16.mxu0 %v2547
        %2870 = vmatpush1.bf16.xpose.msra.mxu0 %v2546
        %2871 = vmatprep.subr.bf16.mxu0 0
        %2872 = vmatpush1.bf16.xpose.msra.mxu0 0
        %2873 = vmatprep.subr.bf16.mxu0 0
        %2874 = vmatpush1.bf16.xpose.msra.mxu0 0
        %2875 = vmatprep.subr.bf16.mxu0 0
        %2876 = vmatpush1.bf16.xpose.msra.mxu0 0
        %2877 = vmatprep.subr.bf16.mxu0 0
        %2878 = vmatpush1.bf16.xpose.msra.mxu0 0
        %2879 = vmatprep.subr.bf16.mxu0 0
        %2880 = vmatpush1.bf16.xpose.msra.mxu0 0
        %2881 = vmatprep.subr.bf16.mxu0 0
        %2882 = vmatpush1.bf16.xpose.msra.mxu0 0
        %2883 = vmatprep.subr.bf16.mxu0 0
        %2884 = vmatpush1.bf16.xpose.msra.mxu0 0
        %2885 = vmatprep.subr.bf16.mxu0 0
        %2886 = vmatpush1.bf16.xpose.msra.mxu0 0
        %2887 = vmatprep.subr.bf16.mxu0 0
        %2888 = vmatpush1.bf16.xpose.msra.mxu0 0
        %2889 = vmatprep.subr.bf16.mxu0 0
        %2890 = vmatpush1.bf16.xpose.msra.mxu0 0
        %2891 = vmatprep.subr.bf16.mxu0 0
        %2892 = vmatpush1.bf16.xpose.msra.mxu0 0
        %2893 = vmatprep.subr.bf16.mxu0 0
        %2894 = vmatpush1.bf16.xpose.msra.mxu0 0
        %2895 = vmatprep.subr.bf16.mxu0 0
        %2896 = vmatpush1.bf16.xpose.msra.mxu0 0
        %2897 = vmatprep.subr.bf16.mxu0 0
        %2898 = vmatpush1.bf16.xpose.msra.mxu0 0
        %2899 = vmatprep.mubr.bf16.mxu0 %v2380
        %2900 = vmatmul.mubr.bf16.gmra.mrb[0].mxu0 %v2379
        %v2901 = vpop.f32.mrb[0].mxu0
        %v2902 = vadd.f32 %v2861, %v2901
        %v2903 = vpop.f32.mrb[0].mxu0
        %v2904 = vpop.f32.mrb[0].mxu0
        %v2905 = vadd.f32 %v2864, %v2904
        %v2906 = vpop.f32.mrb[0].mxu0
        %2907 = vdwg.mxu0
        %v2908 = vadd.f32 %v1707, %v2902
        %v2909 = vadd.f32 %v1708, %v2905
        %v2910 = vld [vmem:[%s992] sm:$0x1]
        %v2911 = vld [vmem:[%s995] sm:$0x1]
        %v2912 = vsel %vm1113, %v2908, 0.0
        %2913 = vadd.xlane.f32.xlu0 %v2912
        %v2914 = vpop.xlane.xlu0 %2913
        %v2915 = vsel %vm1113, %v2909, 0.0
        %2916 = vadd.xlane.f32.xlu0 %v2915
        %v2917 = vpop.xlane.xlu0 %2916
        %v2918 = vmul.f32 %v2914, %v1672
        %v2919 = vmul.f32 %v2917, %v1672
        %v2920 = vsub.f32 %v2908, %v2918
        %v2921 = vsub.f32 %v2909, %v2919
        %v2922 = vmul.f32 %v2920, %v2920
        %v2923 = vmul.f32 %v2921, %v2921
        %v2924 = vsel %vm1113, %v2922, 0.0
        %2925 = vadd.xlane.f32.xlu0 %v2924
        %v2926 = vpop.xlane.xlu0 %2925
        %v2927 = vsel %vm1113, %v2923, 0.0
        %2928 = vadd.xlane.f32.xlu0 %v2927
        %v2929 = vpop.xlane.xlu0 %2928
        %v2930 = vmul.f32 %v2926, %v1672
        %v2931 = vmul.f32 %v2929, %v1672
        %v2932 = vadd.f32 %v2930, 1e-05
        %v2933 = vadd.f32 %v2931, 1e-05
        %v2934 = vrsqrt.pop %v2932
        %v2935 = vrsqrt.pop %v2933
        %v2936 = vmul.f32 %v2920, %v2934
        %v2937 = vmul.f32 %v2921, %v2935
        %v2939 = vlaneseq
        %v2940 = vshrl.u32 %v2939, 7
        %v2941 = vsub.s32 0, %v2940
        %v2942 = vrot.slane %v2910, %v2941
        %v2944 = vmul.f32 %v2936, %v2942
        %v2945 = vmul.f32 %v2937, %v2942
        %v2947 = vlaneseq
        %v2948 = vshrl.u32 %v2947, 7
        %v2949 = vsub.s32 0, %v2948
        %v2950 = vrot.slane %v2911, %v2949
        %v2952 = vadd.f32 %v2944, %v2950
        %v2953 = vadd.f32 %v2945, %v2950
        %2954 = vst.msk [vmem:[#allocation2] sm:$0xff] %vm1113, %v2952
        %2955 = vst.msk [vmem:[#allocation2 + $0x8] sm:$0xff] %vm1113, %v2953
        %p2956 = scmp.eq.s32.totalorder %s47, 1
        // Predicated region
        $region153: #{tpu_custom_call.1} parent=99 // pred_check
          %p2957 = pneg %p2956
        $region154: #{tpu_custom_call.1} parent=99 // pred_check_branch
          %2959 = sbr.rel (%p2957) target = $region156
        $region155: #{tpu_custom_call.1} parent=99 // pred_region
          %v2960 = vld [vmem:[#allocation21] sm:$0xff]
          %v2961 = vld [vmem:[#allocation21 + $0x8] sm:$0xff]
          %v2962 = vld [vmem:[#allocation21 + $0x10] sm:$0xff]
          %v2963 = vld [vmem:[#allocation21 + $0x18] sm:$0xff]
          %v2964 = vld [vmem:[%s19] sm:$0x1]
          %v2966 = vlaneseq
          %v2967 = vshrl.u32 %v2966, 7
          %v2968 = vsub.s32 0, %v2967
          %v2969 = vrot.slane %v2964, %v2968
          %v2972 = vsel %vm1113, %v2952, 0
          %v2975 = vsel %vm1113, %v2953, 0
          %2977 = vmatprep.subr.mxu0 0.0
          %2978 = vmatpush1.msra.mxu0 %v2960
          %2979 = vmatprep.subr.mxu0 0.0
          %2980 = vmatpush1.msra.mxu0 %v2961
          %2981 = vmatprep.subr.mxu0 0.0
          %2982 = vmatpush1.msra.mxu0 %v2962
          %2983 = vmatprep.subr.mxu0 0.0
          %2984 = vmatpush1.msra.mxu0 %v2963
          %2985 = vmatprep.subr.mxu0 0.0
          %2986 = vmatpush1.msra.mxu0 0.0
          %2987 = vmatprep.subr.mxu0 0.0
          %2988 = vmatpush1.msra.mxu0 0.0
          %2989 = vmatprep.subr.mxu0 0.0
          %2990 = vmatpush1.msra.mxu0 0.0
          %2991 = vmatprep.subr.mxu0 0.0
          %2992 = vmatpush1.msra.mxu0 0.0
          %2993 = vmatprep.subr.mxu0 0.0
          %2994 = vmatpush1.msra.mxu0 0.0
          %2995 = vmatprep.subr.mxu0 0.0
          %2996 = vmatpush1.msra.mxu0 0.0
          %2997 = vmatprep.subr.mxu0 0.0
          %2998 = vmatpush1.msra.mxu0 0.0
          %2999 = vmatprep.subr.mxu0 0.0
          %3000 = vmatpush1.msra.mxu0 0.0
          %3001 = vmatprep.subr.mxu0 0.0
          %3002 = vmatpush1.msra.mxu0 0.0
          %3003 = vmatprep.subr.mxu0 0.0
          %3004 = vmatpush1.msra.mxu0 0.0
          %3005 = vmatprep.subr.mxu0 0.0
          %3006 = vmatpush1.msra.mxu0 0.0
          %3007 = vmatprep.subr.mxu0 0.0
          %3008 = vmatpush1.msra.mxu0 0.0
          %3009 = vmatprep.subr.mxu0 0.0
          %3010 = vmatpush1.msra.mxu0 0.0
          %3011 = vmatprep.subr.mxu0 0.0
          %3012 = vmatpush1.msra.mxu0 0.0
          %3013 = vmatprep.subr.mxu0 0.0
          %3014 = vmatpush1.msra.mxu0 0.0
          %3015 = vmatprep.subr.mxu0 0.0
          %3016 = vmatpush1.msra.mxu0 0.0
          %3017 = vmatprep.subr.mxu0 0.0
          %3018 = vmatpush1.msra.mxu0 0.0
          %3019 = vmatprep.subr.mxu0 0.0
          %3020 = vmatpush1.msra.mxu0 0.0
          %3021 = vmatprep.subr.mxu0 0.0
          %3022 = vmatpush1.msra.mxu0 0.0
          %3023 = vmatprep.subr.mxu0 0.0
          %3024 = vmatpush1.msra.mxu0 0.0
          %3025 = vmatprep.subr.mxu0 0.0
          %3026 = vmatpush1.msra.mxu0 0.0
          %3027 = vmatprep.subr.mxu0 0.0
          %3028 = vmatpush1.msra.mxu0 0.0
          %3029 = vmatprep.subr.mxu0 0.0
          %3030 = vmatpush1.msra.mxu0 0.0
          %3031 = vmatprep.subr.mxu0 0.0
          %3032 = vmatpush1.msra.mxu0 0.0
          %3033 = vmatprep.subr.mxu0 0.0
          %3034 = vmatpush1.msra.mxu0 0.0
          %3035 = vmatprep.subr.mxu0 0.0
          %3036 = vmatpush1.msra.mxu0 0.0
          %3037 = vmatprep.subr.mxu0 0.0
          %3038 = vmatpush1.msra.mxu0 0.0
          %3039 = vmatprep.subr.mxu0 0.0
          %3040 = vmatpush1.msra.mxu0 0.0
          %3041 = vmatprep.mubr.f32.mxu0 0.0
          %3042 = vmatmul.mubr.f32.gmra.mrb[0].mxu0 %v2972
          %v3043 = vpop.f32.mrb[0].mxu0
          %v3044 = vadd.f32 %v2969, %v3043
          %v3045 = vpop.f32.mrb[0].mxu0
          %3046 = vmatprep.mubr.f32.mxu0 0.0
          %3047 = vmatmul.mubr.f32.gmra.mrb[0].mxu0 %v2975
          %v3048 = vpop.f32.mrb[0].mxu0
          %v3049 = vadd.f32 %v2969, %v3048
          %v3050 = vpop.f32.mrb[0].mxu0
          %3051 = vdwg.mxu0
          %3052 = vst [vmem:[#allocation23] sm:$0xff] %v3044
          %3053 = vst [vmem:[#allocation23 + $0x8] sm:$0xff] %v3049
        $region156: #{tpu_custom_call.1} parent=99 // pred_fallthru
          _
        // Predicated region
        $region157: #{tpu_custom_call.1} parent=99 // pred_check
          %p3054 = pneg %p540
        $region158: #{tpu_custom_call.1} parent=99 // pred_check_branch
          %3056 = sbr.rel (%p3054) target = $region160
        $region159: #{tpu_custom_call.1} parent=99 // pred_region
          %s3058 = ssub.s32 256, 256
          %3059 = vsyncadd [#allocation5], %s3058
          %s3060 = sshll.u32 [#allocation23], 4
          %s3061 = int_to_ptr.vmem [resolvable:$true] %s3060
          %3066 = dma.vmem_to_hbm [thread:$0]  %s3061, 256, %s20, [#allocation5], 128, 128, 8
        $region160: #{tpu_custom_call.1} parent=99 // pred_fallthru
          _
        // Predicated region
        $region161: #{tpu_custom_call.1} parent=99 // pred_check
          %p3067 = pneg %p540
        $region162: #{tpu_custom_call.1} parent=99 // pred_check_branch
          %3069 = sbr.rel (%p3067) target = $region164
        $region163: #{tpu_custom_call.1} parent=99 // pred_region
          %3070 = dma.done [#allocation5], 256
        $region164: #{tpu_custom_call.1} parent=99 // pred_fallthru
          _
      $region100: #{tpu_custom_call.1} parent=5 // pred_fallthru
        _
      %p3071 = scmp.le.s32.totalorder 2, %s42
      // Predicated region
      $region165: #{tpu_custom_call.1} parent=5 // pred_check
        %p3072 = pneg %p3071
      $region166: #{tpu_custom_call.1} parent=5 // pred_check_branch
        %3074 = sbr.rel (%p3072) target = $region168
      $region167: #{tpu_custom_call.1} parent=5 // pred_region
        %s3075 = ssub.s32 %s42, 2
      $region168: #{tpu_custom_call.1} parent=5 // pred_fallthru
        _
    $region6: #{tpu_custom_call.1} parent=1 // loop_footer
      %s46 = sadd.s32 1, %s42
    $region7: #{tpu_custom_call.1} parent=1 // loop_footer_branch
      %41 = sbr.rel target = $region3
    $region8: #{tpu_custom_call.1} parent=1 // loop_exit
      _
    %3076 = vsyncpa [#allocation4], 1
    %s3077 = scalar_lea.sflag [#allocation4], 1
    %3078 = vsyncpa %s3077, 1
    %3079 = vsyncpa [#allocation7], 1
    %3080 = vsyncpa [#allocation10], 1
    %s3081 = scalar_lea.sflag [#allocation10], 1
    %3082 = vsyncpa %s3081, 1
    %3083 = vsyncpa [#allocation13], 1
    %s3084 = scalar_lea.sflag [#allocation13], 1
    %3085 = vsyncpa %s3084, 1
    %3086 = vsyncpa [#allocation16], 1
    %s3087 = scalar_lea.sflag [#allocation16], 1
    %3088 = vsyncpa %s3087, 1
    %3089 = vsyncpa [#allocation19], 1
    %s3090 = scalar_lea.sflag [#allocation19], 1
    %3091 = vsyncpa %s3090, 1
    %3092 = vsyncpa [#allocation22], 1
    %3093 = vsyncpa [#allocation5], 1
    %s3094 = scalar_lea.sflag [#allocation5], 1
    %3095 = vsyncpa %s3094, 1

</llo_original>
